<compile_context>
chip_gen: v6e
topology: v6e:2x2x1
jax: 0.10.0
libtpu: 0.0.40
codegen_flags: <defaults>
</compile_context>

<pallas_src>
import functools
import math

import numpy as np
import jax
import jax.numpy as jnp
from jax import lax
from jax.experimental import pallas as pl
from jax.experimental.pallas import tpu as pltpu

_BF16 = jnp.bfloat16


# --------------------------------------------------------------------------
# helpers
# --------------------------------------------------------------------------
def _layernorm(v, gamma, beta, eps=1e-5):
    # v: (rows, D) f32; gamma/beta: (1, D) f32.  Stats in f32.
    mu = jnp.mean(v, axis=-1, keepdims=True)
    var = jnp.mean((v - mu) ** 2, axis=-1, keepdims=True)
    return (v - mu) * lax.rsqrt(var + eps) * gamma + beta


def _gelu_exact(x):
    # PyTorch nn.GELU() default: exact erf form.
    return 0.5 * x * (1.0 + lax.erf(x * (1.0 / math.sqrt(2.0))))


def _const_spec(arr):
    # Whole-array block with a constant index map: fetched once, kept resident
    # across the grid (the pipeliner skips re-DMA on an unchanged block index).
    nd = arr.ndim
    return pl.BlockSpec(arr.shape, lambda *_, _nd=nd: (0,) * _nd)


def _round_up(a, m):
    return -(-a // m) * m


def _padded_nbytes(shape, dtype):
    # Conservative VMEM footprint: round sublane dim to 8, lane dim to 128.
    shape = tuple(int(s) for s in shape)
    if len(shape) < 2:
        shape = (1,) * (2 - len(shape)) + shape
    lead = 1
    for s in shape[:-2]:
        lead *= s
    sub = _round_up(shape[-2], 8)
    lane = _round_up(shape[-1], 128)
    return lead * sub * lane * np.dtype(dtype).itemsize


# --------------------------------------------------------------------------
# fused encoder-layer kernel:
#   phase 1 (once per batch element): LN1 + per-head Q/K/V projections -> VMEM
#   phase 2 (per query row tile):     per-head softmax attention, head-merge
#                                     folded into per-head W_o blocks
#   phase 3 (per query row tile):     residual + LN2 + FFN(GELU) + residual
# --------------------------------------------------------------------------
def _encoder_kernel(x_ref, ln1g_ref, ln1b_ref,
                    wq_ref, bq_ref, wk_ref, bk_ref, wv_ref, bv_ref,
                    wo_ref, ln2g_ref, ln2b_ref, w1_ref, b1_ref, w2_ref, b2_ref,
                    out_ref, q_s, k_s, v_s,
                    *, num_heads, scale, n_valid):
    i = pl.program_id(1)                       # query row-tile index (sequential)
    n_pad, d = x_ref.shape[1], x_ref.shape[2]
    tm = out_ref.shape[1]

    # ---------------- phase 1: once per batch element ----------------
    @pl.when(i == 0)
    def _():
        xf = x_ref[0].astype(jnp.float32)                          # (n_pad, d)
        xn = _layernorm(xf, ln1g_ref[...], ln1b_ref[...]).astype(_BF16)
        for h in range(num_heads):                                 # static unroll
            q = jnp.dot(xn, wq_ref[h], preferred_element_type=jnp.float32) + bq_ref[h]
            k = jnp.dot(xn, wk_ref[h], preferred_element_type=jnp.float32) + bk_ref[h]
            v = jnp.dot(xn, wv_ref[h], preferred_element_type=jnp.float32) + bv_ref[h]
            # Fold the 1/sqrt(head_dim) attention scale into q once.
            q_s[h] = (q * scale).astype(_BF16)
            k_s[h] = k.astype(_BF16)
            v_s[h] = v.astype(_BF16)

    # ---------------- phase 2: attention for this query row tile ------------
    row0 = pl.multiple_of(i * tm, 8)
    if n_valid != n_pad:   # static: only when the sequence was padded
        key_mask = lax.broadcasted_iota(jnp.int32, (tm, n_pad), 1) < n_valid

    attn = jnp.zeros((tm, d), jnp.float32)
    for h in range(num_heads):                                     # static unroll
        q_h = q_s[h, pl.ds(row0, tm), :]                           # (tm, hd) bf16
        # scores = (q * scale) @ k^T, f32 accumulation on the MXU.
        s = lax.dot_general(q_h, k_s[h], (((1,), (1,)), ((), ())),
                            preferred_element_type=jnp.float32)    # (tm, n_pad)
        if n_valid != n_pad:
            s = jnp.where(key_mask, s, -1e30)
        s = s - jnp.max(s, axis=-1, keepdims=True)
        p = jnp.exp(s)
        p = p * pl.reciprocal(jnp.sum(p, axis=-1, keepdims=True), approx=True)
        o_h = jnp.dot(p.astype(_BF16), v_s[h],
                      preferred_element_type=jnp.float32)          # (tm, hd)
        # Head merge folded into the output projection: attn += o_h @ Wo_h.
        attn = attn + jnp.dot(o_h.astype(_BF16), wo_ref[h],
                              preferred_element_type=jnp.float32)  # (tm, d)

    # ---------------- phase 3: residuals + LN2 + FFN ----------------
    x_t = x_ref[0, pl.ds(row0, tm), :].astype(jnp.float32)         # (tm, d)
    a = x_t + attn
    an = _layernorm(a, ln2g_ref[...], ln2b_ref[...])
    h1 = jnp.dot(an.astype(_BF16), w1_ref[...],
                 preferred_element_type=jnp.float32) + b1_ref[...]
    h1 = _gelu_exact(h1)
    h2 = jnp.dot(h1.astype(_BF16), w2_ref[...],
                 preferred_element_type=jnp.float32) + b2_ref[...]
    out_ref[0] = (a + h2).astype(out_ref.dtype)


# --------------------------------------------------------------------------
# wrapper
# --------------------------------------------------------------------------
def self_encoder_layer(x, params, num_heads, *, row_tile=256):
    """x: (B, N, D) float32; params: dict from init_params; eval-mode forward."""
    B, N, D = x.shape
    H = num_heads
    assert D % H == 0
    hd = D // H
    Hd = params["w1"].shape[1]

    # Fixed, sublane-aligned query row tile; pad the sequence instead of
    # shrinking the tile (padded keys are masked in-kernel).
    tm = min(row_tile, _round_up(N, 8))
    n_pad = _round_up(N, tm)
    nq = n_pad // tm

    bf, f32 = _BF16, jnp.float32
    # Per-head weight blocks prepared wrapper-side (one-time layout plumbing on
    # weights; keeps the kernel free of lane slicing / relayouts).
    wq = params["wq"].reshape(D, H, hd).transpose(1, 0, 2).astype(bf)   # (H, D, hd)
    wk = params["wk"].reshape(D, H, hd).transpose(1, 0, 2).astype(bf)
    wv = params["wv"].reshape(D, H, hd).transpose(1, 0, 2).astype(bf)
    bq = params["bq"].reshape(H, 1, hd).astype(f32)
    bk = params["bk"].reshape(H, 1, hd).astype(f32)
    bv = params["bv"].reshape(H, 1, hd).astype(f32)
    wo = params["wo"].reshape(H, hd, D).astype(bf)                      # (H, hd, D)
    w1 = params["w1"].astype(bf); b1 = params["b1"].astype(f32)
    w2 = params["w2"].astype(bf); b2 = params["b2"].astype(f32)
    ln1g = params["ln1_g"].astype(f32); ln1b = params["ln1_b"].astype(f32)
    ln2g = params["ln2_g"].astype(f32); ln2b = params["ln2_b"].astype(f32)

    x_in = x if n_pad == N else jnp.pad(x, ((0, 0), (0, n_pad - N), (0, 0)))

    weights = [ln1g, ln1b, wq, bq, wk, bk, wv, bv, wo, ln2g, ln2b, w1, b1, w2, b2]

    x_spec = pl.BlockSpec((1, n_pad, D), lambda b, i: (b, 0, 0))   # full seq per b
    out_spec = pl.BlockSpec((1, tm, D), lambda b, i: (b, i, 0))    # query row tile

    # VMEM budget: 2x (double-buffered) blocks + resident scratch + in-kernel
    # intermediates + headroom; no artificial floor, capped < 64 MiB for v7x.
    blk = [_padded_nbytes((1, n_pad, D), f32), _padded_nbytes((1, tm, D), f32)]
    blk += [_padded_nbytes(w.shape, w.dtype) for w in weights]
    scratch_bytes = 3 * _padded_nbytes((H, n_pad, hd), bf)
    interm = (4 * _padded_nbytes((tm, n_pad), f32)        # scores / exp per head
              + 3 * _padded_nbytes((n_pad, D), f32)       # LN1 / xn working set
              + 4 * _padded_nbytes((tm, D), f32)          # residual / attn / LN2
              + 3 * _padded_nbytes((tm, Hd), f32))        # FFN hidden
    vmem_limit = int(min(2 * sum(blk) + scratch_bytes + interm + (8 << 20),
                         48 << 20))

    kernel = functools.partial(_encoder_kernel, num_heads=H,
                               scale=float(hd) ** -0.5, n_valid=N)

    out = pl.pallas_call(
        kernel,
        out_shape=jax.ShapeDtypeStruct((B, n_pad, D), x.dtype),
        grid_spec=pltpu.PrefetchScalarGridSpec(
            num_scalar_prefetch=0,
            grid=(B, nq),
            in_specs=[x_spec] + [_const_spec(w) for w in weights],
            out_specs=out_spec,
            scratch_shapes=[pltpu.VMEM((H, n_pad, hd), bf)] * 3,   # q, k, v
        ),
        compiler_params=pltpu.CompilerParams(
            # batch axis parallel (megacore splits b, nothing resident is
            # duplicated); row-tile axis sequential (scratch carries K/V state).
            dimension_semantics=("parallel", "arbitrary"),
            vmem_limit_bytes=vmem_limit,
        ),
    )(x_in, *weights)

    return out if n_pad == N else out[:, :N, :]


# --------------------------------------------------------------------------
# params + pure-JAX reference (mirrors the PyTorch forward, eval mode, f32)
# --------------------------------------------------------------------------
def init_params(key, embed_dim, hidden_dim):
    ks = jax.random.split(key, 9)
    s = 0.02
    D, Hd = embed_dim, hidden_dim
    # Linear weights stored as (in, out); biases as (1, out) for broadcasting.
    return {
        "wq": jax.random.normal(ks[0], (D, D), jnp.float32) * s,
        "bq": jax.random.normal(ks[1], (1, D), jnp.float32) * s,
        "wk": jax.random.normal(ks[2], (D, D), jnp.float32) * s,
        "bk": jax.random.normal(ks[3], (1, D), jnp.float32) * s,
        "wv": jax.random.normal(ks[4], (D, D), jnp.float32) * s,
        "bv": jax.random.normal(ks[5], (1, D), jnp.float32) * s,
        "wo": jax.random.normal(ks[6], (D, D), jnp.float32) * s,
        "ln1_g": jnp.ones((1, D), jnp.float32),
        "ln1_b": jnp.zeros((1, D), jnp.float32),
        "ln2_g": jnp.ones((1, D), jnp.float32),
        "ln2_b": jnp.zeros((1, D), jnp.float32),
        "w1": jax.random.normal(ks[7], (D, Hd), jnp.float32) * s,
        "b1": jnp.zeros((1, Hd), jnp.float32),
        "w2": jax.random.normal(ks[8], (Hd, D), jnp.float32) * s,
        "b2": jnp.zeros((1, D), jnp.float32),
    }


def reference(x, p, num_heads):
    B, N, D = x.shape
    hd = D // num_heads

    def ln(v, g, b):
        mu = jnp.mean(v, -1, keepdims=True)
        var = jnp.mean((v - mu) ** 2, -1, keepdims=True)
        return (v - mu) / jnp.sqrt(var + 1e-5) * g + b

    xn = ln(x, p["ln1_g"], p["ln1_b"])
    q = xn @ p["wq"] + p["bq"]
    k = xn @ p["wk"] + p["bk"]
    v = xn @ p["wv"] + p["bv"]
    q = q.reshape(B, N, num_heads, hd).transpose(0, 2, 1, 3)
    k = k.reshape(B, N, num_heads, hd).transpose(0, 2, 1, 3)
    v = v.reshape(B, N, num_heads, hd).transpose(0, 2, 1, 3)
    s = jnp.einsum("bhnd,bhmd->bhnm", q, k) * hd ** (-0.5)
    w = jax.nn.softmax(s, axis=-1)
    o = jnp.einsum("bhnm,bhmd->bhnd", w, v).transpose(0, 2, 1, 3).reshape(B, N, D)
    a = x + o @ p["wo"]
    an = ln(a, p["ln2_g"], p["ln2_b"])
    h = jax.nn.gelu(an @ p["w1"] + p["b1"], approximate=False)
    return a + h @ p["w2"] + p["b2"]


if __name__ == "__main__":
    # Module defaults: embed_dim=64, hidden_dim=64, num_heads=4; small batch/seq.
    B, N, D, HEADS, HIDDEN = 2, 16, 64, 4, 64
    key = jax.random.PRNGKey(0)
    kx, kp = jax.random.split(key)
    params = init_params(kp, D, HIDDEN)

    # Two sequence lengths: 16 (aligned, no padding) and 12 (exercises the
    # padded / masked-key tail path).
    for n in (N, 12):
        x = jax.random.normal(jax.random.fold_in(kx, n), (B, n, D), jnp.float32)
        out = jax.block_until_ready(self_encoder_layer(x, params, HEADS))
        ref = reference(x, params, HEADS)
        assert out.shape == (B, n, D)
        err = float(jnp.max(jnp.abs(out - ref)))
        # bf16 MXU operands (f32 accumulation) + approx EUP reciprocal in the
        # softmax -> loosened tolerance vs. the pure-f32 reference.
        assert err < 2e-2, (n, err)
    print("KERNEL_OK")
</pallas_src>

<mosaic_0001>
module attributes {stable_mosaic.version = 11 : i64} {
  func.func @_encoder_kernel(%arg0: i32, %arg1: i32, %arg2: memref<1x16x64xf32, #tpu.memory_space<vmem>>, %arg3: memref<1x64xf32, #tpu.memory_space<vmem>>, %arg4: memref<1x64xf32, #tpu.memory_space<vmem>>, %arg5: memref<4x64x16xbf16, #tpu.memory_space<vmem>>, %arg6: memref<4x1x16xf32, #tpu.memory_space<vmem>>, %arg7: memref<4x64x16xbf16, #tpu.memory_space<vmem>>, %arg8: memref<4x1x16xf32, #tpu.memory_space<vmem>>, %arg9: memref<4x64x16xbf16, #tpu.memory_space<vmem>>, %arg10: memref<4x1x16xf32, #tpu.memory_space<vmem>>, %arg11: memref<4x16x64xbf16, #tpu.memory_space<vmem>>, %arg12: memref<1x64xf32, #tpu.memory_space<vmem>>, %arg13: memref<1x64xf32, #tpu.memory_space<vmem>>, %arg14: memref<64x64xbf16, #tpu.memory_space<vmem>>, %arg15: memref<1x64xf32, #tpu.memory_space<vmem>>, %arg16: memref<64x64xbf16, #tpu.memory_space<vmem>>, %arg17: memref<1x64xf32, #tpu.memory_space<vmem>>, %arg18: memref<1x16x64xf32, #tpu.memory_space<vmem>>, %arg19: memref<4x16x16xbf16, #tpu.memory_space<vmem>>, %arg20: memref<4x16x16xbf16, #tpu.memory_space<vmem>>, %arg21: memref<4x16x16xbf16, #tpu.memory_space<vmem>>) attributes {dimension_semantics = [#tpu.dimension_semantics<parallel>, #tpu.dimension_semantics<arbitrary>], iteration_bounds = array<i64: 2, 1>, scalar_prefetch = 0 : i64, scratch_operands = 3 : i64, tpu.core_type = #tpu.core_type<tc>, window_params = [{transform_indices = @transform_0, window_bounds = array<i64: 1, 16, 64>}, {pipeline_mode = #tpu.pipeline_mode<synchronous>, transform_indices = @transform_1, window_bounds = array<i64: 1, 64>}, {pipeline_mode = #tpu.pipeline_mode<synchronous>, transform_indices = @transform_2, window_bounds = array<i64: 1, 64>}, {pipeline_mode = #tpu.pipeline_mode<synchronous>, transform_indices = @transform_3, window_bounds = array<i64: 4, 64, 16>}, {pipeline_mode = #tpu.pipeline_mode<synchronous>, transform_indices = @transform_4, window_bounds = array<i64: 4, 1, 16>}, {pipeline_mode = #tpu.pipeline_mode<synchronous>, transform_indices = @transform_5, window_bounds = array<i64: 4, 64, 16>}, {pipeline_mode = #tpu.pipeline_mode<synchronous>, transform_indices = @transform_6, window_bounds = array<i64: 4, 1, 16>}, {pipeline_mode = #tpu.pipeline_mode<synchronous>, transform_indices = @transform_7, window_bounds = array<i64: 4, 64, 16>}, {pipeline_mode = #tpu.pipeline_mode<synchronous>, transform_indices = @transform_8, window_bounds = array<i64: 4, 1, 16>}, {pipeline_mode = #tpu.pipeline_mode<synchronous>, transform_indices = @transform_9, window_bounds = array<i64: 4, 16, 64>}, {pipeline_mode = #tpu.pipeline_mode<synchronous>, transform_indices = @transform_10, window_bounds = array<i64: 1, 64>}, {pipeline_mode = #tpu.pipeline_mode<synchronous>, transform_indices = @transform_11, window_bounds = array<i64: 1, 64>}, {pipeline_mode = #tpu.pipeline_mode<synchronous>, transform_indices = @transform_12, window_bounds = array<i64: 64, 64>}, {pipeline_mode = #tpu.pipeline_mode<synchronous>, transform_indices = @transform_13, window_bounds = array<i64: 1, 64>}, {pipeline_mode = #tpu.pipeline_mode<synchronous>, transform_indices = @transform_14, window_bounds = array<i64: 64, 64>}, {pipeline_mode = #tpu.pipeline_mode<synchronous>, transform_indices = @transform_15, window_bounds = array<i64: 1, 64>}, {transform_indices = @transform_16, window_bounds = array<i64: 1, 16, 64>}]} {
    %c0_i32 = arith.constant 0 : i32
    %0 = arith.cmpi eq, %arg1, %c0_i32 : i32
    %1 = arith.extui %0 : i1 to i32
    %c0_i32_0 = arith.constant 0 : i32
    %2 = arith.cmpi ne, %1, %c0_i32_0 : i32
    scf.if %2 {
      %c0_88 = arith.constant 0 : index
      %c0_89 = arith.constant 0 : index
      %c0_90 = arith.constant 0 : index
      %158 = vector.load %arg2[%c0_88, %c0_89, %c0_90] : memref<1x16x64xf32, #tpu.memory_space<vmem>>, vector<1x16x64xf32>
      %159 = vector.shape_cast %158 : vector<1x16x64xf32> to vector<16x64xf32>
      %c0_91 = arith.constant 0 : index
      %c0_92 = arith.constant 0 : index
      %160 = vector.load %arg3[%c0_91, %c0_92] : memref<1x64xf32, #tpu.memory_space<vmem>>, vector<1x64xf32>
      %c0_93 = arith.constant 0 : index
      %c0_94 = arith.constant 0 : index
      %161 = vector.load %arg4[%c0_93, %c0_94] : memref<1x64xf32, #tpu.memory_space<vmem>>, vector<1x64xf32>
      %cst_95 = arith.constant dense<0.000000e+00> : vector<16xf32>
      %162 = vector.multi_reduction <add>, %159, %cst_95 [1] : vector<16x64xf32> to vector<16xf32>
      %163 = vector.shape_cast %162 : vector<16xf32> to vector<16x1xf32>
      %cst_96 = arith.constant 6.400000e+01 : f32
      %164 = vector.broadcast %cst_96 : f32 to vector<16x1xf32>
      %165 = arith.divf %163, %164 : vector<16x1xf32>
      %166 = vector.broadcast %165 : vector<16x1xf32> to vector<16x64xf32>
      %167 = arith.subf %159, %166 : vector<16x64xf32>
      %168 = arith.mulf %167, %167 : vector<16x64xf32>
      %cst_97 = arith.constant dense<0.000000e+00> : vector<16xf32>
      %169 = vector.multi_reduction <add>, %168, %cst_97 [1] : vector<16x64xf32> to vector<16xf32>
      %170 = vector.shape_cast %169 : vector<16xf32> to vector<16x1xf32>
      %cst_98 = arith.constant 6.400000e+01 : f32
      %171 = vector.broadcast %cst_98 : f32 to vector<16x1xf32>
      %172 = arith.divf %170, %171 : vector<16x1xf32>
      %173 = vector.broadcast %165 : vector<16x1xf32> to vector<16x64xf32>
      %174 = arith.subf %159, %173 : vector<16x64xf32>
      %cst_99 = arith.constant 9.99999974E-6 : f32
      %175 = vector.broadcast %cst_99 : f32 to vector<16x1xf32>
      %176 = arith.addf %172, %175 : vector<16x1xf32>
      %177 = math.rsqrt %176 : vector<16x1xf32>
      %178 = vector.broadcast %177 : vector<16x1xf32> to vector<16x64xf32>
      %179 = arith.mulf %174, %178 : vector<16x64xf32>
      %180 = vector.broadcast %160 : vector<1x64xf32> to vector<16x64xf32>
      %181 = arith.mulf %179, %180 : vector<16x64xf32>
      %182 = vector.broadcast %161 : vector<1x64xf32> to vector<16x64xf32>
      %183 = arith.addf %181, %182 : vector<16x64xf32>
      %184 = arith.truncf %183 : vector<16x64xf32> to vector<16x64xbf16>
      %c0_100 = arith.constant 0 : index
      %c0_101 = arith.constant 0 : index
      %c0_102 = arith.constant 0 : index
      %185 = vector.load %arg5[%c0_100, %c0_101, %c0_102] : memref<4x64x16xbf16, #tpu.memory_space<vmem>>, vector<1x64x16xbf16>
      %186 = vector.shape_cast %185 : vector<1x64x16xbf16> to vector<64x16xbf16>
      %cst_103 = arith.constant dense<0.000000e+00> : vector<16x16xf32>
      %187 = tpu.matmul %184, %186, %cst_103 {dimension_numbers = #tpu.dot_dimension_numbers<[1], [0], [0], [1], [0, 0, 1, 1], [], []>} : vector<16x64xbf16>, vector<64x16xbf16>, vector<16x16xf32> -> vector<16x16xf32>
      %c0_104 = arith.constant 0 : index
      %c0_105 = arith.constant 0 : index
      %c0_106 = arith.constant 0 : index
      %188 = vector.load %arg6[%c0_104, %c0_105, %c0_106] : memref<4x1x16xf32, #tpu.memory_space<vmem>>, vector<1x1x16xf32>
      %189 = vector.shape_cast %188 : vector<1x1x16xf32> to vector<1x16xf32>
      %190 = vector.broadcast %189 : vector<1x16xf32> to vector<16x16xf32>
      %191 = arith.addf %187, %190 : vector<16x16xf32>
      %c0_107 = arith.constant 0 : index
      %c0_108 = arith.constant 0 : index
      %c0_109 = arith.constant 0 : index
      %192 = vector.load %arg7[%c0_107, %c0_108, %c0_109] : memref<4x64x16xbf16, #tpu.memory_space<vmem>>, vector<1x64x16xbf16>
      %193 = vector.shape_cast %192 : vector<1x64x16xbf16> to vector<64x16xbf16>
      %cst_110 = arith.constant dense<0.000000e+00> : vector<16x16xf32>
      %194 = tpu.matmul %184, %193, %cst_110 {dimension_numbers = #tpu.dot_dimension_numbers<[1], [0], [0], [1], [0, 0, 1, 1], [], []>} : vector<16x64xbf16>, vector<64x16xbf16>, vector<16x16xf32> -> vector<16x16xf32>
      %c0_111 = arith.constant 0 : index
      %c0_112 = arith.constant 0 : index
      %c0_113 = arith.constant 0 : index
      %195 = vector.load %arg8[%c0_111, %c0_112, %c0_113] : memref<4x1x16xf32, #tpu.memory_space<vmem>>, vector<1x1x16xf32>
      %196 = vector.shape_cast %195 : vector<1x1x16xf32> to vector<1x16xf32>
      %197 = vector.broadcast %196 : vector<1x16xf32> to vector<16x16xf32>
      %198 = arith.addf %194, %197 : vector<16x16xf32>
      %c0_114 = arith.constant 0 : index
      %c0_115 = arith.constant 0 : index
      %c0_116 = arith.constant 0 : index
      %199 = vector.load %arg9[%c0_114, %c0_115, %c0_116] : memref<4x64x16xbf16, #tpu.memory_space<vmem>>, vector<1x64x16xbf16>
      %200 = vector.shape_cast %199 : vector<1x64x16xbf16> to vector<64x16xbf16>
      %cst_117 = arith.constant dense<0.000000e+00> : vector<16x16xf32>
      %201 = tpu.matmul %184, %200, %cst_117 {dimension_numbers = #tpu.dot_dimension_numbers<[1], [0], [0], [1], [0, 0, 1, 1], [], []>} : vector<16x64xbf16>, vector<64x16xbf16>, vector<16x16xf32> -> vector<16x16xf32>
      %c0_118 = arith.constant 0 : index
      %c0_119 = arith.constant 0 : index
      %c0_120 = arith.constant 0 : index
      %202 = vector.load %arg10[%c0_118, %c0_119, %c0_120] : memref<4x1x16xf32, #tpu.memory_space<vmem>>, vector<1x1x16xf32>
      %203 = vector.shape_cast %202 : vector<1x1x16xf32> to vector<1x16xf32>
      %204 = vector.broadcast %203 : vector<1x16xf32> to vector<16x16xf32>
      %205 = arith.addf %201, %204 : vector<16x16xf32>
      %cst_121 = arith.constant 2.500000e-01 : f32
      %206 = vector.broadcast %cst_121 : f32 to vector<16x16xf32>
      %207 = arith.mulf %191, %206 : vector<16x16xf32>
      %208 = arith.truncf %207 : vector<16x16xf32> to vector<16x16xbf16>
      %c0_122 = arith.constant 0 : index
      %c0_123 = arith.constant 0 : index
      %c0_124 = arith.constant 0 : index
      %209 = vector.load %arg19[%c0_122, %c0_123, %c0_124] : memref<4x16x16xbf16, #tpu.memory_space<vmem>>, vector<1x16x16xbf16>
      %210 = vector.shape_cast %209 : vector<1x16x16xbf16> to vector<16x16xbf16>
      %211 = vector.shape_cast %208 : vector<16x16xbf16> to vector<1x16x16xbf16>
      tpu.vector_store %arg19[%c0_122, %c0_123, %c0_124], %211 {strides = array<i32>} : memref<4x16x16xbf16, #tpu.memory_space<vmem>>, vector<1x16x16xbf16>,
      %212 = arith.truncf %198 : vector<16x16xf32> to vector<16x16xbf16>
      %c0_125 = arith.constant 0 : index
      %c0_126 = arith.constant 0 : index
      %c0_127 = arith.constant 0 : index
      %213 = vector.load %arg20[%c0_125, %c0_126, %c0_127] : memref<4x16x16xbf16, #tpu.memory_space<vmem>>, vector<1x16x16xbf16>
      %214 = vector.shape_cast %213 : vector<1x16x16xbf16> to vector<16x16xbf16>
      %215 = vector.shape_cast %212 : vector<16x16xbf16> to vector<1x16x16xbf16>
      tpu.vector_store %arg20[%c0_125, %c0_126, %c0_127], %215 {strides = array<i32>} : memref<4x16x16xbf16, #tpu.memory_space<vmem>>, vector<1x16x16xbf16>,
      %216 = arith.truncf %205 : vector<16x16xf32> to vector<16x16xbf16>
      %c0_128 = arith.constant 0 : index
      %c0_129 = arith.constant 0 : index
      %c0_130 = arith.constant 0 : index
      %217 = vector.load %arg21[%c0_128, %c0_129, %c0_130] : memref<4x16x16xbf16, #tpu.memory_space<vmem>>, vector<1x16x16xbf16>
      %218 = vector.shape_cast %217 : vector<1x16x16xbf16> to vector<16x16xbf16>
      %219 = vector.shape_cast %216 : vector<16x16xbf16> to vector<1x16x16xbf16>
      tpu.vector_store %arg21[%c0_128, %c0_129, %c0_130], %219 {strides = array<i32>} : memref<4x16x16xbf16, #tpu.memory_space<vmem>>, vector<1x16x16xbf16>,
      %c1_131 = arith.constant 1 : index
      %c0_132 = arith.constant 0 : index
      %c0_133 = arith.constant 0 : index
      %220 = vector.load %arg5[%c1_131, %c0_132, %c0_133] : memref<4x64x16xbf16, #tpu.memory_space<vmem>>, vector<1x64x16xbf16>
      %221 = vector.shape_cast %220 : vector<1x64x16xbf16> to vector<64x16xbf16>
      %cst_134 = arith.constant dense<0.000000e+00> : vector<16x16xf32>
      %222 = tpu.matmul %184, %221, %cst_134 {dimension_numbers = #tpu.dot_dimension_numbers<[1], [0], [0], [1], [0, 0, 1, 1], [], []>} : vector<16x64xbf16>, vector<64x16xbf16>, vector<16x16xf32> -> vector<16x16xf32>
      %c1_135 = arith.constant 1 : index
      %c0_136 = arith.constant 0 : index
      %c0_137 = arith.constant 0 : index
      %223 = vector.load %arg6[%c1_135, %c0_136, %c0_137] : memref<4x1x16xf32, #tpu.memory_space<vmem>>, vector<1x1x16xf32>
      %224 = vector.shape_cast %223 : vector<1x1x16xf32> to vector<1x16xf32>
      %225 = vector.broadcast %224 : vector<1x16xf32> to vector<16x16xf32>
      %226 = arith.addf %222, %225 : vector<16x16xf32>
      %c1_138 = arith.constant 1 : index
      %c0_139 = arith.constant 0 : index
      %c0_140 = arith.constant 0 : index
      %227 = vector.load %arg7[%c1_138, %c0_139, %c0_140] : memref<4x64x16xbf16, #tpu.memory_space<vmem>>, vector<1x64x16xbf16>
      %228 = vector.shape_cast %227 : vector<1x64x16xbf16> to vector<64x16xbf16>
      %cst_141 = arith.constant dense<0.000000e+00> : vector<16x16xf32>
      %229 = tpu.matmul %184, %228, %cst_141 {dimension_numbers = #tpu.dot_dimension_numbers<[1], [0], [0], [1], [0, 0, 1, 1], [], []>} : vector<16x64xbf16>, vector<64x16xbf16>, vector<16x16xf32> -> vector<16x16xf32>
      %c1_142 = arith.constant 1 : index
      %c0_143 = arith.constant 0 : index
      %c0_144 = arith.constant 0 : index
      %230 = vector.load %arg8[%c1_142, %c0_143, %c0_144] : memref<4x1x16xf32, #tpu.memory_space<vmem>>, vector<1x1x16xf32>
      %231 = vector.shape_cast %230 : vector<1x1x16xf32> to vector<1x16xf32>
      %232 = vector.broadcast %231 : vector<1x16xf32> to vector<16x16xf32>
      %233 = arith.addf %229, %232 : vector<16x16xf32>
      %c1_145 = arith.constant 1 : index
      %c0_146 = arith.constant 0 : index
      %c0_147 = arith.constant 0 : index
      %234 = vector.load %arg9[%c1_145, %c0_146, %c0_147] : memref<4x64x16xbf16, #tpu.memory_space<vmem>>, vector<1x64x16xbf16>
      %235 = vector.shape_cast %234 : vector<1x64x16xbf16> to vector<64x16xbf16>
      %cst_148 = arith.constant dense<0.000000e+00> : vector<16x16xf32>
      %236 = tpu.matmul %184, %235, %cst_148 {dimension_numbers = #tpu.dot_dimension_numbers<[1], [0], [0], [1], [0, 0, 1, 1], [], []>} : vector<16x64xbf16>, vector<64x16xbf16>, vector<16x16xf32> -> vector<16x16xf32>
      %c1_149 = arith.constant 1 : index
      %c0_150 = arith.constant 0 : index
      %c0_151 = arith.constant 0 : index
      %237 = vector.load %arg10[%c1_149, %c0_150, %c0_151] : memref<4x1x16xf32, #tpu.memory_space<vmem>>, vector<1x1x16xf32>
      %238 = vector.shape_cast %237 : vector<1x1x16xf32> to vector<1x16xf32>
      %239 = vector.broadcast %238 : vector<1x16xf32> to vector<16x16xf32>
      %240 = arith.addf %236, %239 : vector<16x16xf32>
      %cst_152 = arith.constant 2.500000e-01 : f32
      %241 = vector.broadcast %cst_152 : f32 to vector<16x16xf32>
      %242 = arith.mulf %226, %241 : vector<16x16xf32>
      %243 = arith.truncf %242 : vector<16x16xf32> to vector<16x16xbf16>
      %c1_153 = arith.constant 1 : index
      %c0_154 = arith.constant 0 : index
      %c0_155 = arith.constant 0 : index
      %244 = vector.load %arg19[%c1_153, %c0_154, %c0_155] : memref<4x16x16xbf16, #tpu.memory_space<vmem>>, vector<1x16x16xbf16>
      %245 = vector.shape_cast %244 : vector<1x16x16xbf16> to vector<16x16xbf16>
      %246 = vector.shape_cast %243 : vector<16x16xbf16> to vector<1x16x16xbf16>
      tpu.vector_store %arg19[%c1_153, %c0_154, %c0_155], %246 {strides = array<i32>} : memref<4x16x16xbf16, #tpu.memory_space<vmem>>, vector<1x16x16xbf16>,
      %247 = arith.truncf %233 : vector<16x16xf32> to vector<16x16xbf16>
      %c1_156 = arith.constant 1 : index
      %c0_157 = arith.constant 0 : index
      %c0_158 = arith.constant 0 : index
      %248 = vector.load %arg20[%c1_156, %c0_157, %c0_158] : memref<4x16x16xbf16, #tpu.memory_space<vmem>>, vector<1x16x16xbf16>
      %249 = vector.shape_cast %248 : vector<1x16x16xbf16> to vector<16x16xbf16>
      %250 = vector.shape_cast %247 : vector<16x16xbf16> to vector<1x16x16xbf16>
      tpu.vector_store %arg20[%c1_156, %c0_157, %c0_158], %250 {strides = array<i32>} : memref<4x16x16xbf16, #tpu.memory_space<vmem>>, vector<1x16x16xbf16>,
      %251 = arith.truncf %240 : vector<16x16xf32> to vector<16x16xbf16>
      %c1_159 = arith.constant 1 : index
      %c0_160 = arith.constant 0 : index
      %c0_161 = arith.constant 0 : index
      %252 = vector.load %arg21[%c1_159, %c0_160, %c0_161] : memref<4x16x16xbf16, #tpu.memory_space<vmem>>, vector<1x16x16xbf16>
      %253 = vector.shape_cast %252 : vector<1x16x16xbf16> to vector<16x16xbf16>
      %254 = vector.shape_cast %251 : vector<16x16xbf16> to vector<1x16x16xbf16>
      tpu.vector_store %arg21[%c1_159, %c0_160, %c0_161], %254 {strides = array<i32>} : memref<4x16x16xbf16, #tpu.memory_space<vmem>>, vector<1x16x16xbf16>,
      %c2_162 = arith.constant 2 : index
      %c0_163 = arith.constant 0 : index
      %c0_164 = arith.constant 0 : index
      %255 = vector.load %arg5[%c2_162, %c0_163, %c0_164] : memref<4x64x16xbf16, #tpu.memory_space<vmem>>, vector<1x64x16xbf16>
      %256 = vector.shape_cast %255 : vector<1x64x16xbf16> to vector<64x16xbf16>
      %cst_165 = arith.constant dense<0.000000e+00> : vector<16x16xf32>
      %257 = tpu.matmul %184, %256, %cst_165 {dimension_numbers = #tpu.dot_dimension_numbers<[1], [0], [0], [1], [0, 0, 1, 1], [], []>} : vector<16x64xbf16>, vector<64x16xbf16>, vector<16x16xf32> -> vector<16x16xf32>
      %c2_166 = arith.constant 2 : index
      %c0_167 = arith.constant 0 : index
      %c0_168 = arith.constant 0 : index
      %258 = vector.load %arg6[%c2_166, %c0_167, %c0_168] : memref<4x1x16xf32, #tpu.memory_space<vmem>>, vector<1x1x16xf32>
      %259 = vector.shape_cast %258 : vector<1x1x16xf32> to vector<1x16xf32>
      %260 = vector.broadcast %259 : vector<1x16xf32> to vector<16x16xf32>
      %261 = arith.addf %257, %260 : vector<16x16xf32>
      %c2_169 = arith.constant 2 : index
      %c0_170 = arith.constant 0 : index
      %c0_171 = arith.constant 0 : index
      %262 = vector.load %arg7[%c2_169, %c0_170, %c0_171] : memref<4x64x16xbf16, #tpu.memory_space<vmem>>, vector<1x64x16xbf16>
      %263 = vector.shape_cast %262 : vector<1x64x16xbf16> to vector<64x16xbf16>
      %cst_172 = arith.constant dense<0.000000e+00> : vector<16x16xf32>
      %264 = tpu.matmul %184, %263, %cst_172 {dimension_numbers = #tpu.dot_dimension_numbers<[1], [0], [0], [1], [0, 0, 1, 1], [], []>} : vector<16x64xbf16>, vector<64x16xbf16>, vector<16x16xf32> -> vector<16x16xf32>
      %c2_173 = arith.constant 2 : index
      %c0_174 = arith.constant 0 : index
      %c0_175 = arith.constant 0 : index
      %265 = vector.load %arg8[%c2_173, %c0_174, %c0_175] : memref<4x1x16xf32, #tpu.memory_space<vmem>>, vector<1x1x16xf32>
      %266 = vector.shape_cast %265 : vector<1x1x16xf32> to vector<1x16xf32>
      %267 = vector.broadcast %266 : vector<1x16xf32> to vector<16x16xf32>
      %268 = arith.addf %264, %267 : vector<16x16xf32>
      %c2_176 = arith.constant 2 : index
      %c0_177 = arith.constant 0 : index
      %c0_178 = arith.constant 0 : index
      %269 = vector.load %arg9[%c2_176, %c0_177, %c0_178] : memref<4x64x16xbf16, #tpu.memory_space<vmem>>, vector<1x64x16xbf16>
      %270 = vector.shape_cast %269 : vector<1x64x16xbf16> to vector<64x16xbf16>
      %cst_179 = arith.constant dense<0.000000e+00> : vector<16x16xf32>
      %271 = tpu.matmul %184, %270, %cst_179 {dimension_numbers = #tpu.dot_dimension_numbers<[1], [0], [0], [1], [0, 0, 1, 1], [], []>} : vector<16x64xbf16>, vector<64x16xbf16>, vector<16x16xf32> -> vector<16x16xf32>
      %c2_180 = arith.constant 2 : index
      %c0_181 = arith.constant 0 : index
      %c0_182 = arith.constant 0 : index
      %272 = vector.load %arg10[%c2_180, %c0_181, %c0_182] : memref<4x1x16xf32, #tpu.memory_space<vmem>>, vector<1x1x16xf32>
      %273 = vector.shape_cast %272 : vector<1x1x16xf32> to vector<1x16xf32>
      %274 = vector.broadcast %273 : vector<1x16xf32> to vector<16x16xf32>
      %275 = arith.addf %271, %274 : vector<16x16xf32>
      %cst_183 = arith.constant 2.500000e-01 : f32
      %276 = vector.broadcast %cst_183 : f32 to vector<16x16xf32>
      %277 = arith.mulf %261, %276 : vector<16x16xf32>
      %278 = arith.truncf %277 : vector<16x16xf32> to vector<16x16xbf16>
      %c2_184 = arith.constant 2 : index
      %c0_185 = arith.constant 0 : index
      %c0_186 = arith.constant 0 : index
      %279 = vector.load %arg19[%c2_184, %c0_185, %c0_186] : memref<4x16x16xbf16, #tpu.memory_space<vmem>>, vector<1x16x16xbf16>
      %280 = vector.shape_cast %279 : vector<1x16x16xbf16> to vector<16x16xbf16>
      %281 = vector.shape_cast %278 : vector<16x16xbf16> to vector<1x16x16xbf16>
      tpu.vector_store %arg19[%c2_184, %c0_185, %c0_186], %281 {strides = array<i32>} : memref<4x16x16xbf16, #tpu.memory_space<vmem>>, vector<1x16x16xbf16>,
      %282 = arith.truncf %268 : vector<16x16xf32> to vector<16x16xbf16>
      %c2_187 = arith.constant 2 : index
      %c0_188 = arith.constant 0 : index
      %c0_189 = arith.constant 0 : index
      %283 = vector.load %arg20[%c2_187, %c0_188, %c0_189] : memref<4x16x16xbf16, #tpu.memory_space<vmem>>, vector<1x16x16xbf16>
      %284 = vector.shape_cast %283 : vector<1x16x16xbf16> to vector<16x16xbf16>
      %285 = vector.shape_cast %282 : vector<16x16xbf16> to vector<1x16x16xbf16>
      tpu.vector_store %arg20[%c2_187, %c0_188, %c0_189], %285 {strides = array<i32>} : memref<4x16x16xbf16, #tpu.memory_space<vmem>>, vector<1x16x16xbf16>,
      %286 = arith.truncf %275 : vector<16x16xf32> to vector<16x16xbf16>
      %c2_190 = arith.constant 2 : index
      %c0_191 = arith.constant 0 : index
      %c0_192 = arith.constant 0 : index
      %287 = vector.load %arg21[%c2_190, %c0_191, %c0_192] : memref<4x16x16xbf16, #tpu.memory_space<vmem>>, vector<1x16x16xbf16>
      %288 = vector.shape_cast %287 : vector<1x16x16xbf16> to vector<16x16xbf16>
      %289 = vector.shape_cast %286 : vector<16x16xbf16> to vector<1x16x16xbf16>
      tpu.vector_store %arg21[%c2_190, %c0_191, %c0_192], %289 {strides = array<i32>} : memref<4x16x16xbf16, #tpu.memory_space<vmem>>, vector<1x16x16xbf16>,
      %c3_193 = arith.constant 3 : index
      %c0_194 = arith.constant 0 : index
      %c0_195 = arith.constant 0 : index
      %290 = vector.load %arg5[%c3_193, %c0_194, %c0_195] : memref<4x64x16xbf16, #tpu.memory_space<vmem>>, vector<1x64x16xbf16>
      %291 = vector.shape_cast %290 : vector<1x64x16xbf16> to vector<64x16xbf16>
      %cst_196 = arith.constant dense<0.000000e+00> : vector<16x16xf32>
      %292 = tpu.matmul %184, %291, %cst_196 {dimension_numbers = #tpu.dot_dimension_numbers<[1], [0], [0], [1], [0, 0, 1, 1], [], []>} : vector<16x64xbf16>, vector<64x16xbf16>, vector<16x16xf32> -> vector<16x16xf32>
      %c3_197 = arith.constant 3 : index
      %c0_198 = arith.constant 0 : index
      %c0_199 = arith.constant 0 : index
      %293 = vector.load %arg6[%c3_197, %c0_198, %c0_199] : memref<4x1x16xf32, #tpu.memory_space<vmem>>, vector<1x1x16xf32>
      %294 = vector.shape_cast %293 : vector<1x1x16xf32> to vector<1x16xf32>
      %295 = vector.broadcast %294 : vector<1x16xf32> to vector<16x16xf32>
      %296 = arith.addf %292, %295 : vector<16x16xf32>
      %c3_200 = arith.constant 3 : index
      %c0_201 = arith.constant 0 : index
      %c0_202 = arith.constant 0 : index
      %297 = vector.load %arg7[%c3_200, %c0_201, %c0_202] : memref<4x64x16xbf16, #tpu.memory_space<vmem>>, vector<1x64x16xbf16>
      %298 = vector.shape_cast %297 : vector<1x64x16xbf16> to vector<64x16xbf16>
      %cst_203 = arith.constant dense<0.000000e+00> : vector<16x16xf32>
      %299 = tpu.matmul %184, %298, %cst_203 {dimension_numbers = #tpu.dot_dimension_numbers<[1], [0], [0], [1], [0, 0, 1, 1], [], []>} : vector<16x64xbf16>, vector<64x16xbf16>, vector<16x16xf32> -> vector<16x16xf32>
      %c3_204 = arith.constant 3 : index
      %c0_205 = arith.constant 0 : index
      %c0_206 = arith.constant 0 : index
      %300 = vector.load %arg8[%c3_204, %c0_205, %c0_206] : memref<4x1x16xf32, #tpu.memory_space<vmem>>, vector<1x1x16xf32>
      %301 = vector.shape_cast %300 : vector<1x1x16xf32> to vector<1x16xf32>
      %302 = vector.broadcast %301 : vector<1x16xf32> to vector<16x16xf32>
      %303 = arith.addf %299, %302 : vector<16x16xf32>
      %c3_207 = arith.constant 3 : index
      %c0_208 = arith.constant 0 : index
      %c0_209 = arith.constant 0 : index
      %304 = vector.load %arg9[%c3_207, %c0_208, %c0_209] : memref<4x64x16xbf16, #tpu.memory_space<vmem>>, vector<1x64x16xbf16>
      %305 = vector.shape_cast %304 : vector<1x64x16xbf16> to vector<64x16xbf16>
      %cst_210 = arith.constant dense<0.000000e+00> : vector<16x16xf32>
      %306 = tpu.matmul %184, %305, %cst_210 {dimension_numbers = #tpu.dot_dimension_numbers<[1], [0], [0], [1], [0, 0, 1, 1], [], []>} : vector<16x64xbf16>, vector<64x16xbf16>, vector<16x16xf32> -> vector<16x16xf32>
      %c3_211 = arith.constant 3 : index
      %c0_212 = arith.constant 0 : index
      %c0_213 = arith.constant 0 : index
      %307 = vector.load %arg10[%c3_211, %c0_212, %c0_213] : memref<4x1x16xf32, #tpu.memory_space<vmem>>, vector<1x1x16xf32>
      %308 = vector.shape_cast %307 : vector<1x1x16xf32> to vector<1x16xf32>
      %309 = vector.broadcast %308 : vector<1x16xf32> to vector<16x16xf32>
      %310 = arith.addf %306, %309 : vector<16x16xf32>
      %cst_214 = arith.constant 2.500000e-01 : f32
      %311 = vector.broadcast %cst_214 : f32 to vector<16x16xf32>
      %312 = arith.mulf %296, %311 : vector<16x16xf32>
      %313 = arith.truncf %312 : vector<16x16xf32> to vector<16x16xbf16>
      %c3_215 = arith.constant 3 : index
      %c0_216 = arith.constant 0 : index
      %c0_217 = arith.constant 0 : index
      %314 = vector.load %arg19[%c3_215, %c0_216, %c0_217] : memref<4x16x16xbf16, #tpu.memory_space<vmem>>, vector<1x16x16xbf16>
      %315 = vector.shape_cast %314 : vector<1x16x16xbf16> to vector<16x16xbf16>
      %316 = vector.shape_cast %313 : vector<16x16xbf16> to vector<1x16x16xbf16>
      tpu.vector_store %arg19[%c3_215, %c0_216, %c0_217], %316 {strides = array<i32>} : memref<4x16x16xbf16, #tpu.memory_space<vmem>>, vector<1x16x16xbf16>,
      %317 = arith.truncf %303 : vector<16x16xf32> to vector<16x16xbf16>
      %c3_218 = arith.constant 3 : index
      %c0_219 = arith.constant 0 : index
      %c0_220 = arith.constant 0 : index
      %318 = vector.load %arg20[%c3_218, %c0_219, %c0_220] : memref<4x16x16xbf16, #tpu.memory_space<vmem>>, vector<1x16x16xbf16>
      %319 = vector.shape_cast %318 : vector<1x16x16xbf16> to vector<16x16xbf16>
      %320 = vector.shape_cast %317 : vector<16x16xbf16> to vector<1x16x16xbf16>
      tpu.vector_store %arg20[%c3_218, %c0_219, %c0_220], %320 {strides = array<i32>} : memref<4x16x16xbf16, #tpu.memory_space<vmem>>, vector<1x16x16xbf16>,
      %321 = arith.truncf %310 : vector<16x16xf32> to vector<16x16xbf16>
      %c3_221 = arith.constant 3 : index
      %c0_222 = arith.constant 0 : index
      %c0_223 = arith.constant 0 : index
      %322 = vector.load %arg21[%c3_221, %c0_222, %c0_223] : memref<4x16x16xbf16, #tpu.memory_space<vmem>>, vector<1x16x16xbf16>
      %323 = vector.shape_cast %322 : vector<1x16x16xbf16> to vector<16x16xbf16>
      %324 = vector.shape_cast %321 : vector<16x16xbf16> to vector<1x16x16xbf16>
      tpu.vector_store %arg21[%c3_221, %c0_222, %c0_223], %324 {strides = array<i32>} : memref<4x16x16xbf16, #tpu.memory_space<vmem>>, vector<1x16x16xbf16>,
    } else {
    }
    %c16_i32 = arith.constant 16 : i32
    %3 = arith.muli %arg1, %c16_i32 : i32
    %4 = tpu.assume_multiple %3, 8 : i32
    %cst = arith.constant 0.000000e+00 : f32
    %5 = vector.broadcast %cst : f32 to vector<16x64xf32>
    %c0 = arith.constant 0 : index
    %6 = arith.index_cast %4 : i32 to index
    %c0_1 = arith.constant 0 : index
    %7 = vector.load %arg19[%c0, %6, %c0_1] : memref<4x16x16xbf16, #tpu.memory_space<vmem>>, vector<1x16x16xbf16>
    %8 = vector.shape_cast %7 : vector<1x16x16xbf16> to vector<16x16xbf16>
    %c0_2 = arith.constant 0 : index
    %c0_3 = arith.constant 0 : index
    %c0_4 = arith.constant 0 : index
    %9 = vector.load %arg20[%c0_2, %c0_3, %c0_4] : memref<4x16x16xbf16, #tpu.memory_space<vmem>>, vector<1x16x16xbf16>
    %10 = vector.shape_cast %9 : vector<1x16x16xbf16> to vector<16x16xbf16>
    %cst_5 = arith.constant dense<0.000000e+00> : vector<16x16xf32>
    %11 = tpu.matmul %8, %10, %cst_5 {dimension_numbers = #tpu.dot_dimension_numbers<[1], [1], [0], [0], [0, 0, 1, 0], [], []>} : vector<16x16xbf16>, vector<16x16xbf16>, vector<16x16xf32> -> vector<16x16xf32>
    %cst_6 = arith.constant dense<0xFF800000> : vector<16xf32>
    %12 = vector.multi_reduction <maximumf>, %11, %cst_6 [1] : vector<16x16xf32> to vector<16xf32>
    %13 = vector.shape_cast %12 : vector<16xf32> to vector<16x1xf32>
    %14 = vector.broadcast %13 : vector<16x1xf32> to vector<16x16xf32>
    %15 = arith.subf %11, %14 : vector<16x16xf32>
    %16 = math.exp %15 : vector<16x16xf32>
    %cst_7 = arith.constant dense<0.000000e+00> : vector<16xf32>
    %17 = vector.multi_reduction <add>, %16, %cst_7 [1] : vector<16x16xf32> to vector<16xf32>
    %18 = vector.shape_cast %17 : vector<16xf32> to vector<16x1xf32>
    %19 = tpu.reciprocal %18 {approx = true} : vector<16x1xf32> -> vector<16x1xf32>
    %20 = vector.broadcast %19 : vector<16x1xf32> to vector<16x16xf32>
    %21 = arith.mulf %16, %20 : vector<16x16xf32>
    %22 = arith.truncf %21 : vector<16x16xf32> to vector<16x16xbf16>
    %c0_8 = arith.constant 0 : index
    %c0_9 = arith.constant 0 : index
    %c0_10 = arith.constant 0 : index
    %23 = vector.load %arg21[%c0_8, %c0_9, %c0_10] : memref<4x16x16xbf16, #tpu.memory_space<vmem>>, vector<1x16x16xbf16>
    %24 = vector.shape_cast %23 : vector<1x16x16xbf16> to vector<16x16xbf16>
    %cst_11 = arith.constant dense<0.000000e+00> : vector<16x16xf32>
    %25 = tpu.matmul %22, %24, %cst_11 {dimension_numbers = #tpu.dot_dimension_numbers<[1], [0], [0], [1], [0, 0, 1, 1], [], []>} : vector<16x16xbf16>, vector<16x16xbf16>, vector<16x16xf32> -> vector<16x16xf32>
    %26 = arith.truncf %25 : vector<16x16xf32> to vector<16x16xbf16>
    %c0_12 = arith.constant 0 : index
    %c0_13 = arith.constant 0 : index
    %c0_14 = arith.constant 0 : index
    %27 = vector.load %arg11[%c0_12, %c0_13, %c0_14] : memref<4x16x64xbf16, #tpu.memory_space<vmem>>, vector<1x16x64xbf16>
    %28 = vector.shape_cast %27 : vector<1x16x64xbf16> to vector<16x64xbf16>
    %cst_15 = arith.constant dense<0.000000e+00> : vector<16x64xf32>
    %29 = tpu.matmul %26, %28, %cst_15 {dimension_numbers = #tpu.dot_dimension_numbers<[1], [0], [0], [1], [0, 0, 1, 1], [], []>} : vector<16x16xbf16>, vector<16x64xbf16>, vector<16x64xf32> -> vector<16x64xf32>
    %30 = arith.addf %5, %29 : vector<16x64xf32>
    %c1 = arith.constant 1 : index
    %31 = arith.index_cast %4 : i32 to index
    %c0_16 = arith.constant 0 : index
    %32 = vector.load %arg19[%c1, %31, %c0_16] : memref<4x16x16xbf16, #tpu.memory_space<vmem>>, vector<1x16x16xbf16>
    %33 = vector.shape_cast %32 : vector<1x16x16xbf16> to vector<16x16xbf16>
    %c1_17 = arith.constant 1 : index
    %c0_18 = arith.constant 0 : index
    %c0_19 = arith.constant 0 : index
    %34 = vector.load %arg20[%c1_17, %c0_18, %c0_19] : memref<4x16x16xbf16, #tpu.memory_space<vmem>>, vector<1x16x16xbf16>
    %35 = vector.shape_cast %34 : vector<1x16x16xbf16> to vector<16x16xbf16>
    %cst_20 = arith.constant dense<0.000000e+00> : vector<16x16xf32>
    %36 = tpu.matmul %33, %35, %cst_20 {dimension_numbers = #tpu.dot_dimension_numbers<[1], [1], [0], [0], [0, 0, 1, 0], [], []>} : vector<16x16xbf16>, vector<16x16xbf16>, vector<16x16xf32> -> vector<16x16xf32>
    %cst_21 = arith.constant dense<0xFF800000> : vector<16xf32>
    %37 = vector.multi_reduction <maximumf>, %36, %cst_21 [1] : vector<16x16xf32> to vector<16xf32>
    %38 = vector.shape_cast %37 : vector<16xf32> to vector<16x1xf32>
    %39 = vector.broadcast %38 : vector<16x1xf32> to vector<16x16xf32>
    %40 = arith.subf %36, %39 : vector<16x16xf32>
    %41 = math.exp %40 : vector<16x16xf32>
    %cst_22 = arith.constant dense<0.000000e+00> : vector<16xf32>
    %42 = vector.multi_reduction <add>, %41, %cst_22 [1] : vector<16x16xf32> to vector<16xf32>
    %43 = vector.shape_cast %42 : vector<16xf32> to vector<16x1xf32>
    %44 = tpu.reciprocal %43 {approx = true} : vector<16x1xf32> -> vector<16x1xf32>
    %45 = vector.broadcast %44 : vector<16x1xf32> to vector<16x16xf32>
    %46 = arith.mulf %41, %45 : vector<16x16xf32>
    %47 = arith.truncf %46 : vector<16x16xf32> to vector<16x16xbf16>
    %c1_23 = arith.constant 1 : index
    %c0_24 = arith.constant 0 : index
    %c0_25 = arith.constant 0 : index
    %48 = vector.load %arg21[%c1_23, %c0_24, %c0_25] : memref<4x16x16xbf16, #tpu.memory_space<vmem>>, vector<1x16x16xbf16>
    %49 = vector.shape_cast %48 : vector<1x16x16xbf16> to vector<16x16xbf16>
    %cst_26 = arith.constant dense<0.000000e+00> : vector<16x16xf32>
    %50 = tpu.matmul %47, %49, %cst_26 {dimension_numbers = #tpu.dot_dimension_numbers<[1], [0], [0], [1], [0, 0, 1, 1], [], []>} : vector<16x16xbf16>, vector<16x16xbf16>, vector<16x16xf32> -> vector<16x16xf32>
    %51 = arith.truncf %50 : vector<16x16xf32> to vector<16x16xbf16>
    %c1_27 = arith.constant 1 : index
    %c0_28 = arith.constant 0 : index
    %c0_29 = arith.constant 0 : index
    %52 = vector.load %arg11[%c1_27, %c0_28, %c0_29] : memref<4x16x64xbf16, #tpu.memory_space<vmem>>, vector<1x16x64xbf16>
    %53 = vector.shape_cast %52 : vector<1x16x64xbf16> to vector<16x64xbf16>
    %cst_30 = arith.constant dense<0.000000e+00> : vector<16x64xf32>
    %54 = tpu.matmul %51, %53, %cst_30 {dimension_numbers = #tpu.dot_dimension_numbers<[1], [0], [0], [1], [0, 0, 1, 1], [], []>} : vector<16x16xbf16>, vector<16x64xbf16>, vector<16x64xf32> -> vector<16x64xf32>
    %55 = arith.addf %30, %54 : vector<16x64xf32>
    %c2 = arith.constant 2 : index
    %56 = arith.index_cast %4 : i32 to index
    %c0_31 = arith.constant 0 : index
    %57 = vector.load %arg19[%c2, %56, %c0_31] : memref<4x16x16xbf16, #tpu.memory_space<vmem>>, vector<1x16x16xbf16>
    %58 = vector.shape_cast %57 : vector<1x16x16xbf16> to vector<16x16xbf16>
    %c2_32 = arith.constant 2 : index
    %c0_33 = arith.constant 0 : index
    %c0_34 = arith.constant 0 : index
    %59 = vector.load %arg20[%c2_32, %c0_33, %c0_34] : memref<4x16x16xbf16, #tpu.memory_space<vmem>>, vector<1x16x16xbf16>
    %60 = vector.shape_cast %59 : vector<1x16x16xbf16> to vector<16x16xbf16>
    %cst_35 = arith.constant dense<0.000000e+00> : vector<16x16xf32>
    %61 = tpu.matmul %58, %60, %cst_35 {dimension_numbers = #tpu.dot_dimension_numbers<[1], [1], [0], [0], [0, 0, 1, 0], [], []>} : vector<16x16xbf16>, vector<16x16xbf16>, vector<16x16xf32> -> vector<16x16xf32>
    %cst_36 = arith.constant dense<0xFF800000> : vector<16xf32>
    %62 = vector.multi_reduction <maximumf>, %61, %cst_36 [1] : vector<16x16xf32> to vector<16xf32>
    %63 = vector.shape_cast %62 : vector<16xf32> to vector<16x1xf32>
    %64 = vector.broadcast %63 : vector<16x1xf32> to vector<16x16xf32>
    %65 = arith.subf %61, %64 : vector<16x16xf32>
    %66 = math.exp %65 : vector<16x16xf32>
    %cst_37 = arith.constant dense<0.000000e+00> : vector<16xf32>
    %67 = vector.multi_reduction <add>, %66, %cst_37 [1] : vector<16x16xf32> to vector<16xf32>
    %68 = vector.shape_cast %67 : vector<16xf32> to vector<16x1xf32>
    %69 = tpu.reciprocal %68 {approx = true} : vector<16x1xf32> -> vector<16x1xf32>
    %70 = vector.broadcast %69 : vector<16x1xf32> to vector<16x16xf32>
    %71 = arith.mulf %66, %70 : vector<16x16xf32>
    %72 = arith.truncf %71 : vector<16x16xf32> to vector<16x16xbf16>
    %c2_38 = arith.constant 2 : index
    %c0_39 = arith.constant 0 : index
    %c0_40 = arith.constant 0 : index
    %73 = vector.load %arg21[%c2_38, %c0_39, %c0_40] : memref<4x16x16xbf16, #tpu.memory_space<vmem>>, vector<1x16x16xbf16>
    %74 = vector.shape_cast %73 : vector<1x16x16xbf16> to vector<16x16xbf16>
    %cst_41 = arith.constant dense<0.000000e+00> : vector<16x16xf32>
    %75 = tpu.matmul %72, %74, %cst_41 {dimension_numbers = #tpu.dot_dimension_numbers<[1], [0], [0], [1], [0, 0, 1, 1], [], []>} : vector<16x16xbf16>, vector<16x16xbf16>, vector<16x16xf32> -> vector<16x16xf32>
    %76 = arith.truncf %75 : vector<16x16xf32> to vector<16x16xbf16>
    %c2_42 = arith.constant 2 : index
    %c0_43 = arith.constant 0 : index
    %c0_44 = arith.constant 0 : index
    %77 = vector.load %arg11[%c2_42, %c0_43, %c0_44] : memref<4x16x64xbf16, #tpu.memory_space<vmem>>, vector<1x16x64xbf16>
    %78 = vector.shape_cast %77 : vector<1x16x64xbf16> to vector<16x64xbf16>
    %cst_45 = arith.constant dense<0.000000e+00> : vector<16x64xf32>
    %79 = tpu.matmul %76, %78, %cst_45 {dimension_numbers = #tpu.dot_dimension_numbers<[1], [0], [0], [1], [0, 0, 1, 1], [], []>} : vector<16x16xbf16>, vector<16x64xbf16>, vector<16x64xf32> -> vector<16x64xf32>
    %80 = arith.addf %55, %79 : vector<16x64xf32>
    %c3 = arith.constant 3 : index
    %81 = arith.index_cast %4 : i32 to index
    %c0_46 = arith.constant 0 : index
    %82 = vector.load %arg19[%c3, %81, %c0_46] : memref<4x16x16xbf16, #tpu.memory_space<vmem>>, vector<1x16x16xbf16>
    %83 = vector.shape_cast %82 : vector<1x16x16xbf16> to vector<16x16xbf16>
    %c3_47 = arith.constant 3 : index
    %c0_48 = arith.constant 0 : index
    %c0_49 = arith.constant 0 : index
    %84 = vector.load %arg20[%c3_47, %c0_48, %c0_49] : memref<4x16x16xbf16, #tpu.memory_space<vmem>>, vector<1x16x16xbf16>
    %85 = vector.shape_cast %84 : vector<1x16x16xbf16> to vector<16x16xbf16>
    %cst_50 = arith.constant dense<0.000000e+00> : vector<16x16xf32>
    %86 = tpu.matmul %83, %85, %cst_50 {dimension_numbers = #tpu.dot_dimension_numbers<[1], [1], [0], [0], [0, 0, 1, 0], [], []>} : vector<16x16xbf16>, vector<16x16xbf16>, vector<16x16xf32> -> vector<16x16xf32>
    %cst_51 = arith.constant dense<0xFF800000> : vector<16xf32>
    %87 = vector.multi_reduction <maximumf>, %86, %cst_51 [1] : vector<16x16xf32> to vector<16xf32>
    %88 = vector.shape_cast %87 : vector<16xf32> to vector<16x1xf32>
    %89 = vector.broadcast %88 : vector<16x1xf32> to vector<16x16xf32>
    %90 = arith.subf %86, %89 : vector<16x16xf32>
    %91 = math.exp %90 : vector<16x16xf32>
    %cst_52 = arith.constant dense<0.000000e+00> : vector<16xf32>
    %92 = vector.multi_reduction <add>, %91, %cst_52 [1] : vector<16x16xf32> to vector<16xf32>
    %93 = vector.shape_cast %92 : vector<16xf32> to vector<16x1xf32>
    %94 = tpu.reciprocal %93 {approx = true} : vector<16x1xf32> -> vector<16x1xf32>
    %95 = vector.broadcast %94 : vector<16x1xf32> to vector<16x16xf32>
    %96 = arith.mulf %91, %95 : vector<16x16xf32>
    %97 = arith.truncf %96 : vector<16x16xf32> to vector<16x16xbf16>
    %c3_53 = arith.constant 3 : index
    %c0_54 = arith.constant 0 : index
    %c0_55 = arith.constant 0 : index
    %98 = vector.load %arg21[%c3_53, %c0_54, %c0_55] : memref<4x16x16xbf16, #tpu.memory_space<vmem>>, vector<1x16x16xbf16>
    %99 = vector.shape_cast %98 : vector<1x16x16xbf16> to vector<16x16xbf16>
    %cst_56 = arith.constant dense<0.000000e+00> : vector<16x16xf32>
    %100 = tpu.matmul %97, %99, %cst_56 {dimension_numbers = #tpu.dot_dimension_numbers<[1], [0], [0], [1], [0, 0, 1, 1], [], []>} : vector<16x16xbf16>, vector<16x16xbf16>, vector<16x16xf32> -> vector<16x16xf32>
    %101 = arith.truncf %100 : vector<16x16xf32> to vector<16x16xbf16>
    %c3_57 = arith.constant 3 : index
    %c0_58 = arith.constant 0 : index
    %c0_59 = arith.constant 0 : index
    %102 = vector.load %arg11[%c3_57, %c0_58, %c0_59] : memref<4x16x64xbf16, #tpu.memory_space<vmem>>, vector<1x16x64xbf16>
    %103 = vector.shape_cast %102 : vector<1x16x64xbf16> to vector<16x64xbf16>
    %cst_60 = arith.constant dense<0.000000e+00> : vector<16x64xf32>
    %104 = tpu.matmul %101, %103, %cst_60 {dimension_numbers = #tpu.dot_dimension_numbers<[1], [0], [0], [1], [0, 0, 1, 1], [], []>} : vector<16x16xbf16>, vector<16x64xbf16>, vector<16x64xf32> -> vector<16x64xf32>
    %105 = arith.addf %80, %104 : vector<16x64xf32>
    %c0_61 = arith.constant 0 : index
    %106 = arith.index_cast %4 : i32 to index
    %c0_62 = arith.constant 0 : index
    %107 = vector.load %arg2[%c0_61, %106, %c0_62] : memref<1x16x64xf32, #tpu.memory_space<vmem>>, vector<1x16x64xf32>
    %108 = vector.shape_cast %107 : vector<1x16x64xf32> to vector<16x64xf32>
    %109 = arith.addf %108, %105 : vector<16x64xf32>
    %c0_63 = arith.constant 0 : index
    %c0_64 = arith.constant 0 : index
    %110 = vector.load %arg12[%c0_63, %c0_64] : memref<1x64xf32, #tpu.memory_space<vmem>>, vector<1x64xf32>
    %c0_65 = arith.constant 0 : index
    %c0_66 = arith.constant 0 : index
    %111 = vector.load %arg13[%c0_65, %c0_66] : memref<1x64xf32, #tpu.memory_space<vmem>>, vector<1x64xf32>
    %cst_67 = arith.constant dense<0.000000e+00> : vector<16xf32>
    %112 = vector.multi_reduction <add>, %109, %cst_67 [1] : vector<16x64xf32> to vector<16xf32>
    %113 = vector.shape_cast %112 : vector<16xf32> to vector<16x1xf32>
    %cst_68 = arith.constant 6.400000e+01 : f32
    %114 = vector.broadcast %cst_68 : f32 to vector<16x1xf32>
    %115 = arith.divf %113, %114 : vector<16x1xf32>
    %116 = vector.broadcast %115 : vector<16x1xf32> to vector<16x64xf32>
    %117 = arith.subf %109, %116 : vector<16x64xf32>
    %118 = arith.mulf %117, %117 : vector<16x64xf32>
    %cst_69 = arith.constant dense<0.000000e+00> : vector<16xf32>
    %119 = vector.multi_reduction <add>, %118, %cst_69 [1] : vector<16x64xf32> to vector<16xf32>
    %120 = vector.shape_cast %119 : vector<16xf32> to vector<16x1xf32>
    %cst_70 = arith.constant 6.400000e+01 : f32
    %121 = vector.broadcast %cst_70 : f32 to vector<16x1xf32>
    %122 = arith.divf %120, %121 : vector<16x1xf32>
    %123 = vector.broadcast %115 : vector<16x1xf32> to vector<16x64xf32>
    %124 = arith.subf %109, %123 : vector<16x64xf32>
    %cst_71 = arith.constant 9.99999974E-6 : f32
    %125 = vector.broadcast %cst_71 : f32 to vector<16x1xf32>
    %126 = arith.addf %122, %125 : vector<16x1xf32>
    %127 = math.rsqrt %126 : vector<16x1xf32>
    %128 = vector.broadcast %127 : vector<16x1xf32> to vector<16x64xf32>
    %129 = arith.mulf %124, %128 : vector<16x64xf32>
    %130 = vector.broadcast %110 : vector<1x64xf32> to vector<16x64xf32>
    %131 = arith.mulf %129, %130 : vector<16x64xf32>
    %132 = vector.broadcast %111 : vector<1x64xf32> to vector<16x64xf32>
    %133 = arith.addf %131, %132 : vector<16x64xf32>
    %134 = arith.truncf %133 : vector<16x64xf32> to vector<16x64xbf16>
    %c0_72 = arith.constant 0 : index
    %c0_73 = arith.constant 0 : index
    %135 = vector.load %arg14[%c0_72, %c0_73] : memref<64x64xbf16, #tpu.memory_space<vmem>>, vector<64x64xbf16>
    %cst_74 = arith.constant dense<0.000000e+00> : vector<16x64xf32>
    %136 = tpu.matmul %134, %135, %cst_74 {dimension_numbers = #tpu.dot_dimension_numbers<[1], [0], [0], [1], [0, 0, 1, 1], [], []>} : vector<16x64xbf16>, vector<64x64xbf16>, vector<16x64xf32> -> vector<16x64xf32>
    %c0_75 = arith.constant 0 : index
    %c0_76 = arith.constant 0 : index
    %137 = vector.load %arg15[%c0_75, %c0_76] : memref<1x64xf32, #tpu.memory_space<vmem>>, vector<1x64xf32>
    %138 = vector.broadcast %137 : vector<1x64xf32> to vector<16x64xf32>
    %139 = arith.addf %136, %138 : vector<16x64xf32>
    %cst_77 = arith.constant 5.000000e-01 : f32
    %140 = vector.broadcast %cst_77 : f32 to vector<16x64xf32>
    %141 = arith.mulf %140, %139 : vector<16x64xf32>
    %cst_78 = arith.constant 0.707106769 : f32
    %142 = vector.broadcast %cst_78 : f32 to vector<16x64xf32>
    %143 = arith.mulf %139, %142 : vector<16x64xf32>
    %144 = math.erf %143 : vector<16x64xf32>
    %cst_79 = arith.constant 1.000000e+00 : f32
    %145 = vector.broadcast %cst_79 : f32 to vector<16x64xf32>
    %146 = arith.addf %145, %144 : vector<16x64xf32>
    %147 = arith.mulf %141, %146 : vector<16x64xf32>
    %148 = arith.truncf %147 : vector<16x64xf32> to vector<16x64xbf16>
    %c0_80 = arith.constant 0 : index
    %c0_81 = arith.constant 0 : index
    %149 = vector.load %arg16[%c0_80, %c0_81] : memref<64x64xbf16, #tpu.memory_space<vmem>>, vector<64x64xbf16>
    %cst_82 = arith.constant dense<0.000000e+00> : vector<16x64xf32>
    %150 = tpu.matmul %148, %149, %cst_82 {dimension_numbers = #tpu.dot_dimension_numbers<[1], [0], [0], [1], [0, 0, 1, 1], [], []>} : vector<16x64xbf16>, vector<64x64xbf16>, vector<16x64xf32> -> vector<16x64xf32>
    %c0_83 = arith.constant 0 : index
    %c0_84 = arith.constant 0 : index
    %151 = vector.load %arg17[%c0_83, %c0_84] : memref<1x64xf32, #tpu.memory_space<vmem>>, vector<1x64xf32>
    %152 = vector.broadcast %151 : vector<1x64xf32> to vector<16x64xf32>
    %153 = arith.addf %150, %152 : vector<16x64xf32>
    %154 = arith.addf %109, %153 : vector<16x64xf32>
    %c0_85 = arith.constant 0 : index
    %c0_86 = arith.constant 0 : index
    %c0_87 = arith.constant 0 : index
    %155 = vector.load %arg18[%c0_85, %c0_86, %c0_87] : memref<1x16x64xf32, #tpu.memory_space<vmem>>, vector<1x16x64xf32>
    %156 = vector.shape_cast %155 : vector<1x16x64xf32> to vector<16x64xf32>
    %157 = vector.shape_cast %154 : vector<16x64xf32> to vector<1x16x64xf32>
    tpu.vector_store %arg18[%c0_85, %c0_86, %c0_87], %157 {strides = array<i32>} : memref<1x16x64xf32, #tpu.memory_space<vmem>>, vector<1x16x64xf32>,
    return
  }
  func.func @transform_0(%arg0: i32, %arg1: i32) -> (i32, i32, i32) {
    %c0_i32 = arith.constant 0 : i32
    %c0_i32_0 = arith.constant 0 : i32
    %c0_i32_1 = arith.constant 0 : i32
    return %arg0, %c0_i32, %c0_i32_0 : i32, i32, i32
  }
  func.func @transform_1(%arg0: i32, %arg1: i32) -> (i32, i32) {
    %c0_i32 = arith.constant 0 : i32
    %c0_i32_0 = arith.constant 0 : i32
    %c0_i32_1 = arith.constant 0 : i32
    return %c0_i32, %c0_i32_0 : i32, i32
  }
  func.func @transform_2(%arg0: i32, %arg1: i32) -> (i32, i32) {
    %c0_i32 = arith.constant 0 : i32
    %c0_i32_0 = arith.constant 0 : i32
    %c0_i32_1 = arith.constant 0 : i32
    return %c0_i32, %c0_i32_0 : i32, i32
  }
  func.func @transform_3(%arg0: i32, %arg1: i32) -> (i32, i32, i32) {
    %c0_i32 = arith.constant 0 : i32
    %c0_i32_0 = arith.constant 0 : i32
    %c0_i32_1 = arith.constant 0 : i32
    %c0_i32_2 = arith.constant 0 : i32
    return %c0_i32, %c0_i32_0, %c0_i32_1 : i32, i32, i32
  }
  func.func @transform_4(%arg0: i32, %arg1: i32) -> (i32, i32, i32) {
    %c0_i32 = arith.constant 0 : i32
    %c0_i32_0 = arith.constant 0 : i32
    %c0_i32_1 = arith.constant 0 : i32
    %c0_i32_2 = arith.constant 0 : i32
    return %c0_i32, %c0_i32_0, %c0_i32_1 : i32, i32, i32
  }
  func.func @transform_5(%arg0: i32, %arg1: i32) -> (i32, i32, i32) {
    %c0_i32 = arith.constant 0 : i32
    %c0_i32_0 = arith.constant 0 : i32
    %c0_i32_1 = arith.constant 0 : i32
    %c0_i32_2 = arith.constant 0 : i32
    return %c0_i32, %c0_i32_0, %c0_i32_1 : i32, i32, i32
  }
  func.func @transform_6(%arg0: i32, %arg1: i32) -> (i32, i32, i32) {
    %c0_i32 = arith.constant 0 : i32
    %c0_i32_0 = arith.constant 0 : i32
    %c0_i32_1 = arith.constant 0 : i32
    %c0_i32_2 = arith.constant 0 : i32
    return %c0_i32, %c0_i32_0, %c0_i32_1 : i32, i32, i32
  }
  func.func @transform_7(%arg0: i32, %arg1: i32) -> (i32, i32, i32) {
    %c0_i32 = arith.constant 0 : i32
    %c0_i32_0 = arith.constant 0 : i32
    %c0_i32_1 = arith.constant 0 : i32
    %c0_i32_2 = arith.constant 0 : i32
    return %c0_i32, %c0_i32_0, %c0_i32_1 : i32, i32, i32
  }
  func.func @transform_8(%arg0: i32, %arg1: i32) -> (i32, i32, i32) {
    %c0_i32 = arith.constant 0 : i32
    %c0_i32_0 = arith.constant 0 : i32
    %c0_i32_1 = arith.constant 0 : i32
    %c0_i32_2 = arith.constant 0 : i32
    return %c0_i32, %c0_i32_0, %c0_i32_1 : i32, i32, i32
  }
  func.func @transform_9(%arg0: i32, %arg1: i32) -> (i32, i32, i32) {
    %c0_i32 = arith.constant 0 : i32
    %c0_i32_0 = arith.constant 0 : i32
    %c0_i32_1 = arith.constant 0 : i32
    %c0_i32_2 = arith.constant 0 : i32
    return %c0_i32, %c0_i32_0, %c0_i32_1 : i32, i32, i32
  }
  func.func @transform_10(%arg0: i32, %arg1: i32) -> (i32, i32) {
    %c0_i32 = arith.constant 0 : i32
    %c0_i32_0 = arith.constant 0 : i32
    %c0_i32_1 = arith.constant 0 : i32
    return %c0_i32, %c0_i32_0 : i32, i32
  }
  func.func @transform_11(%arg0: i32, %arg1: i32) -> (i32, i32) {
    %c0_i32 = arith.constant 0 : i32
    %c0_i32_0 = arith.constant 0 : i32
    %c0_i32_1 = arith.constant 0 : i32
    return %c0_i32, %c0_i32_0 : i32, i32
  }
  func.func @transform_12(%arg0: i32, %arg1: i32) -> (i32, i32) {
    %c0_i32 = arith.constant 0 : i32
    %c0_i32_0 = arith.constant 0 : i32
    %c0_i32_1 = arith.constant 0 : i32
    return %c0_i32, %c0_i32_0 : i32, i32
  }
  func.func @transform_13(%arg0: i32, %arg1: i32) -> (i32, i32) {
    %c0_i32 = arith.constant 0 : i32
    %c0_i32_0 = arith.constant 0 : i32
    %c0_i32_1 = arith.constant 0 : i32
    return %c0_i32, %c0_i32_0 : i32, i32
  }
  func.func @transform_14(%arg0: i32, %arg1: i32) -> (i32, i32) {
    %c0_i32 = arith.constant 0 : i32
    %c0_i32_0 = arith.constant 0 : i32
    %c0_i32_1 = arith.constant 0 : i32
    return %c0_i32, %c0_i32_0 : i32, i32
  }
  func.func @transform_15(%arg0: i32, %arg1: i32) -> (i32, i32) {
    %c0_i32 = arith.constant 0 : i32
    %c0_i32_0 = arith.constant 0 : i32
    %c0_i32_1 = arith.constant 0 : i32
    return %c0_i32, %c0_i32_0 : i32, i32
  }
  func.func @transform_16(%arg0: i32, %arg1: i32) -> (i32, i32, i32) {
    %c0_i32 = arith.constant 0 : i32
    %c0_i32_0 = arith.constant 0 : i32
    return %arg0, %arg1, %c0_i32 : i32, i32, i32
  }
}

</mosaic_0001>

<llo_original>
// kernel: tpu_custom_call.1
$region0: #{tpu_custom_call.1}
  #allocation0 [shape = 'u32[]', space=smem, size = 0x4, offset = 0x4, fixed_abs, tag = 'smem constant byte address 0x4 - core index']
  #allocation1 [shape = 'u32[144,128]{1,0:T(1,128)}', space=vmem, size = 0x12000, scoped, tag = 'internal scratch']
  #allocation2 [shape = 'bf16[4,16,16]{2,1,0:T(8,128)(2,1)}', space=vmem, size = 0x4000, scoped, tag = 'scratch operand']
  #allocation3 [shape = 'bf16[4,16,16]{2,1,0:T(8,128)(2,1)}', space=vmem, size = 0x4000, scoped, tag = 'scratch operand']
  #allocation4 [shape = 'bf16[4,16,16]{2,1,0:T(8,128)(2,1)}', space=vmem, size = 0x4000, scoped, tag = 'scratch operand']
  %s0 = inlined_call_operand.vmem [shape: f32[2,16,64], index: 0, kind: input, shape index: {}]
  %s1 = inlined_call_operand.vmem [shape: f32[1,64], index: 1, kind: input, shape index: {}]
  %s2 = inlined_call_operand.vmem [shape: f32[1,64], index: 2, kind: input, shape index: {}]
  %s3 = inlined_call_operand.vmem [shape: bf16[4,64,16], index: 3, kind: input, shape index: {}]
  %s4 = inlined_call_operand.vmem [shape: f32[4,1,16], index: 4, kind: input, shape index: {}]
  %s5 = inlined_call_operand.vmem [shape: bf16[4,64,16], index: 5, kind: input, shape index: {}]
  %s6 = inlined_call_operand.vmem [shape: f32[4,1,16], index: 6, kind: input, shape index: {}]
  %s7 = inlined_call_operand.vmem [shape: bf16[4,64,16], index: 7, kind: input, shape index: {}]
  %s8 = inlined_call_operand.vmem [shape: f32[4,1,16], index: 8, kind: input, shape index: {}]
  %s9 = inlined_call_operand.vmem [shape: bf16[4,16,64], index: 9, kind: input, shape index: {}]
  %s10 = inlined_call_operand.vmem [shape: f32[1,64], index: 10, kind: input, shape index: {}]
  %s11 = inlined_call_operand.vmem [shape: f32[1,64], index: 11, kind: input, shape index: {}]
  %s12 = inlined_call_operand.vmem [shape: bf16[64,64], index: 12, kind: input, shape index: {}]
  %s13 = inlined_call_operand.vmem [shape: f32[1,64], index: 13, kind: input, shape index: {}]
  %s14 = inlined_call_operand.vmem [shape: bf16[64,64], index: 14, kind: input, shape index: {}]
  %s15 = inlined_call_operand.vmem [shape: f32[1,64], index: 15, kind: input, shape index: {}]
  %s16 = inlined_call_operand.hbm [shape: f32[2,16,64], index: 16, kind: output, shape index: {}]
  %s17 = sld [smem:[#allocation0]]
  $region101: #{tpu_custom_call.1} parent=0
    _
  %s19 = ssub.s32 1, %s17
  %s20 = scalar_select 0, %s19, %s17
  $region1: #{tpu_custom_call.1} parent=0
    #allocation5 [shape = 'u8[16384]{0}', space=vmem, size = 0x4000, scoped, tag = 'output window, operand 0']
    #allocation6 [shape = 's32[2]{0}', space=sflag, size = 0x8, scoped, tag = 'scoped memory for tpu_custom_call.1']
    %21 = vsyncpa [#allocation6], 0
    %s22 = scalar_lea.sflag [#allocation6], 1
    %23 = vsyncpa %s22, 0
    loop: start=0, step=1, limit=4
    $region2: #{tpu_custom_call.1} parent=1 // loop_pre_header
      _
    $region3: #{tpu_custom_call.1} parent=1 // loop_header
      %s25 = sphi 0, %s29
      %p26 = scmp.ge.s32.totalorder %s25, 4
      %s32 = sphi 0, %s44
      %s33 = sphi 0, %s40
      %s34 = sphi 0, %s32
      %s35 = sphi 0, %s33
      %s36 = sphi 0, %s34
      %s37 = sphi 0, %s35
      %s47 = sphi 0, %s49
      %s50 = sphi 0, %s47
      %s51 = sphi 0, %s50
      %s67 = sphi 0, %s51
      %s71 = sphi 0, %s71
      %s73 = sphi 0, %s71
      %s74 = sphi 0, %s73
      %s88 = sphi 0, %s74
      %s92 = sphi 0, %s92
      %s94 = sphi 0, %s92
      %s95 = sphi 0, %s94
      %s109 = sphi 0, %s95
      %s113 = sphi 0, %s113
      %s115 = sphi 0, %s113
      %s116 = sphi 0, %s115
      %s130 = sphi 0, %s116
      %s134 = sphi 0, %s134
      %s136 = sphi 0, %s134
      %s137 = sphi 0, %s136
      %s151 = sphi 0, %s137
      %s155 = sphi 0, %s155
      %s157 = sphi 0, %s155
      %s158 = sphi 0, %s157
      %s172 = sphi 0, %s158
      %s176 = sphi 0, %s176
      %s178 = sphi 0, %s176
      %s179 = sphi 0, %s178
      %s193 = sphi 0, %s179
      %s197 = sphi 0, %s197
      %s199 = sphi 0, %s197
      %s200 = sphi 0, %s199
      %s214 = sphi 0, %s200
      %s218 = sphi 0, %s218
      %s220 = sphi 0, %s218
      %s221 = sphi 0, %s220
      %s235 = sphi 0, %s221
      %s239 = sphi 0, %s239
      %s241 = sphi 0, %s239
      %s242 = sphi 0, %s241
      %s256 = sphi 0, %s242
      %s260 = sphi 0, %s260
      %s262 = sphi 0, %s260
      %s263 = sphi 0, %s262
      %s277 = sphi 0, %s263
      %s281 = sphi 0, %s281
      %s283 = sphi 0, %s281
      %s284 = sphi 0, %s283
      %s298 = sphi 0, %s284
      %s302 = sphi 0, %s302
      %s304 = sphi 0, %s302
      %s305 = sphi 0, %s304
      %s319 = sphi 0, %s305
      %s323 = sphi 0, %s323
      %s325 = sphi 0, %s323
      %s326 = sphi 0, %s325
      %s340 = sphi 0, %s326
      %s344 = sphi 0, %s344
      %s346 = sphi 0, %s344
      %s347 = sphi 0, %s346
      %s361 = sphi 0, %s347
      %s365 = sphi 0, %s365
      %s367 = sphi 0, %s365
      %s368 = sphi 0, %s367
      %s382 = sphi 0, %s368
      %s390 = sphi 0, %s392
      %s393 = sphi 0, %s390
      %s394 = sphi 0, %s393
      %s410 = sphi 0, %s394
    $region4: #{tpu_custom_call.1} parent=1 // loop_header_branch
      %28 = sbr.rel (%p26) target = $region8
    $region5: #{tpu_custom_call.1} parent=1 // loop_body
      %s30 = ssub.s32 %s25, 1
      %s31 = ssub.s32 %s25, 2
      %s38 = sadd.s32 1, %s33
      %p39 = scmp.ge.s32.totalorder %s38, 1
      %s40 = scalar_select %p39, 0, %s38
      %s41 = sadd.s32 1, %s32
      %s42 = scalar_select %p39, %s41, %s32
      %p43 = scmp.ge.s32.totalorder %s42, 2
      %s44 = scalar_select %p43, 0, %s42
      %s45 = ssub.s32 %s32, %s44
      %p46 = scmp.eq.s32.totalorder %s45, 0
      %s48 = sadd.s32 %s47, 1
      %s49 = scalar_select %p46, %s47, %s48
      %p52 = pneg %p46
      %p53 = scmp.eq.s32.totalorder %s25, 1
      %p54 = por %p52, %p53
      %p55 = scmp.ne.s32.totalorder %s47, %s50
      %p56 = scmp.eq.s32.totalorder %s25, 0
      %p57 = por %p55, %p56
      %p58 = scmp.ne.s32.totalorder %s47, %s50
      %p59 = scmp.eq.s32.totalorder %s30, 1
      %p60 = por %p58, %p59
      %p61 = scmp.ne.s32.totalorder %s50, %s51
      %p62 = scmp.eq.s32.totalorder %s30, 0
      %p63 = por %p61, %p62
      %p64 = scmp.ne.s32.totalorder %s50, %s51
      %p65 = scmp.eq.s32.totalorder %s31, 1
      %p66 = por %p64, %p65
      %p68 = scmp.ne.s32.totalorder %s51, %s67
      %p69 = scmp.eq.s32.totalorder %s31, 0
      %p70 = por %p68, %p69
      %s72 = sadd.s32 %s71, 1
      %p75 = scmp.eq.s32.totalorder %s25, 1
      %p76 = scmp.ne.s32.totalorder %s71, %s73
      %p77 = scmp.eq.s32.totalorder %s25, 0
      %p78 = por %p76, %p77
      %p79 = scmp.ne.s32.totalorder %s71, %s73
      %p80 = scmp.eq.s32.totalorder %s30, 1
      %p81 = por %p79, %p80
      %p82 = scmp.ne.s32.totalorder %s73, %s74
      %p83 = scmp.eq.s32.totalorder %s30, 0
      %p84 = por %p82, %p83
      %p85 = scmp.ne.s32.totalorder %s73, %s74
      %p86 = scmp.eq.s32.totalorder %s31, 1
      %p87 = por %p85, %p86
      %p89 = scmp.ne.s32.totalorder %s74, %s88
      %p90 = scmp.eq.s32.totalorder %s31, 0
      %p91 = por %p89, %p90
      %s93 = sadd.s32 %s92, 1
      %p96 = scmp.eq.s32.totalorder %s25, 1
      %p97 = scmp.ne.s32.totalorder %s92, %s94
      %p98 = scmp.eq.s32.totalorder %s25, 0
      %p99 = por %p97, %p98
      %p100 = scmp.ne.s32.totalorder %s92, %s94
      %p101 = scmp.eq.s32.totalorder %s30, 1
      %p102 = por %p100, %p101
      %p103 = scmp.ne.s32.totalorder %s94, %s95
      %p104 = scmp.eq.s32.totalorder %s30, 0
      %p105 = por %p103, %p104
      %p106 = scmp.ne.s32.totalorder %s94, %s95
      %p107 = scmp.eq.s32.totalorder %s31, 1
      %p108 = por %p106, %p107
      %p110 = scmp.ne.s32.totalorder %s95, %s109
      %p111 = scmp.eq.s32.totalorder %s31, 0
      %p112 = por %p110, %p111
      %s114 = sadd.s32 %s113, 1
      %p117 = scmp.eq.s32.totalorder %s25, 1
      %p118 = scmp.ne.s32.totalorder %s113, %s115
      %p119 = scmp.eq.s32.totalorder %s25, 0
      %p120 = por %p118, %p119
      %p121 = scmp.ne.s32.totalorder %s113, %s115
      %p122 = scmp.eq.s32.totalorder %s30, 1
      %p123 = por %p121, %p122
      %p124 = scmp.ne.s32.totalorder %s115, %s116
      %p125 = scmp.eq.s32.totalorder %s30, 0
      %p126 = por %p124, %p125
      %p127 = scmp.ne.s32.totalorder %s115, %s116
      %p128 = scmp.eq.s32.totalorder %s31, 1
      %p129 = por %p127, %p128
      %p131 = scmp.ne.s32.totalorder %s116, %s130
      %p132 = scmp.eq.s32.totalorder %s31, 0
      %p133 = por %p131, %p132
      %s135 = sadd.s32 %s134, 1
      %p138 = scmp.eq.s32.totalorder %s25, 1
      %p139 = scmp.ne.s32.totalorder %s134, %s136
      %p140 = scmp.eq.s32.totalorder %s25, 0
      %p141 = por %p139, %p140
      %p142 = scmp.ne.s32.totalorder %s134, %s136
      %p143 = scmp.eq.s32.totalorder %s30, 1
      %p144 = por %p142, %p143
      %p145 = scmp.ne.s32.totalorder %s136, %s137
      %p146 = scmp.eq.s32.totalorder %s30, 0
      %p147 = por %p145, %p146
      %p148 = scmp.ne.s32.totalorder %s136, %s137
      %p149 = scmp.eq.s32.totalorder %s31, 1
      %p150 = por %p148, %p149
      %p152 = scmp.ne.s32.totalorder %s137, %s151
      %p153 = scmp.eq.s32.totalorder %s31, 0
      %p154 = por %p152, %p153
      %s156 = sadd.s32 %s155, 1
      %p159 = scmp.eq.s32.totalorder %s25, 1
      %p160 = scmp.ne.s32.totalorder %s155, %s157
      %p161 = scmp.eq.s32.totalorder %s25, 0
      %p162 = por %p160, %p161
      %p163 = scmp.ne.s32.totalorder %s155, %s157
      %p164 = scmp.eq.s32.totalorder %s30, 1
      %p165 = por %p163, %p164
      %p166 = scmp.ne.s32.totalorder %s157, %s158
      %p167 = scmp.eq.s32.totalorder %s30, 0
      %p168 = por %p166, %p167
      %p169 = scmp.ne.s32.totalorder %s157, %s158
      %p170 = scmp.eq.s32.totalorder %s31, 1
      %p171 = por %p169, %p170
      %p173 = scmp.ne.s32.totalorder %s158, %s172
      %p174 = scmp.eq.s32.totalorder %s31, 0
      %p175 = por %p173, %p174
      %s177 = sadd.s32 %s176, 1
      %p180 = scmp.eq.s32.totalorder %s25, 1
      %p181 = scmp.ne.s32.totalorder %s176, %s178
      %p182 = scmp.eq.s32.totalorder %s25, 0
      %p183 = por %p181, %p182
      %p184 = scmp.ne.s32.totalorder %s176, %s178
      %p185 = scmp.eq.s32.totalorder %s30, 1
      %p186 = por %p184, %p185
      %p187 = scmp.ne.s32.totalorder %s178, %s179
      %p188 = scmp.eq.s32.totalorder %s30, 0
      %p189 = por %p187, %p188
      %p190 = scmp.ne.s32.totalorder %s178, %s179
      %p191 = scmp.eq.s32.totalorder %s31, 1
      %p192 = por %p190, %p191
      %p194 = scmp.ne.s32.totalorder %s179, %s193
      %p195 = scmp.eq.s32.totalorder %s31, 0
      %p196 = por %p194, %p195
      %s198 = sadd.s32 %s197, 1
      %p201 = scmp.eq.s32.totalorder %s25, 1
      %p202 = scmp.ne.s32.totalorder %s197, %s199
      %p203 = scmp.eq.s32.totalorder %s25, 0
      %p204 = por %p202, %p203
      %p205 = scmp.ne.s32.totalorder %s197, %s199
      %p206 = scmp.eq.s32.totalorder %s30, 1
      %p207 = por %p205, %p206
      %p208 = scmp.ne.s32.totalorder %s199, %s200
      %p209 = scmp.eq.s32.totalorder %s30, 0
      %p210 = por %p208, %p209
      %p211 = scmp.ne.s32.totalorder %s199, %s200
      %p212 = scmp.eq.s32.totalorder %s31, 1
      %p213 = por %p211, %p212
      %p215 = scmp.ne.s32.totalorder %s200, %s214
      %p216 = scmp.eq.s32.totalorder %s31, 0
      %p217 = por %p215, %p216
      %s219 = sadd.s32 %s218, 1
      %p222 = scmp.eq.s32.totalorder %s25, 1
      %p223 = scmp.ne.s32.totalorder %s218, %s220
      %p224 = scmp.eq.s32.totalorder %s25, 0
      %p225 = por %p223, %p224
      %p226 = scmp.ne.s32.totalorder %s218, %s220
      %p227 = scmp.eq.s32.totalorder %s30, 1
      %p228 = por %p226, %p227
      %p229 = scmp.ne.s32.totalorder %s220, %s221
      %p230 = scmp.eq.s32.totalorder %s30, 0
      %p231 = por %p229, %p230
      %p232 = scmp.ne.s32.totalorder %s220, %s221
      %p233 = scmp.eq.s32.totalorder %s31, 1
      %p234 = por %p232, %p233
      %p236 = scmp.ne.s32.totalorder %s221, %s235
      %p237 = scmp.eq.s32.totalorder %s31, 0
      %p238 = por %p236, %p237
      %s240 = sadd.s32 %s239, 1
      %p243 = scmp.eq.s32.totalorder %s25, 1
      %p244 = scmp.ne.s32.totalorder %s239, %s241
      %p245 = scmp.eq.s32.totalorder %s25, 0
      %p246 = por %p244, %p245
      %p247 = scmp.ne.s32.totalorder %s239, %s241
      %p248 = scmp.eq.s32.totalorder %s30, 1
      %p249 = por %p247, %p248
      %p250 = scmp.ne.s32.totalorder %s241, %s242
      %p251 = scmp.eq.s32.totalorder %s30, 0
      %p252 = por %p250, %p251
      %p253 = scmp.ne.s32.totalorder %s241, %s242
      %p254 = scmp.eq.s32.totalorder %s31, 1
      %p255 = por %p253, %p254
      %p257 = scmp.ne.s32.totalorder %s242, %s256
      %p258 = scmp.eq.s32.totalorder %s31, 0
      %p259 = por %p257, %p258
      %s261 = sadd.s32 %s260, 1
      %p264 = scmp.eq.s32.totalorder %s25, 1
      %p265 = scmp.ne.s32.totalorder %s260, %s262
      %p266 = scmp.eq.s32.totalorder %s25, 0
      %p267 = por %p265, %p266
      %p268 = scmp.ne.s32.totalorder %s260, %s262
      %p269 = scmp.eq.s32.totalorder %s30, 1
      %p270 = por %p268, %p269
      %p271 = scmp.ne.s32.totalorder %s262, %s263
      %p272 = scmp.eq.s32.totalorder %s30, 0
      %p273 = por %p271, %p272
      %p274 = scmp.ne.s32.totalorder %s262, %s263
      %p275 = scmp.eq.s32.totalorder %s31, 1
      %p276 = por %p274, %p275
      %p278 = scmp.ne.s32.totalorder %s263, %s277
      %p279 = scmp.eq.s32.totalorder %s31, 0
      %p280 = por %p278, %p279
      %s282 = sadd.s32 %s281, 1
      %p285 = scmp.eq.s32.totalorder %s25, 1
      %p286 = scmp.ne.s32.totalorder %s281, %s283
      %p287 = scmp.eq.s32.totalorder %s25, 0
      %p288 = por %p286, %p287
      %p289 = scmp.ne.s32.totalorder %s281, %s283
      %p290 = scmp.eq.s32.totalorder %s30, 1
      %p291 = por %p289, %p290
      %p292 = scmp.ne.s32.totalorder %s283, %s284
      %p293 = scmp.eq.s32.totalorder %s30, 0
      %p294 = por %p292, %p293
      %p295 = scmp.ne.s32.totalorder %s283, %s284
      %p296 = scmp.eq.s32.totalorder %s31, 1
      %p297 = por %p295, %p296
      %p299 = scmp.ne.s32.totalorder %s284, %s298
      %p300 = scmp.eq.s32.totalorder %s31, 0
      %p301 = por %p299, %p300
      %s303 = sadd.s32 %s302, 1
      %p306 = scmp.eq.s32.totalorder %s25, 1
      %p307 = scmp.ne.s32.totalorder %s302, %s304
      %p308 = scmp.eq.s32.totalorder %s25, 0
      %p309 = por %p307, %p308
      %p310 = scmp.ne.s32.totalorder %s302, %s304
      %p311 = scmp.eq.s32.totalorder %s30, 1
      %p312 = por %p310, %p311
      %p313 = scmp.ne.s32.totalorder %s304, %s305
      %p314 = scmp.eq.s32.totalorder %s30, 0
      %p315 = por %p313, %p314
      %p316 = scmp.ne.s32.totalorder %s304, %s305
      %p317 = scmp.eq.s32.totalorder %s31, 1
      %p318 = por %p316, %p317
      %p320 = scmp.ne.s32.totalorder %s305, %s319
      %p321 = scmp.eq.s32.totalorder %s31, 0
      %p322 = por %p320, %p321
      %s324 = sadd.s32 %s323, 1
      %p327 = scmp.eq.s32.totalorder %s25, 1
      %p328 = scmp.ne.s32.totalorder %s323, %s325
      %p329 = scmp.eq.s32.totalorder %s25, 0
      %p330 = por %p328, %p329
      %p331 = scmp.ne.s32.totalorder %s323, %s325
      %p332 = scmp.eq.s32.totalorder %s30, 1
      %p333 = por %p331, %p332
      %p334 = scmp.ne.s32.totalorder %s325, %s326
      %p335 = scmp.eq.s32.totalorder %s30, 0
      %p336 = por %p334, %p335
      %p337 = scmp.ne.s32.totalorder %s325, %s326
      %p338 = scmp.eq.s32.totalorder %s31, 1
      %p339 = por %p337, %p338
      %p341 = scmp.ne.s32.totalorder %s326, %s340
      %p342 = scmp.eq.s32.totalorder %s31, 0
      %p343 = por %p341, %p342
      %s345 = sadd.s32 %s344, 1
      %p348 = scmp.eq.s32.totalorder %s25, 1
      %p349 = scmp.ne.s32.totalorder %s344, %s346
      %p350 = scmp.eq.s32.totalorder %s25, 0
      %p351 = por %p349, %p350
      %p352 = scmp.ne.s32.totalorder %s344, %s346
      %p353 = scmp.eq.s32.totalorder %s30, 1
      %p354 = por %p352, %p353
      %p355 = scmp.ne.s32.totalorder %s346, %s347
      %p356 = scmp.eq.s32.totalorder %s30, 0
      %p357 = por %p355, %p356
      %p358 = scmp.ne.s32.totalorder %s346, %s347
      %p359 = scmp.eq.s32.totalorder %s31, 1
      %p360 = por %p358, %p359
      %p362 = scmp.ne.s32.totalorder %s347, %s361
      %p363 = scmp.eq.s32.totalorder %s31, 0
      %p364 = por %p362, %p363
      %s366 = sadd.s32 %s365, 1
      %p369 = scmp.eq.s32.totalorder %s25, 1
      %p370 = scmp.ne.s32.totalorder %s365, %s367
      %p371 = scmp.eq.s32.totalorder %s25, 0
      %p372 = por %p370, %p371
      %p373 = scmp.ne.s32.totalorder %s365, %s367
      %p374 = scmp.eq.s32.totalorder %s30, 1
      %p375 = por %p373, %p374
      %p376 = scmp.ne.s32.totalorder %s367, %s368
      %p377 = scmp.eq.s32.totalorder %s30, 0
      %p378 = por %p376, %p377
      %p379 = scmp.ne.s32.totalorder %s367, %s368
      %p380 = scmp.eq.s32.totalorder %s31, 1
      %p381 = por %p379, %p380
      %p383 = scmp.ne.s32.totalorder %s368, %s382
      %p384 = scmp.eq.s32.totalorder %s31, 0
      %p385 = por %p383, %p384
      %s386 = ssub.s32 %s32, %s44
      %s387 = ssub.s32 %s33, %s40
      %s388 = sor.u32 %s386, %s387
      %p389 = scmp.eq.s32.totalorder %s388, 0
      %s391 = sadd.s32 %s390, 1
      %s392 = scalar_select %p389, %s390, %s391
      %p395 = pneg %p389
      %p396 = scmp.eq.s32.totalorder %s25, 1
      %p397 = por %p395, %p396
      %p398 = scmp.ne.s32.totalorder %s390, %s393
      %p399 = scmp.eq.s32.totalorder %s25, 0
      %p400 = por %p398, %p399
      %p401 = scmp.ne.s32.totalorder %s390, %s393
      %p402 = scmp.eq.s32.totalorder %s30, 1
      %p403 = por %p401, %p402
      %p404 = scmp.ne.s32.totalorder %s393, %s394
      %p405 = scmp.eq.s32.totalorder %s30, 0
      %p406 = por %p404, %p405
      %p407 = scmp.ne.s32.totalorder %s393, %s394
      %p408 = scmp.eq.s32.totalorder %s31, 1
      %p409 = por %p407, %p408
      %p411 = scmp.ne.s32.totalorder %s394, %s410
      %p412 = scmp.eq.s32.totalorder %s31, 0
      %p413 = por %p411, %p412
      %p414 = scmp.le.s32.totalorder 1, %s25
      %p415 = scmp.lt.s32.totalorder %s25, 3
      %p416 = pnand %p414, %p415
      %p417 = pneg %p416
      // Predicated region
      $region9: #{tpu_custom_call.1} parent=5 // pred_check
        _
      $region10: #{tpu_custom_call.1} parent=5 // pred_check_branch
        %419 = sbr.rel (%p416) target = $region12
      $region11: #{tpu_custom_call.1} parent=5 // pred_region
        %s420 = ssub.s32 %s25, 1
        // Predicated region
        $region13: #{tpu_custom_call.1} parent=11 // pred_check
          %p421 = pneg %p84
        $region14: #{tpu_custom_call.1} parent=11 // pred_check_branch
          %423 = sbr.rel (%p421) target = $region16
        $region15: #{tpu_custom_call.1} parent=11 // pred_region
          _
        $region16: #{tpu_custom_call.1} parent=11 // pred_fallthru
          _
        // Predicated region
        $region17: #{tpu_custom_call.1} parent=11 // pred_check
          %p424 = pneg %p105
        $region18: #{tpu_custom_call.1} parent=11 // pred_check_branch
          %426 = sbr.rel (%p424) target = $region20
        $region19: #{tpu_custom_call.1} parent=11 // pred_region
          _
        $region20: #{tpu_custom_call.1} parent=11 // pred_fallthru
          _
        // Predicated region
        $region21: #{tpu_custom_call.1} parent=11 // pred_check
          %p427 = pneg %p126
        $region22: #{tpu_custom_call.1} parent=11 // pred_check_branch
          %429 = sbr.rel (%p427) target = $region24
        $region23: #{tpu_custom_call.1} parent=11 // pred_region
          _
        $region24: #{tpu_custom_call.1} parent=11 // pred_fallthru
          _
        // Predicated region
        $region25: #{tpu_custom_call.1} parent=11 // pred_check
          %p430 = pneg %p147
        $region26: #{tpu_custom_call.1} parent=11 // pred_check_branch
          %432 = sbr.rel (%p430) target = $region28
        $region27: #{tpu_custom_call.1} parent=11 // pred_region
          _
        $region28: #{tpu_custom_call.1} parent=11 // pred_fallthru
          _
        // Predicated region
        $region29: #{tpu_custom_call.1} parent=11 // pred_check
          %p433 = pneg %p168
        $region30: #{tpu_custom_call.1} parent=11 // pred_check_branch
          %435 = sbr.rel (%p433) target = $region32
        $region31: #{tpu_custom_call.1} parent=11 // pred_region
          _
        $region32: #{tpu_custom_call.1} parent=11 // pred_fallthru
          _
        // Predicated region
        $region33: #{tpu_custom_call.1} parent=11 // pred_check
          %p436 = pneg %p189
        $region34: #{tpu_custom_call.1} parent=11 // pred_check_branch
          %438 = sbr.rel (%p436) target = $region36
        $region35: #{tpu_custom_call.1} parent=11 // pred_region
          _
        $region36: #{tpu_custom_call.1} parent=11 // pred_fallthru
          _
        // Predicated region
        $region37: #{tpu_custom_call.1} parent=11 // pred_check
          %p439 = pneg %p210
        $region38: #{tpu_custom_call.1} parent=11 // pred_check_branch
          %441 = sbr.rel (%p439) target = $region40
        $region39: #{tpu_custom_call.1} parent=11 // pred_region
          _
        $region40: #{tpu_custom_call.1} parent=11 // pred_fallthru
          _
        // Predicated region
        $region41: #{tpu_custom_call.1} parent=11 // pred_check
          %p442 = pneg %p231
        $region42: #{tpu_custom_call.1} parent=11 // pred_check_branch
          %444 = sbr.rel (%p442) target = $region44
        $region43: #{tpu_custom_call.1} parent=11 // pred_region
          _
        $region44: #{tpu_custom_call.1} parent=11 // pred_fallthru
          _
        // Predicated region
        $region45: #{tpu_custom_call.1} parent=11 // pred_check
          %p445 = pneg %p252
        $region46: #{tpu_custom_call.1} parent=11 // pred_check_branch
          %447 = sbr.rel (%p445) target = $region48
        $region47: #{tpu_custom_call.1} parent=11 // pred_region
          _
        $region48: #{tpu_custom_call.1} parent=11 // pred_fallthru
          _
        // Predicated region
        $region49: #{tpu_custom_call.1} parent=11 // pred_check
          %p448 = pneg %p273
        $region50: #{tpu_custom_call.1} parent=11 // pred_check_branch
          %450 = sbr.rel (%p448) target = $region52
        $region51: #{tpu_custom_call.1} parent=11 // pred_region
          _
        $region52: #{tpu_custom_call.1} parent=11 // pred_fallthru
          _
        // Predicated region
        $region53: #{tpu_custom_call.1} parent=11 // pred_check
          %p451 = pneg %p294
        $region54: #{tpu_custom_call.1} parent=11 // pred_check_branch
          %453 = sbr.rel (%p451) target = $region56
        $region55: #{tpu_custom_call.1} parent=11 // pred_region
          _
        $region56: #{tpu_custom_call.1} parent=11 // pred_fallthru
          _
        // Predicated region
        $region57: #{tpu_custom_call.1} parent=11 // pred_check
          %p454 = pneg %p315
        $region58: #{tpu_custom_call.1} parent=11 // pred_check_branch
          %456 = sbr.rel (%p454) target = $region60
        $region59: #{tpu_custom_call.1} parent=11 // pred_region
          _
        $region60: #{tpu_custom_call.1} parent=11 // pred_fallthru
          _
        // Predicated region
        $region61: #{tpu_custom_call.1} parent=11 // pred_check
          %p457 = pneg %p336
        $region62: #{tpu_custom_call.1} parent=11 // pred_check_branch
          %459 = sbr.rel (%p457) target = $region64
        $region63: #{tpu_custom_call.1} parent=11 // pred_region
          _
        $region64: #{tpu_custom_call.1} parent=11 // pred_fallthru
          _
        // Predicated region
        $region65: #{tpu_custom_call.1} parent=11 // pred_check
          %p460 = pneg %p357
        $region66: #{tpu_custom_call.1} parent=11 // pred_check_branch
          %462 = sbr.rel (%p460) target = $region68
        $region67: #{tpu_custom_call.1} parent=11 // pred_region
          _
        $region68: #{tpu_custom_call.1} parent=11 // pred_fallthru
          _
        // Predicated region
        $region69: #{tpu_custom_call.1} parent=11 // pred_check
          %p463 = pneg %p378
        $region70: #{tpu_custom_call.1} parent=11 // pred_check_branch
          %465 = sbr.rel (%p463) target = $region72
        $region71: #{tpu_custom_call.1} parent=11 // pred_region
          _
        $region72: #{tpu_custom_call.1} parent=11 // pred_fallthru
          _
      $region12: #{tpu_custom_call.1} parent=5 // pred_fallthru
        _
      %p466 = scmp.lt.s32.totalorder %s25, 2
      // Predicated region
      $region73: #{tpu_custom_call.1} parent=5 // pred_check
        %p467 = pneg %p466
      $region74: #{tpu_custom_call.1} parent=5 // pred_check_branch
        %469 = sbr.rel (%p467) target = $region76
      $region75: #{tpu_custom_call.1} parent=5 // pred_region
        // Predicated region
        $region77: #{tpu_custom_call.1} parent=75 // pred_check
          %p470 = pneg %p57
        $region78: #{tpu_custom_call.1} parent=75 // pred_check_branch
          %472 = sbr.rel (%p470) target = $region80
        $region79: #{tpu_custom_call.1} parent=75 // pred_region
          %p473 = scmp.lt.s32.totalorder %s32, 1
          %s474 = scalar_select %p473, %s32, 1
          %s475 = smul.addr %s474, 2
          %s476 = smul.addr %s475, 8
          %s477 = scalar_lea.vmem %s0, %s476
        $region80: #{tpu_custom_call.1} parent=75 // pred_fallthru
          _
      $region76: #{tpu_custom_call.1} parent=5 // pred_fallthru
        _
      %p478 = scmp.le.s32.totalorder 1, %s25
      %p479 = scmp.lt.s32.totalorder %s25, 3
      %p480 = pnand %p478, %p479
      %p481 = pneg %p480
      // Predicated region
      $region81: #{tpu_custom_call.1} parent=5 // pred_check
        _
      $region82: #{tpu_custom_call.1} parent=5 // pred_check_branch
        %483 = sbr.rel (%p480) target = $region84
      $region83: #{tpu_custom_call.1} parent=5 // pred_region
        %s484 = ssub.s32 %s25, 1
        %p485 = scmp.lt.s32.totalorder %s34, 1
        %s486 = scalar_select %p485, %s34, 1
        %s487 = smul.addr %s486, 2
        %s488 = smul.addr %s487, 8
        %s489 = scalar_lea.vmem %s0, %s488
        %p490 = pneg %p63
        %p491 = pneg %p60
        %p492 = pneg %p84
        %p493 = pneg %p81
        %p494 = pneg %p105
        %p495 = pneg %p102
        %p496 = pneg %p126
        %p497 = pneg %p123
        %p498 = pneg %p147
        %p499 = pneg %p144
        %p500 = pneg %p168
        %p501 = pneg %p165
        %p502 = pneg %p189
        %p503 = pneg %p186
        %p504 = pneg %p210
        %p505 = pneg %p207
        %p506 = pneg %p231
        %p507 = pneg %p228
        %p508 = pneg %p252
        %p509 = pneg %p249
        %p510 = pneg %p273
        %p511 = pneg %p270
        %p512 = pneg %p294
        %p513 = pneg %p291
        %p514 = pneg %p315
        %p515 = pneg %p312
        %p516 = pneg %p336
        %p517 = pneg %p333
        %p518 = pneg %p357
        %p519 = pneg %p354
        %p520 = pneg %p378
        %p521 = pneg %p375
        %p522 = pneg %p406
        %p523 = pneg %p403
        %s524 = sand.u32 %s393, 1
        %s525 = scalar_lea.sflag [#allocation6], %s524
        %s526 = sand.u32 %s393, 1
        %s527 = smul.addr %s526, 16
        %s528 = scalar_lea.vmem [#allocation5], %s527
        %p529 = scmp.lt.s32.totalorder %s34, 1
        %s530 = scalar_select %p529, %s34, 1
        %s531 = smul.addr %s530, 2
        %s532 = smul.addr %s531, 8
        %s533 = scalar_lea.vmem %s0, %s532
        %s534 = smul.u32 2, %s35
        %p536 = scmp.eq.s32.totalorder %s35, 0
        // Predicated region
        $region85: #{tpu_custom_call.1} parent=83 // pred_check
          %p537 = pneg %p536
        $region86: #{tpu_custom_call.1} parent=83 // pred_check_branch
          %539 = sbr.rel (%p537) target = $region88
        $region87: #{tpu_custom_call.1} parent=83 // pred_region
          %v540 = vld [vmem:[%s533] sm:$0xff]
          %v541 = vld [vmem:[%s533 + $0x8] sm:$0xff]
          %v542 = vld [vmem:[%s1] sm:$0x1]
          %v543 = vld [vmem:[%s2] sm:$0x1]
          %vm544 = vcmask 523264
          %v545 = vsel %vm544, %v540, 0.0
          %546 = vadd.xlane.f32.xlu0 %v545
          %v547 = vpop.xlane.xlu0 %546
          %v548 = vsel %vm544, %v541, 0.0
          %549 = vadd.xlane.f32.xlu0 %v548
          %v550 = vpop.xlane.xlu0 %549
          %v551 = vrcp.pop 64.0
          %v552 = vmul.f32 %v547, %v551
          %v553 = vmul.f32 %v550, %v551
          %v554 = vsub.f32 %v540, %v552
          %v555 = vsub.f32 %v541, %v553
          %v556 = vmul.f32 %v554, %v554
          %v557 = vmul.f32 %v555, %v555
          %v558 = vsel %vm544, %v556, 0.0
          %559 = vadd.xlane.f32.xlu0 %v558
          %v560 = vpop.xlane.xlu0 %559
          %v561 = vsel %vm544, %v557, 0.0
          %562 = vadd.xlane.f32.xlu0 %v561
          %v563 = vpop.xlane.xlu0 %562
          %v564 = vmul.f32 %v560, %v551
          %v565 = vmul.f32 %v563, %v551
          %v566 = vadd.f32 %v564, 1e-05
          %v567 = vadd.f32 %v565, 1e-05
          %v568 = vrsqrt.pop %v566
          %v569 = vrsqrt.pop %v567
          %v570 = vmul.f32 %v554, %v568
          %v571 = vmul.f32 %v555, %v569
          %v573 = vlaneseq
          %v574 = vshrl.u32 %v573, 7
          %v575 = vsub.s32 0, %v574
          %v576 = vrot.slane %v542, %v575
          %v578 = vmul.f32 %v570, %v576
          %v579 = vmul.f32 %v571, %v576
          %v581 = vlaneseq
          %v582 = vshrl.u32 %v581, 7
          %v583 = vsub.s32 0, %v582
          %v584 = vrot.slane %v543, %v583
          %v586 = vadd.f32 %v578, %v584
          %v587 = vadd.f32 %v579, %v584
          %v588 = vpack.c.bf16 %v587, %v586
          %v589 = vld [vmem:[%s3] sm:$0xf]
          %v590 = vld [vmem:[%s3 + $0x4] sm:$0xf]
          %v591 = vld [vmem:[%s3 + $0x8] sm:$0xf]
          %v592 = vld [vmem:[%s3 + $0xc] sm:$0xf]
          %v593 = vld [vmem:[%s3 + $0x10] sm:$0xf]
          %v594 = vld [vmem:[%s3 + $0x14] sm:$0xf]
          %v595 = vld [vmem:[%s3 + $0x18] sm:$0xf]
          %v596 = vld [vmem:[%s3 + $0x1c] sm:$0xf]
          %v597 = vld [vmem:[%s4] sm:$0x1]
          %v599 = vlaneseq
          %v600 = vshrl.u32 %v599, 7
          %v601 = vsub.s32 0, %v600
          %v602 = vrot.slane %v597, %v601
          %v612 = vunpack.c.l.b16 %v589
          %v613 = vunpack.c.l.b16 %v590
          %v614 = vunpack.c.l.b16 %v591
          %v615 = vunpack.c.l.b16 %v592
          %v616 = vunpack.c.l.b16 %v593
          %v617 = vunpack.c.l.b16 %v594
          %v618 = vunpack.c.l.b16 %v595
          %v619 = vunpack.c.l.b16 %v596
          %v620 = vpack.c.b16 %v613, %v612
          %v621 = vpack.c.b16 %v615, %v614
          %v622 = vpack.c.b16 %v617, %v616
          %v623 = vpack.c.b16 %v619, %v618
          %v629 = vsel %vm544, %v588, 0
          %631 = vmatprep.subr.bf16.mxu0 0
          %632 = vmatpush1.bf16.msra.mxu0 0
          %633 = vmatprep.subr.bf16.mxu0 0
          %634 = vmatpush1.bf16.msra.mxu0 0
          %635 = vmatprep.subr.bf16.mxu0 0
          %636 = vmatpush1.bf16.msra.mxu0 0
          %637 = vmatprep.subr.bf16.mxu0 0
          %638 = vmatpush1.bf16.msra.mxu0 0
          %639 = vmatprep.subr.bf16.mxu0 0
          %640 = vmatpush1.bf16.msra.mxu0 %v623
          %641 = vmatprep.subr.bf16.mxu0 0
          %642 = vmatpush1.bf16.msra.mxu0 %v622
          %643 = vmatprep.subr.bf16.mxu0 0
          %644 = vmatpush1.bf16.msra.mxu0 %v621
          %645 = vmatprep.subr.bf16.mxu0 0
          %646 = vmatpush1.bf16.msra.mxu0 %v620
          %647 = vmatprep.subr.bf16.mxu0 0
          %648 = vmatpush2.bf16.msra.mxu0 0
          %649 = vmatprep.subr.bf16.mxu0 0
          %650 = vmatpush2.bf16.msra.mxu0 0
          %651 = vmatprep.subr.bf16.mxu0 0
          %652 = vmatpush2.bf16.msra.mxu0 0
          %653 = vmatprep.subr.bf16.mxu0 0
          %654 = vmatpush2.bf16.msra.mxu0 0
          %655 = vmatprep.subr.bf16.mxu0 0
          %656 = vmatpush2.bf16.msra.mxu0 0
          %657 = vmatprep.subr.bf16.mxu0 0
          %658 = vmatpush2.bf16.msra.mxu0 0
          %659 = vmatprep.subr.bf16.mxu0 0
          %660 = vmatpush2.bf16.msra.mxu0 0
          %661 = vmatprep.subr.bf16.mxu0 0
          %662 = vmatpush2.bf16.msra.mxu0 0
          %663 = vmatprep.mubr.bf16.mxu0 0
          %664 = vmatmul.mubr.bf16.gmra.mxu0 %v629
          %v665 = vpop.f32.mrf.mxu0
          %v666 = vadd.f32 %v602, %v665
          %v667 = vpop.f32.mrf.mxu0
          %v668 = vpop.f32.mrf.mxu0
          %v669 = vadd.f32 %v602, %v668
          %v670 = vpop.f32.mrf.mxu0
          %671 = vdwg.mxu0
          %v672 = vld [vmem:[%s5] sm:$0xf]
          %v673 = vld [vmem:[%s5 + $0x4] sm:$0xf]
          %v674 = vld [vmem:[%s5 + $0x8] sm:$0xf]
          %v675 = vld [vmem:[%s5 + $0xc] sm:$0xf]
          %v676 = vld [vmem:[%s5 + $0x10] sm:$0xf]
          %v677 = vld [vmem:[%s5 + $0x14] sm:$0xf]
          %v678 = vld [vmem:[%s5 + $0x18] sm:$0xf]
          %v679 = vld [vmem:[%s5 + $0x1c] sm:$0xf]
          %v680 = vld [vmem:[%s6] sm:$0x1]
          %v682 = vlaneseq
          %v683 = vshrl.u32 %v682, 7
          %v684 = vsub.s32 0, %v683
          %v685 = vrot.slane %v680, %v684
          %v695 = vunpack.c.l.b16 %v672
          %v696 = vunpack.c.l.b16 %v673
          %v697 = vunpack.c.l.b16 %v674
          %v698 = vunpack.c.l.b16 %v675
          %v699 = vunpack.c.l.b16 %v676
          %v700 = vunpack.c.l.b16 %v677
          %v701 = vunpack.c.l.b16 %v678
          %v702 = vunpack.c.l.b16 %v679
          %v703 = vpack.c.b16 %v696, %v695
          %v704 = vpack.c.b16 %v698, %v697
          %v705 = vpack.c.b16 %v700, %v699
          %v706 = vpack.c.b16 %v702, %v701
          %711 = vmatprep.subr.bf16.mxu0 0
          %712 = vmatpush1.bf16.msra.mxu0 0
          %713 = vmatprep.subr.bf16.mxu0 0
          %714 = vmatpush1.bf16.msra.mxu0 0
          %715 = vmatprep.subr.bf16.mxu0 0
          %716 = vmatpush1.bf16.msra.mxu0 0
          %717 = vmatprep.subr.bf16.mxu0 0
          %718 = vmatpush1.bf16.msra.mxu0 0
          %719 = vmatprep.subr.bf16.mxu0 0
          %720 = vmatpush1.bf16.msra.mxu0 %v706
          %721 = vmatprep.subr.bf16.mxu0 0
          %722 = vmatpush1.bf16.msra.mxu0 %v705
          %723 = vmatprep.subr.bf16.mxu0 0
          %724 = vmatpush1.bf16.msra.mxu0 %v704
          %725 = vmatprep.subr.bf16.mxu0 0
          %726 = vmatpush1.bf16.msra.mxu0 %v703
          %727 = vmatprep.subr.bf16.mxu0 0
          %728 = vmatpush2.bf16.msra.mxu0 0
          %729 = vmatprep.subr.bf16.mxu0 0
          %730 = vmatpush2.bf16.msra.mxu0 0
          %731 = vmatprep.subr.bf16.mxu0 0
          %732 = vmatpush2.bf16.msra.mxu0 0
          %733 = vmatprep.subr.bf16.mxu0 0
          %734 = vmatpush2.bf16.msra.mxu0 0
          %735 = vmatprep.subr.bf16.mxu0 0
          %736 = vmatpush2.bf16.msra.mxu0 0
          %737 = vmatprep.subr.bf16.mxu0 0
          %738 = vmatpush2.bf16.msra.mxu0 0
          %739 = vmatprep.subr.bf16.mxu0 0
          %740 = vmatpush2.bf16.msra.mxu0 0
          %741 = vmatprep.subr.bf16.mxu0 0
          %742 = vmatpush2.bf16.msra.mxu0 0
          %743 = vmatprep.mubr.bf16.mxu0 0
          %744 = vmatmul.mubr.bf16.gmra.mxu0 %v629
          %v745 = vpop.f32.mrf.mxu0
          %v746 = vadd.f32 %v685, %v745
          %v747 = vpop.f32.mrf.mxu0
          %v748 = vpop.f32.mrf.mxu0
          %v749 = vadd.f32 %v685, %v748
          %v750 = vpop.f32.mrf.mxu0
          %751 = vdwg.mxu0
          %v752 = vld [vmem:[%s7] sm:$0xf]
          %v753 = vld [vmem:[%s7 + $0x4] sm:$0xf]
          %v754 = vld [vmem:[%s7 + $0x8] sm:$0xf]
          %v755 = vld [vmem:[%s7 + $0xc] sm:$0xf]
          %v756 = vld [vmem:[%s7 + $0x10] sm:$0xf]
          %v757 = vld [vmem:[%s7 + $0x14] sm:$0xf]
          %v758 = vld [vmem:[%s7 + $0x18] sm:$0xf]
          %v759 = vld [vmem:[%s7 + $0x1c] sm:$0xf]
          %v760 = vld [vmem:[%s8] sm:$0x1]
          %v762 = vlaneseq
          %v763 = vshrl.u32 %v762, 7
          %v764 = vsub.s32 0, %v763
          %v765 = vrot.slane %v760, %v764
          %v775 = vunpack.c.l.b16 %v752
          %v776 = vunpack.c.l.b16 %v753
          %v777 = vunpack.c.l.b16 %v754
          %v778 = vunpack.c.l.b16 %v755
          %v779 = vunpack.c.l.b16 %v756
          %v780 = vunpack.c.l.b16 %v757
          %v781 = vunpack.c.l.b16 %v758
          %v782 = vunpack.c.l.b16 %v759
          %v783 = vpack.c.b16 %v776, %v775
          %v784 = vpack.c.b16 %v778, %v777
          %v785 = vpack.c.b16 %v780, %v779
          %v786 = vpack.c.b16 %v782, %v781
          %791 = vmatprep.subr.bf16.mxu0 0
          %792 = vmatpush1.bf16.msra.mxu0 0
          %793 = vmatprep.subr.bf16.mxu0 0
          %794 = vmatpush1.bf16.msra.mxu0 0
          %795 = vmatprep.subr.bf16.mxu0 0
          %796 = vmatpush1.bf16.msra.mxu0 0
          %797 = vmatprep.subr.bf16.mxu0 0
          %798 = vmatpush1.bf16.msra.mxu0 0
          %799 = vmatprep.subr.bf16.mxu0 0
          %800 = vmatpush1.bf16.msra.mxu0 %v786
          %801 = vmatprep.subr.bf16.mxu0 0
          %802 = vmatpush1.bf16.msra.mxu0 %v785
          %803 = vmatprep.subr.bf16.mxu0 0
          %804 = vmatpush1.bf16.msra.mxu0 %v784
          %805 = vmatprep.subr.bf16.mxu0 0
          %806 = vmatpush1.bf16.msra.mxu0 %v783
          %807 = vmatprep.subr.bf16.mxu0 0
          %808 = vmatpush2.bf16.msra.mxu0 0
          %809 = vmatprep.subr.bf16.mxu0 0
          %810 = vmatpush2.bf16.msra.mxu0 0
          %811 = vmatprep.subr.bf16.mxu0 0
          %812 = vmatpush2.bf16.msra.mxu0 0
          %813 = vmatprep.subr.bf16.mxu0 0
          %814 = vmatpush2.bf16.msra.mxu0 0
          %815 = vmatprep.subr.bf16.mxu0 0
          %816 = vmatpush2.bf16.msra.mxu0 0
          %817 = vmatprep.subr.bf16.mxu0 0
          %818 = vmatpush2.bf16.msra.mxu0 0
          %819 = vmatprep.subr.bf16.mxu0 0
          %820 = vmatpush2.bf16.msra.mxu0 0
          %821 = vmatprep.subr.bf16.mxu0 0
          %822 = vmatpush2.bf16.msra.mxu0 0
          %823 = vmatprep.mubr.bf16.mxu0 0
          %824 = vmatmul.mubr.bf16.gmra.mxu0 %v629
          %v825 = vpop.f32.mrf.mxu0
          %v826 = vadd.f32 %v765, %v825
          %v827 = vpop.f32.mrf.mxu0
          %v828 = vpop.f32.mrf.mxu0
          %v829 = vadd.f32 %v765, %v828
          %v830 = vpop.f32.mrf.mxu0
          %831 = vdwg.mxu0
          %v832 = vmul.f32 %v666, 0.25
          %v833 = vmul.f32 %v669, 0.25
          %v834 = vpack.c.bf16 %v833, %v832
          %v836 = vunpack.c.l.b16 %v834
          %v837 = vunpack.c.h.b16 %v834
          %v838 = vpack.c.b16 %v836, %v836
          %v839 = vpack.c.b16 %v837, %v837
          %vm842 = vcmask 125952
          %843 = vst.msk [vmem:[#allocation2] sm:$0xf] %vm842, %v838
          %844 = vst.msk [vmem:[#allocation2 + $0x4] sm:$0xf] %vm842, %v839
          %v845 = vpack.c.bf16 %v749, %v746
          %v847 = vunpack.c.l.b16 %v845
          %v848 = vunpack.c.h.b16 %v845
          %v849 = vpack.c.b16 %v847, %v847
          %v850 = vpack.c.b16 %v848, %v848
          %853 = vst.msk [vmem:[#allocation3] sm:$0xf] %vm842, %v849
          %854 = vst.msk [vmem:[#allocation3 + $0x4] sm:$0xf] %vm842, %v850
          %v855 = vpack.c.bf16 %v829, %v826
          %v857 = vunpack.c.l.b16 %v855
          %v858 = vunpack.c.h.b16 %v855
          %v859 = vpack.c.b16 %v857, %v857
          %v860 = vpack.c.b16 %v858, %v858
          %863 = vst.msk [vmem:[#allocation4] sm:$0xf] %vm842, %v859
          %864 = vst.msk [vmem:[#allocation4 + $0x4] sm:$0xf] %vm842, %v860
          %s865 = scalar_lea.vmem %s3, 32
          %v866 = vld [vmem:[%s865] sm:$0xf]
          %v867 = vld [vmem:[%s865 + $0x4] sm:$0xf]
          %v868 = vld [vmem:[%s865 + $0x8] sm:$0xf]
          %v869 = vld [vmem:[%s865 + $0xc] sm:$0xf]
          %v870 = vld [vmem:[%s865 + $0x10] sm:$0xf]
          %v871 = vld [vmem:[%s865 + $0x14] sm:$0xf]
          %v872 = vld [vmem:[%s865 + $0x18] sm:$0xf]
          %v873 = vld [vmem:[%s865 + $0x1c] sm:$0xf]
          %s874 = scalar_lea.vmem %s4, 1
          %v875 = vld [vmem:[%s874] sm:$0x1]
          %v877 = vlaneseq
          %v878 = vshrl.u32 %v877, 7
          %v879 = vsub.s32 0, %v878
          %v880 = vrot.slane %v875, %v879
          %v890 = vunpack.c.l.b16 %v866
          %v891 = vunpack.c.l.b16 %v867
          %v892 = vunpack.c.l.b16 %v868
          %v893 = vunpack.c.l.b16 %v869
          %v894 = vunpack.c.l.b16 %v870
          %v895 = vunpack.c.l.b16 %v871
          %v896 = vunpack.c.l.b16 %v872
          %v897 = vunpack.c.l.b16 %v873
          %v898 = vpack.c.b16 %v891, %v890
          %v899 = vpack.c.b16 %v893, %v892
          %v900 = vpack.c.b16 %v895, %v894
          %v901 = vpack.c.b16 %v897, %v896
          %906 = vmatprep.subr.bf16.mxu0 0
          %907 = vmatpush1.bf16.msra.mxu0 0
          %908 = vmatprep.subr.bf16.mxu0 0
          %909 = vmatpush1.bf16.msra.mxu0 0
          %910 = vmatprep.subr.bf16.mxu0 0
          %911 = vmatpush1.bf16.msra.mxu0 0
          %912 = vmatprep.subr.bf16.mxu0 0
          %913 = vmatpush1.bf16.msra.mxu0 0
          %914 = vmatprep.subr.bf16.mxu0 0
          %915 = vmatpush1.bf16.msra.mxu0 %v901
          %916 = vmatprep.subr.bf16.mxu0 0
          %917 = vmatpush1.bf16.msra.mxu0 %v900
          %918 = vmatprep.subr.bf16.mxu0 0
          %919 = vmatpush1.bf16.msra.mxu0 %v899
          %920 = vmatprep.subr.bf16.mxu0 0
          %921 = vmatpush1.bf16.msra.mxu0 %v898
          %922 = vmatprep.subr.bf16.mxu0 0
          %923 = vmatpush2.bf16.msra.mxu0 0
          %924 = vmatprep.subr.bf16.mxu0 0
          %925 = vmatpush2.bf16.msra.mxu0 0
          %926 = vmatprep.subr.bf16.mxu0 0
          %927 = vmatpush2.bf16.msra.mxu0 0
          %928 = vmatprep.subr.bf16.mxu0 0
          %929 = vmatpush2.bf16.msra.mxu0 0
          %930 = vmatprep.subr.bf16.mxu0 0
          %931 = vmatpush2.bf16.msra.mxu0 0
          %932 = vmatprep.subr.bf16.mxu0 0
          %933 = vmatpush2.bf16.msra.mxu0 0
          %934 = vmatprep.subr.bf16.mxu0 0
          %935 = vmatpush2.bf16.msra.mxu0 0
          %936 = vmatprep.subr.bf16.mxu0 0
          %937 = vmatpush2.bf16.msra.mxu0 0
          %938 = vmatprep.mubr.bf16.mxu0 0
          %939 = vmatmul.mubr.bf16.gmra.mxu0 %v629
          %v940 = vpop.f32.mrf.mxu0
          %v941 = vadd.f32 %v880, %v940
          %v942 = vpop.f32.mrf.mxu0
          %v943 = vpop.f32.mrf.mxu0
          %v944 = vadd.f32 %v880, %v943
          %v945 = vpop.f32.mrf.mxu0
          %946 = vdwg.mxu0
          %s947 = scalar_lea.vmem %s5, 32
          %v948 = vld [vmem:[%s947] sm:$0xf]
          %v949 = vld [vmem:[%s947 + $0x4] sm:$0xf]
          %v950 = vld [vmem:[%s947 + $0x8] sm:$0xf]
          %v951 = vld [vmem:[%s947 + $0xc] sm:$0xf]
          %v952 = vld [vmem:[%s947 + $0x10] sm:$0xf]
          %v953 = vld [vmem:[%s947 + $0x14] sm:$0xf]
          %v954 = vld [vmem:[%s947 + $0x18] sm:$0xf]
          %v955 = vld [vmem:[%s947 + $0x1c] sm:$0xf]
          %s956 = scalar_lea.vmem %s6, 1
          %v957 = vld [vmem:[%s956] sm:$0x1]
          %v959 = vlaneseq
          %v960 = vshrl.u32 %v959, 7
          %v961 = vsub.s32 0, %v960
          %v962 = vrot.slane %v957, %v961
          %v972 = vunpack.c.l.b16 %v948
          %v973 = vunpack.c.l.b16 %v949
          %v974 = vunpack.c.l.b16 %v950
          %v975 = vunpack.c.l.b16 %v951
          %v976 = vunpack.c.l.b16 %v952
          %v977 = vunpack.c.l.b16 %v953
          %v978 = vunpack.c.l.b16 %v954
          %v979 = vunpack.c.l.b16 %v955
          %v980 = vpack.c.b16 %v973, %v972
          %v981 = vpack.c.b16 %v975, %v974
          %v982 = vpack.c.b16 %v977, %v976
          %v983 = vpack.c.b16 %v979, %v978
          %988 = vmatprep.subr.bf16.mxu0 0
          %989 = vmatpush1.bf16.msra.mxu0 0
          %990 = vmatprep.subr.bf16.mxu0 0
          %991 = vmatpush1.bf16.msra.mxu0 0
          %992 = vmatprep.subr.bf16.mxu0 0
          %993 = vmatpush1.bf16.msra.mxu0 0
          %994 = vmatprep.subr.bf16.mxu0 0
          %995 = vmatpush1.bf16.msra.mxu0 0
          %996 = vmatprep.subr.bf16.mxu0 0
          %997 = vmatpush1.bf16.msra.mxu0 %v983
          %998 = vmatprep.subr.bf16.mxu0 0
          %999 = vmatpush1.bf16.msra.mxu0 %v982
          %1000 = vmatprep.subr.bf16.mxu0 0
          %1001 = vmatpush1.bf16.msra.mxu0 %v981
          %1002 = vmatprep.subr.bf16.mxu0 0
          %1003 = vmatpush1.bf16.msra.mxu0 %v980
          %1004 = vmatprep.subr.bf16.mxu0 0
          %1005 = vmatpush2.bf16.msra.mxu0 0
          %1006 = vmatprep.subr.bf16.mxu0 0
          %1007 = vmatpush2.bf16.msra.mxu0 0
          %1008 = vmatprep.subr.bf16.mxu0 0
          %1009 = vmatpush2.bf16.msra.mxu0 0
          %1010 = vmatprep.subr.bf16.mxu0 0
          %1011 = vmatpush2.bf16.msra.mxu0 0
          %1012 = vmatprep.subr.bf16.mxu0 0
          %1013 = vmatpush2.bf16.msra.mxu0 0
          %1014 = vmatprep.subr.bf16.mxu0 0
          %1015 = vmatpush2.bf16.msra.mxu0 0
          %1016 = vmatprep.subr.bf16.mxu0 0
          %1017 = vmatpush2.bf16.msra.mxu0 0
          %1018 = vmatprep.subr.bf16.mxu0 0
          %1019 = vmatpush2.bf16.msra.mxu0 0
          %1020 = vmatprep.mubr.bf16.mxu0 0
          %1021 = vmatmul.mubr.bf16.gmra.mxu0 %v629
          %v1022 = vpop.f32.mrf.mxu0
          %v1023 = vadd.f32 %v962, %v1022
          %v1024 = vpop.f32.mrf.mxu0
          %v1025 = vpop.f32.mrf.mxu0
          %v1026 = vadd.f32 %v962, %v1025
          %v1027 = vpop.f32.mrf.mxu0
          %1028 = vdwg.mxu0
          %s1029 = scalar_lea.vmem %s7, 32
          %v1030 = vld [vmem:[%s1029] sm:$0xf]
          %v1031 = vld [vmem:[%s1029 + $0x4] sm:$0xf]
          %v1032 = vld [vmem:[%s1029 + $0x8] sm:$0xf]
          %v1033 = vld [vmem:[%s1029 + $0xc] sm:$0xf]
          %v1034 = vld [vmem:[%s1029 + $0x10] sm:$0xf]
          %v1035 = vld [vmem:[%s1029 + $0x14] sm:$0xf]
          %v1036 = vld [vmem:[%s1029 + $0x18] sm:$0xf]
          %v1037 = vld [vmem:[%s1029 + $0x1c] sm:$0xf]
          %s1038 = scalar_lea.vmem %s8, 1
          %v1039 = vld [vmem:[%s1038] sm:$0x1]
          %v1041 = vlaneseq
          %v1042 = vshrl.u32 %v1041, 7
          %v1043 = vsub.s32 0, %v1042
          %v1044 = vrot.slane %v1039, %v1043
          %v1054 = vunpack.c.l.b16 %v1030
          %v1055 = vunpack.c.l.b16 %v1031
          %v1056 = vunpack.c.l.b16 %v1032
          %v1057 = vunpack.c.l.b16 %v1033
          %v1058 = vunpack.c.l.b16 %v1034
          %v1059 = vunpack.c.l.b16 %v1035
          %v1060 = vunpack.c.l.b16 %v1036
          %v1061 = vunpack.c.l.b16 %v1037
          %v1062 = vpack.c.b16 %v1055, %v1054
          %v1063 = vpack.c.b16 %v1057, %v1056
          %v1064 = vpack.c.b16 %v1059, %v1058
          %v1065 = vpack.c.b16 %v1061, %v1060
          %1070 = vmatprep.subr.bf16.mxu0 0
          %1071 = vmatpush1.bf16.msra.mxu0 0
          %1072 = vmatprep.subr.bf16.mxu0 0
          %1073 = vmatpush1.bf16.msra.mxu0 0
          %1074 = vmatprep.subr.bf16.mxu0 0
          %1075 = vmatpush1.bf16.msra.mxu0 0
          %1076 = vmatprep.subr.bf16.mxu0 0
          %1077 = vmatpush1.bf16.msra.mxu0 0
          %1078 = vmatprep.subr.bf16.mxu0 0
          %1079 = vmatpush1.bf16.msra.mxu0 %v1065
          %1080 = vmatprep.subr.bf16.mxu0 0
          %1081 = vmatpush1.bf16.msra.mxu0 %v1064
          %1082 = vmatprep.subr.bf16.mxu0 0
          %1083 = vmatpush1.bf16.msra.mxu0 %v1063
          %1084 = vmatprep.subr.bf16.mxu0 0
          %1085 = vmatpush1.bf16.msra.mxu0 %v1062
          %1086 = vmatprep.subr.bf16.mxu0 0
          %1087 = vmatpush2.bf16.msra.mxu0 0
          %1088 = vmatprep.subr.bf16.mxu0 0
          %1089 = vmatpush2.bf16.msra.mxu0 0
          %1090 = vmatprep.subr.bf16.mxu0 0
          %1091 = vmatpush2.bf16.msra.mxu0 0
          %1092 = vmatprep.subr.bf16.mxu0 0
          %1093 = vmatpush2.bf16.msra.mxu0 0
          %1094 = vmatprep.subr.bf16.mxu0 0
          %1095 = vmatpush2.bf16.msra.mxu0 0
          %1096 = vmatprep.subr.bf16.mxu0 0
          %1097 = vmatpush2.bf16.msra.mxu0 0
          %1098 = vmatprep.subr.bf16.mxu0 0
          %1099 = vmatpush2.bf16.msra.mxu0 0
          %1100 = vmatprep.subr.bf16.mxu0 0
          %1101 = vmatpush2.bf16.msra.mxu0 0
          %1102 = vmatprep.mubr.bf16.mxu0 0
          %1103 = vmatmul.mubr.bf16.gmra.mxu0 %v629
          %v1104 = vpop.f32.mrf.mxu0
          %v1105 = vadd.f32 %v1044, %v1104
          %v1106 = vpop.f32.mrf.mxu0
          %v1107 = vpop.f32.mrf.mxu0
          %v1108 = vadd.f32 %v1044, %v1107
          %v1109 = vpop.f32.mrf.mxu0
          %1110 = vdwg.mxu0
          %v1111 = vmul.f32 %v941, 0.25
          %v1112 = vmul.f32 %v944, 0.25
          %v1113 = vpack.c.bf16 %v1112, %v1111
          %v1115 = vunpack.c.l.b16 %v1113
          %v1116 = vunpack.c.h.b16 %v1113
          %v1117 = vpack.c.b16 %v1115, %v1115
          %v1118 = vpack.c.b16 %v1116, %v1116
          %s1121 = scalar_lea.vmem [#allocation2], 8
          %1122 = vst.msk [vmem:[%s1121] sm:$0xf] %vm842, %v1117
          %1123 = vst.msk [vmem:[%s1121 + $0x4] sm:$0xf] %vm842, %v1118
          %v1124 = vpack.c.bf16 %v1026, %v1023
          %v1126 = vunpack.c.l.b16 %v1124
          %v1127 = vunpack.c.h.b16 %v1124
          %v1128 = vpack.c.b16 %v1126, %v1126
          %v1129 = vpack.c.b16 %v1127, %v1127
          %s1132 = scalar_lea.vmem [#allocation3], 8
          %1133 = vst.msk [vmem:[%s1132] sm:$0xf] %vm842, %v1128
          %1134 = vst.msk [vmem:[%s1132 + $0x4] sm:$0xf] %vm842, %v1129
          %v1135 = vpack.c.bf16 %v1108, %v1105
          %v1137 = vunpack.c.l.b16 %v1135
          %v1138 = vunpack.c.h.b16 %v1135
          %v1139 = vpack.c.b16 %v1137, %v1137
          %v1140 = vpack.c.b16 %v1138, %v1138
          %s1143 = scalar_lea.vmem [#allocation4], 8
          %1144 = vst.msk [vmem:[%s1143] sm:$0xf] %vm842, %v1139
          %1145 = vst.msk [vmem:[%s1143 + $0x4] sm:$0xf] %vm842, %v1140
          %s1146 = scalar_lea.vmem %s3, 64
          %v1147 = vld [vmem:[%s1146] sm:$0xf]
          %v1148 = vld [vmem:[%s1146 + $0x4] sm:$0xf]
          %v1149 = vld [vmem:[%s1146 + $0x8] sm:$0xf]
          %v1150 = vld [vmem:[%s1146 + $0xc] sm:$0xf]
          %v1151 = vld [vmem:[%s1146 + $0x10] sm:$0xf]
          %v1152 = vld [vmem:[%s1146 + $0x14] sm:$0xf]
          %v1153 = vld [vmem:[%s1146 + $0x18] sm:$0xf]
          %v1154 = vld [vmem:[%s1146 + $0x1c] sm:$0xf]
          %s1155 = scalar_lea.vmem %s4, 2
          %v1156 = vld [vmem:[%s1155] sm:$0x1]
          %v1158 = vlaneseq
          %v1159 = vshrl.u32 %v1158, 7
          %v1160 = vsub.s32 0, %v1159
          %v1161 = vrot.slane %v1156, %v1160
          %v1171 = vunpack.c.l.b16 %v1147
          %v1172 = vunpack.c.l.b16 %v1148
          %v1173 = vunpack.c.l.b16 %v1149
          %v1174 = vunpack.c.l.b16 %v1150
          %v1175 = vunpack.c.l.b16 %v1151
          %v1176 = vunpack.c.l.b16 %v1152
          %v1177 = vunpack.c.l.b16 %v1153
          %v1178 = vunpack.c.l.b16 %v1154
          %v1179 = vpack.c.b16 %v1172, %v1171
          %v1180 = vpack.c.b16 %v1174, %v1173
          %v1181 = vpack.c.b16 %v1176, %v1175
          %v1182 = vpack.c.b16 %v1178, %v1177
          %1187 = vmatprep.subr.bf16.mxu0 0
          %1188 = vmatpush1.bf16.msra.mxu0 0
          %1189 = vmatprep.subr.bf16.mxu0 0
          %1190 = vmatpush1.bf16.msra.mxu0 0
          %1191 = vmatprep.subr.bf16.mxu0 0
          %1192 = vmatpush1.bf16.msra.mxu0 0
          %1193 = vmatprep.subr.bf16.mxu0 0
          %1194 = vmatpush1.bf16.msra.mxu0 0
          %1195 = vmatprep.subr.bf16.mxu0 0
          %1196 = vmatpush1.bf16.msra.mxu0 %v1182
          %1197 = vmatprep.subr.bf16.mxu0 0
          %1198 = vmatpush1.bf16.msra.mxu0 %v1181
          %1199 = vmatprep.subr.bf16.mxu0 0
          %1200 = vmatpush1.bf16.msra.mxu0 %v1180
          %1201 = vmatprep.subr.bf16.mxu0 0
          %1202 = vmatpush1.bf16.msra.mxu0 %v1179
          %1203 = vmatprep.subr.bf16.mxu0 0
          %1204 = vmatpush2.bf16.msra.mxu0 0
          %1205 = vmatprep.subr.bf16.mxu0 0
          %1206 = vmatpush2.bf16.msra.mxu0 0
          %1207 = vmatprep.subr.bf16.mxu0 0
          %1208 = vmatpush2.bf16.msra.mxu0 0
          %1209 = vmatprep.subr.bf16.mxu0 0
          %1210 = vmatpush2.bf16.msra.mxu0 0
          %1211 = vmatprep.subr.bf16.mxu0 0
          %1212 = vmatpush2.bf16.msra.mxu0 0
          %1213 = vmatprep.subr.bf16.mxu0 0
          %1214 = vmatpush2.bf16.msra.mxu0 0
          %1215 = vmatprep.subr.bf16.mxu0 0
          %1216 = vmatpush2.bf16.msra.mxu0 0
          %1217 = vmatprep.subr.bf16.mxu0 0
          %1218 = vmatpush2.bf16.msra.mxu0 0
          %1219 = vmatprep.mubr.bf16.mxu0 0
          %1220 = vmatmul.mubr.bf16.gmra.mxu0 %v629
          %v1221 = vpop.f32.mrf.mxu0
          %v1222 = vadd.f32 %v1161, %v1221
          %v1223 = vpop.f32.mrf.mxu0
          %v1224 = vpop.f32.mrf.mxu0
          %v1225 = vadd.f32 %v1161, %v1224
          %v1226 = vpop.f32.mrf.mxu0
          %1227 = vdwg.mxu0
          %s1228 = scalar_lea.vmem %s5, 64
          %v1229 = vld [vmem:[%s1228] sm:$0xf]
          %v1230 = vld [vmem:[%s1228 + $0x4] sm:$0xf]
          %v1231 = vld [vmem:[%s1228 + $0x8] sm:$0xf]
          %v1232 = vld [vmem:[%s1228 + $0xc] sm:$0xf]
          %v1233 = vld [vmem:[%s1228 + $0x10] sm:$0xf]
          %v1234 = vld [vmem:[%s1228 + $0x14] sm:$0xf]
          %v1235 = vld [vmem:[%s1228 + $0x18] sm:$0xf]
          %v1236 = vld [vmem:[%s1228 + $0x1c] sm:$0xf]
          %s1237 = scalar_lea.vmem %s6, 2
          %v1238 = vld [vmem:[%s1237] sm:$0x1]
          %v1240 = vlaneseq
          %v1241 = vshrl.u32 %v1240, 7
          %v1242 = vsub.s32 0, %v1241
          %v1243 = vrot.slane %v1238, %v1242
          %v1253 = vunpack.c.l.b16 %v1229
          %v1254 = vunpack.c.l.b16 %v1230
          %v1255 = vunpack.c.l.b16 %v1231
          %v1256 = vunpack.c.l.b16 %v1232
          %v1257 = vunpack.c.l.b16 %v1233
          %v1258 = vunpack.c.l.b16 %v1234
          %v1259 = vunpack.c.l.b16 %v1235
          %v1260 = vunpack.c.l.b16 %v1236
          %v1261 = vpack.c.b16 %v1254, %v1253
          %v1262 = vpack.c.b16 %v1256, %v1255
          %v1263 = vpack.c.b16 %v1258, %v1257
          %v1264 = vpack.c.b16 %v1260, %v1259
          %1269 = vmatprep.subr.bf16.mxu0 0
          %1270 = vmatpush1.bf16.msra.mxu0 0
          %1271 = vmatprep.subr.bf16.mxu0 0
          %1272 = vmatpush1.bf16.msra.mxu0 0
          %1273 = vmatprep.subr.bf16.mxu0 0
          %1274 = vmatpush1.bf16.msra.mxu0 0
          %1275 = vmatprep.subr.bf16.mxu0 0
          %1276 = vmatpush1.bf16.msra.mxu0 0
          %1277 = vmatprep.subr.bf16.mxu0 0
          %1278 = vmatpush1.bf16.msra.mxu0 %v1264
          %1279 = vmatprep.subr.bf16.mxu0 0
          %1280 = vmatpush1.bf16.msra.mxu0 %v1263
          %1281 = vmatprep.subr.bf16.mxu0 0
          %1282 = vmatpush1.bf16.msra.mxu0 %v1262
          %1283 = vmatprep.subr.bf16.mxu0 0
          %1284 = vmatpush1.bf16.msra.mxu0 %v1261
          %1285 = vmatprep.subr.bf16.mxu0 0
          %1286 = vmatpush2.bf16.msra.mxu0 0
          %1287 = vmatprep.subr.bf16.mxu0 0
          %1288 = vmatpush2.bf16.msra.mxu0 0
          %1289 = vmatprep.subr.bf16.mxu0 0
          %1290 = vmatpush2.bf16.msra.mxu0 0
          %1291 = vmatprep.subr.bf16.mxu0 0
          %1292 = vmatpush2.bf16.msra.mxu0 0
          %1293 = vmatprep.subr.bf16.mxu0 0
          %1294 = vmatpush2.bf16.msra.mxu0 0
          %1295 = vmatprep.subr.bf16.mxu0 0
          %1296 = vmatpush2.bf16.msra.mxu0 0
          %1297 = vmatprep.subr.bf16.mxu0 0
          %1298 = vmatpush2.bf16.msra.mxu0 0
          %1299 = vmatprep.subr.bf16.mxu0 0
          %1300 = vmatpush2.bf16.msra.mxu0 0
          %1301 = vmatprep.mubr.bf16.mxu0 0
          %1302 = vmatmul.mubr.bf16.gmra.mxu0 %v629
          %v1303 = vpop.f32.mrf.mxu0
          %v1304 = vadd.f32 %v1243, %v1303
          %v1305 = vpop.f32.mrf.mxu0
          %v1306 = vpop.f32.mrf.mxu0
          %v1307 = vadd.f32 %v1243, %v1306
          %v1308 = vpop.f32.mrf.mxu0
          %1309 = vdwg.mxu0
          %s1310 = scalar_lea.vmem %s7, 64
          %v1311 = vld [vmem:[%s1310] sm:$0xf]
          %v1312 = vld [vmem:[%s1310 + $0x4] sm:$0xf]
          %v1313 = vld [vmem:[%s1310 + $0x8] sm:$0xf]
          %v1314 = vld [vmem:[%s1310 + $0xc] sm:$0xf]
          %v1315 = vld [vmem:[%s1310 + $0x10] sm:$0xf]
          %v1316 = vld [vmem:[%s1310 + $0x14] sm:$0xf]
          %v1317 = vld [vmem:[%s1310 + $0x18] sm:$0xf]
          %v1318 = vld [vmem:[%s1310 + $0x1c] sm:$0xf]
          %s1319 = scalar_lea.vmem %s8, 2
          %v1320 = vld [vmem:[%s1319] sm:$0x1]
          %v1322 = vlaneseq
          %v1323 = vshrl.u32 %v1322, 7
          %v1324 = vsub.s32 0, %v1323
          %v1325 = vrot.slane %v1320, %v1324
          %v1335 = vunpack.c.l.b16 %v1311
          %v1336 = vunpack.c.l.b16 %v1312
          %v1337 = vunpack.c.l.b16 %v1313
          %v1338 = vunpack.c.l.b16 %v1314
          %v1339 = vunpack.c.l.b16 %v1315
          %v1340 = vunpack.c.l.b16 %v1316
          %v1341 = vunpack.c.l.b16 %v1317
          %v1342 = vunpack.c.l.b16 %v1318
          %v1343 = vpack.c.b16 %v1336, %v1335
          %v1344 = vpack.c.b16 %v1338, %v1337
          %v1345 = vpack.c.b16 %v1340, %v1339
          %v1346 = vpack.c.b16 %v1342, %v1341
          %1351 = vmatprep.subr.bf16.mxu0 0
          %1352 = vmatpush1.bf16.msra.mxu0 0
          %1353 = vmatprep.subr.bf16.mxu0 0
          %1354 = vmatpush1.bf16.msra.mxu0 0
          %1355 = vmatprep.subr.bf16.mxu0 0
          %1356 = vmatpush1.bf16.msra.mxu0 0
          %1357 = vmatprep.subr.bf16.mxu0 0
          %1358 = vmatpush1.bf16.msra.mxu0 0
          %1359 = vmatprep.subr.bf16.mxu0 0
          %1360 = vmatpush1.bf16.msra.mxu0 %v1346
          %1361 = vmatprep.subr.bf16.mxu0 0
          %1362 = vmatpush1.bf16.msra.mxu0 %v1345
          %1363 = vmatprep.subr.bf16.mxu0 0
          %1364 = vmatpush1.bf16.msra.mxu0 %v1344
          %1365 = vmatprep.subr.bf16.mxu0 0
          %1366 = vmatpush1.bf16.msra.mxu0 %v1343
          %1367 = vmatprep.subr.bf16.mxu0 0
          %1368 = vmatpush2.bf16.msra.mxu0 0
          %1369 = vmatprep.subr.bf16.mxu0 0
          %1370 = vmatpush2.bf16.msra.mxu0 0
          %1371 = vmatprep.subr.bf16.mxu0 0
          %1372 = vmatpush2.bf16.msra.mxu0 0
          %1373 = vmatprep.subr.bf16.mxu0 0
          %1374 = vmatpush2.bf16.msra.mxu0 0
          %1375 = vmatprep.subr.bf16.mxu0 0
          %1376 = vmatpush2.bf16.msra.mxu0 0
          %1377 = vmatprep.subr.bf16.mxu0 0
          %1378 = vmatpush2.bf16.msra.mxu0 0
          %1379 = vmatprep.subr.bf16.mxu0 0
          %1380 = vmatpush2.bf16.msra.mxu0 0
          %1381 = vmatprep.subr.bf16.mxu0 0
          %1382 = vmatpush2.bf16.msra.mxu0 0
          %1383 = vmatprep.mubr.bf16.mxu0 0
          %1384 = vmatmul.mubr.bf16.gmra.mxu0 %v629
          %v1385 = vpop.f32.mrf.mxu0
          %v1386 = vadd.f32 %v1325, %v1385
          %v1387 = vpop.f32.mrf.mxu0
          %v1388 = vpop.f32.mrf.mxu0
          %v1389 = vadd.f32 %v1325, %v1388
          %v1390 = vpop.f32.mrf.mxu0
          %1391 = vdwg.mxu0
          %v1392 = vmul.f32 %v1222, 0.25
          %v1393 = vmul.f32 %v1225, 0.25
          %v1394 = vpack.c.bf16 %v1393, %v1392
          %v1396 = vunpack.c.l.b16 %v1394
          %v1397 = vunpack.c.h.b16 %v1394
          %v1398 = vpack.c.b16 %v1396, %v1396
          %v1399 = vpack.c.b16 %v1397, %v1397
          %s1402 = scalar_lea.vmem [#allocation2], 16
          %1403 = vst.msk [vmem:[%s1402] sm:$0xf] %vm842, %v1398
          %1404 = vst.msk [vmem:[%s1402 + $0x4] sm:$0xf] %vm842, %v1399
          %v1405 = vpack.c.bf16 %v1307, %v1304
          %v1407 = vunpack.c.l.b16 %v1405
          %v1408 = vunpack.c.h.b16 %v1405
          %v1409 = vpack.c.b16 %v1407, %v1407
          %v1410 = vpack.c.b16 %v1408, %v1408
          %s1413 = scalar_lea.vmem [#allocation3], 16
          %1414 = vst.msk [vmem:[%s1413] sm:$0xf] %vm842, %v1409
          %1415 = vst.msk [vmem:[%s1413 + $0x4] sm:$0xf] %vm842, %v1410
          %v1416 = vpack.c.bf16 %v1389, %v1386
          %v1418 = vunpack.c.l.b16 %v1416
          %v1419 = vunpack.c.h.b16 %v1416
          %v1420 = vpack.c.b16 %v1418, %v1418
          %v1421 = vpack.c.b16 %v1419, %v1419
          %s1424 = scalar_lea.vmem [#allocation4], 16
          %1425 = vst.msk [vmem:[%s1424] sm:$0xf] %vm842, %v1420
          %1426 = vst.msk [vmem:[%s1424 + $0x4] sm:$0xf] %vm842, %v1421
          %s1427 = scalar_lea.vmem %s3, 96
          %v1428 = vld [vmem:[%s1427] sm:$0xf]
          %v1429 = vld [vmem:[%s1427 + $0x4] sm:$0xf]
          %v1430 = vld [vmem:[%s1427 + $0x8] sm:$0xf]
          %v1431 = vld [vmem:[%s1427 + $0xc] sm:$0xf]
          %v1432 = vld [vmem:[%s1427 + $0x10] sm:$0xf]
          %v1433 = vld [vmem:[%s1427 + $0x14] sm:$0xf]
          %v1434 = vld [vmem:[%s1427 + $0x18] sm:$0xf]
          %v1435 = vld [vmem:[%s1427 + $0x1c] sm:$0xf]
          %s1436 = scalar_lea.vmem %s4, 3
          %v1437 = vld [vmem:[%s1436] sm:$0x1]
          %v1439 = vlaneseq
          %v1440 = vshrl.u32 %v1439, 7
          %v1441 = vsub.s32 0, %v1440
          %v1442 = vrot.slane %v1437, %v1441
          %v1452 = vunpack.c.l.b16 %v1428
          %v1453 = vunpack.c.l.b16 %v1429
          %v1454 = vunpack.c.l.b16 %v1430
          %v1455 = vunpack.c.l.b16 %v1431
          %v1456 = vunpack.c.l.b16 %v1432
          %v1457 = vunpack.c.l.b16 %v1433
          %v1458 = vunpack.c.l.b16 %v1434
          %v1459 = vunpack.c.l.b16 %v1435
          %v1460 = vpack.c.b16 %v1453, %v1452
          %v1461 = vpack.c.b16 %v1455, %v1454
          %v1462 = vpack.c.b16 %v1457, %v1456
          %v1463 = vpack.c.b16 %v1459, %v1458
          %1468 = vmatprep.subr.bf16.mxu0 0
          %1469 = vmatpush1.bf16.msra.mxu0 0
          %1470 = vmatprep.subr.bf16.mxu0 0
          %1471 = vmatpush1.bf16.msra.mxu0 0
          %1472 = vmatprep.subr.bf16.mxu0 0
          %1473 = vmatpush1.bf16.msra.mxu0 0
          %1474 = vmatprep.subr.bf16.mxu0 0
          %1475 = vmatpush1.bf16.msra.mxu0 0
          %1476 = vmatprep.subr.bf16.mxu0 0
          %1477 = vmatpush1.bf16.msra.mxu0 %v1463
          %1478 = vmatprep.subr.bf16.mxu0 0
          %1479 = vmatpush1.bf16.msra.mxu0 %v1462
          %1480 = vmatprep.subr.bf16.mxu0 0
          %1481 = vmatpush1.bf16.msra.mxu0 %v1461
          %1482 = vmatprep.subr.bf16.mxu0 0
          %1483 = vmatpush1.bf16.msra.mxu0 %v1460
          %1484 = vmatprep.subr.bf16.mxu0 0
          %1485 = vmatpush2.bf16.msra.mxu0 0
          %1486 = vmatprep.subr.bf16.mxu0 0
          %1487 = vmatpush2.bf16.msra.mxu0 0
          %1488 = vmatprep.subr.bf16.mxu0 0
          %1489 = vmatpush2.bf16.msra.mxu0 0
          %1490 = vmatprep.subr.bf16.mxu0 0
          %1491 = vmatpush2.bf16.msra.mxu0 0
          %1492 = vmatprep.subr.bf16.mxu0 0
          %1493 = vmatpush2.bf16.msra.mxu0 0
          %1494 = vmatprep.subr.bf16.mxu0 0
          %1495 = vmatpush2.bf16.msra.mxu0 0
          %1496 = vmatprep.subr.bf16.mxu0 0
          %1497 = vmatpush2.bf16.msra.mxu0 0
          %1498 = vmatprep.subr.bf16.mxu0 0
          %1499 = vmatpush2.bf16.msra.mxu0 0
          %1500 = vmatprep.mubr.bf16.mxu0 0
          %1501 = vmatmul.mubr.bf16.gmra.mxu0 %v629
          %v1502 = vpop.f32.mrf.mxu0
          %v1503 = vadd.f32 %v1442, %v1502
          %v1504 = vpop.f32.mrf.mxu0
          %v1505 = vpop.f32.mrf.mxu0
          %v1506 = vadd.f32 %v1442, %v1505
          %v1507 = vpop.f32.mrf.mxu0
          %1508 = vdwg.mxu0
          %s1509 = scalar_lea.vmem %s5, 96
          %v1510 = vld [vmem:[%s1509] sm:$0xf]
          %v1511 = vld [vmem:[%s1509 + $0x4] sm:$0xf]
          %v1512 = vld [vmem:[%s1509 + $0x8] sm:$0xf]
          %v1513 = vld [vmem:[%s1509 + $0xc] sm:$0xf]
          %v1514 = vld [vmem:[%s1509 + $0x10] sm:$0xf]
          %v1515 = vld [vmem:[%s1509 + $0x14] sm:$0xf]
          %v1516 = vld [vmem:[%s1509 + $0x18] sm:$0xf]
          %v1517 = vld [vmem:[%s1509 + $0x1c] sm:$0xf]
          %s1518 = scalar_lea.vmem %s6, 3
          %v1519 = vld [vmem:[%s1518] sm:$0x1]
          %v1521 = vlaneseq
          %v1522 = vshrl.u32 %v1521, 7
          %v1523 = vsub.s32 0, %v1522
          %v1524 = vrot.slane %v1519, %v1523
          %v1534 = vunpack.c.l.b16 %v1510
          %v1535 = vunpack.c.l.b16 %v1511
          %v1536 = vunpack.c.l.b16 %v1512
          %v1537 = vunpack.c.l.b16 %v1513
          %v1538 = vunpack.c.l.b16 %v1514
          %v1539 = vunpack.c.l.b16 %v1515
          %v1540 = vunpack.c.l.b16 %v1516
          %v1541 = vunpack.c.l.b16 %v1517
          %v1542 = vpack.c.b16 %v1535, %v1534
          %v1543 = vpack.c.b16 %v1537, %v1536
          %v1544 = vpack.c.b16 %v1539, %v1538
          %v1545 = vpack.c.b16 %v1541, %v1540
          %1550 = vmatprep.subr.bf16.mxu0 0
          %1551 = vmatpush1.bf16.msra.mxu0 0
          %1552 = vmatprep.subr.bf16.mxu0 0
          %1553 = vmatpush1.bf16.msra.mxu0 0
          %1554 = vmatprep.subr.bf16.mxu0 0
          %1555 = vmatpush1.bf16.msra.mxu0 0
          %1556 = vmatprep.subr.bf16.mxu0 0
          %1557 = vmatpush1.bf16.msra.mxu0 0
          %1558 = vmatprep.subr.bf16.mxu0 0
          %1559 = vmatpush1.bf16.msra.mxu0 %v1545
          %1560 = vmatprep.subr.bf16.mxu0 0
          %1561 = vmatpush1.bf16.msra.mxu0 %v1544
          %1562 = vmatprep.subr.bf16.mxu0 0
          %1563 = vmatpush1.bf16.msra.mxu0 %v1543
          %1564 = vmatprep.subr.bf16.mxu0 0
          %1565 = vmatpush1.bf16.msra.mxu0 %v1542
          %1566 = vmatprep.subr.bf16.mxu0 0
          %1567 = vmatpush2.bf16.msra.mxu0 0
          %1568 = vmatprep.subr.bf16.mxu0 0
          %1569 = vmatpush2.bf16.msra.mxu0 0
          %1570 = vmatprep.subr.bf16.mxu0 0
          %1571 = vmatpush2.bf16.msra.mxu0 0
          %1572 = vmatprep.subr.bf16.mxu0 0
          %1573 = vmatpush2.bf16.msra.mxu0 0
          %1574 = vmatprep.subr.bf16.mxu0 0
          %1575 = vmatpush2.bf16.msra.mxu0 0
          %1576 = vmatprep.subr.bf16.mxu0 0
          %1577 = vmatpush2.bf16.msra.mxu0 0
          %1578 = vmatprep.subr.bf16.mxu0 0
          %1579 = vmatpush2.bf16.msra.mxu0 0
          %1580 = vmatprep.subr.bf16.mxu0 0
          %1581 = vmatpush2.bf16.msra.mxu0 0
          %1582 = vmatprep.mubr.bf16.mxu0 0
          %1583 = vmatmul.mubr.bf16.gmra.mxu0 %v629
          %v1584 = vpop.f32.mrf.mxu0
          %v1585 = vadd.f32 %v1524, %v1584
          %v1586 = vpop.f32.mrf.mxu0
          %v1587 = vpop.f32.mrf.mxu0
          %v1588 = vadd.f32 %v1524, %v1587
          %v1589 = vpop.f32.mrf.mxu0
          %1590 = vdwg.mxu0
          %s1591 = scalar_lea.vmem %s7, 96
          %v1592 = vld [vmem:[%s1591] sm:$0xf]
          %v1593 = vld [vmem:[%s1591 + $0x4] sm:$0xf]
          %v1594 = vld [vmem:[%s1591 + $0x8] sm:$0xf]
          %v1595 = vld [vmem:[%s1591 + $0xc] sm:$0xf]
          %v1596 = vld [vmem:[%s1591 + $0x10] sm:$0xf]
          %v1597 = vld [vmem:[%s1591 + $0x14] sm:$0xf]
          %v1598 = vld [vmem:[%s1591 + $0x18] sm:$0xf]
          %v1599 = vld [vmem:[%s1591 + $0x1c] sm:$0xf]
          %s1600 = scalar_lea.vmem %s8, 3
          %v1601 = vld [vmem:[%s1600] sm:$0x1]
          %v1603 = vlaneseq
          %v1604 = vshrl.u32 %v1603, 7
          %v1605 = vsub.s32 0, %v1604
          %v1606 = vrot.slane %v1601, %v1605
          %v1616 = vunpack.c.l.b16 %v1592
          %v1617 = vunpack.c.l.b16 %v1593
          %v1618 = vunpack.c.l.b16 %v1594
          %v1619 = vunpack.c.l.b16 %v1595
          %v1620 = vunpack.c.l.b16 %v1596
          %v1621 = vunpack.c.l.b16 %v1597
          %v1622 = vunpack.c.l.b16 %v1598
          %v1623 = vunpack.c.l.b16 %v1599
          %v1624 = vpack.c.b16 %v1617, %v1616
          %v1625 = vpack.c.b16 %v1619, %v1618
          %v1626 = vpack.c.b16 %v1621, %v1620
          %v1627 = vpack.c.b16 %v1623, %v1622
          %1632 = vmatprep.subr.bf16.mxu0 0
          %1633 = vmatpush1.bf16.msra.mxu0 0
          %1634 = vmatprep.subr.bf16.mxu0 0
          %1635 = vmatpush1.bf16.msra.mxu0 0
          %1636 = vmatprep.subr.bf16.mxu0 0
          %1637 = vmatpush1.bf16.msra.mxu0 0
          %1638 = vmatprep.subr.bf16.mxu0 0
          %1639 = vmatpush1.bf16.msra.mxu0 0
          %1640 = vmatprep.subr.bf16.mxu0 0
          %1641 = vmatpush1.bf16.msra.mxu0 %v1627
          %1642 = vmatprep.subr.bf16.mxu0 0
          %1643 = vmatpush1.bf16.msra.mxu0 %v1626
          %1644 = vmatprep.subr.bf16.mxu0 0
          %1645 = vmatpush1.bf16.msra.mxu0 %v1625
          %1646 = vmatprep.subr.bf16.mxu0 0
          %1647 = vmatpush1.bf16.msra.mxu0 %v1624
          %1648 = vmatprep.subr.bf16.mxu0 0
          %1649 = vmatpush2.bf16.msra.mxu0 0
          %1650 = vmatprep.subr.bf16.mxu0 0
          %1651 = vmatpush2.bf16.msra.mxu0 0
          %1652 = vmatprep.subr.bf16.mxu0 0
          %1653 = vmatpush2.bf16.msra.mxu0 0
          %1654 = vmatprep.subr.bf16.mxu0 0
          %1655 = vmatpush2.bf16.msra.mxu0 0
          %1656 = vmatprep.subr.bf16.mxu0 0
          %1657 = vmatpush2.bf16.msra.mxu0 0
          %1658 = vmatprep.subr.bf16.mxu0 0
          %1659 = vmatpush2.bf16.msra.mxu0 0
          %1660 = vmatprep.subr.bf16.mxu0 0
          %1661 = vmatpush2.bf16.msra.mxu0 0
          %1662 = vmatprep.subr.bf16.mxu0 0
          %1663 = vmatpush2.bf16.msra.mxu0 0
          %1664 = vmatprep.mubr.bf16.mxu0 0
          %1665 = vmatmul.mubr.bf16.gmra.mxu0 %v629
          %v1666 = vpop.f32.mrf.mxu0
          %v1667 = vadd.f32 %v1606, %v1666
          %v1668 = vpop.f32.mrf.mxu0
          %v1669 = vpop.f32.mrf.mxu0
          %v1670 = vadd.f32 %v1606, %v1669
          %v1671 = vpop.f32.mrf.mxu0
          %1672 = vdwg.mxu0
          %v1673 = vmul.f32 %v1503, 0.25
          %v1674 = vmul.f32 %v1506, 0.25
          %v1675 = vpack.c.bf16 %v1674, %v1673
          %v1677 = vunpack.c.l.b16 %v1675
          %v1678 = vunpack.c.h.b16 %v1675
          %v1679 = vpack.c.b16 %v1677, %v1677
          %v1680 = vpack.c.b16 %v1678, %v1678
          %s1683 = scalar_lea.vmem [#allocation2], 24
          %1684 = vst.msk [vmem:[%s1683] sm:$0xf] %vm842, %v1679
          %1685 = vst.msk [vmem:[%s1683 + $0x4] sm:$0xf] %vm842, %v1680
          %v1686 = vpack.c.bf16 %v1588, %v1585
          %v1688 = vunpack.c.l.b16 %v1686
          %v1689 = vunpack.c.h.b16 %v1686
          %v1690 = vpack.c.b16 %v1688, %v1688
          %v1691 = vpack.c.b16 %v1689, %v1689
          %s1694 = scalar_lea.vmem [#allocation3], 24
          %1695 = vst.msk [vmem:[%s1694] sm:$0xf] %vm842, %v1690
          %1696 = vst.msk [vmem:[%s1694 + $0x4] sm:$0xf] %vm842, %v1691
          %v1697 = vpack.c.bf16 %v1670, %v1667
          %v1699 = vunpack.c.l.b16 %v1697
          %v1700 = vunpack.c.h.b16 %v1697
          %v1701 = vpack.c.b16 %v1699, %v1699
          %v1702 = vpack.c.b16 %v1700, %v1700
          %s1705 = scalar_lea.vmem [#allocation4], 24
          %1706 = vst.msk [vmem:[%s1705] sm:$0xf] %vm842, %v1701
          %1707 = vst.msk [vmem:[%s1705 + $0x4] sm:$0xf] %vm842, %v1702
        $region88: #{tpu_custom_call.1} parent=83 // pred_fallthru
          _
        %s1708 = smul.u32 %s35, 16
        %s1709 = sshra.s32 %s1708, 3
        %s1710 = sand.u32 %s1708, 7
        %s1711 = smul.addr %s1709, 4
        %s1712 = scalar_lea.vmem [#allocation2], %s1711
        %v1713 = vld [vmem:[%s1712] sm:$0xf]
        %v1714 = vld [vmem:[%s1712 + $0x4] sm:$0xf]
        %v1715 = vld [vmem:[#allocation3] sm:$0xf]
        %v1716 = vld [vmem:[#allocation3 + $0x4] sm:$0xf]
        %v1719 = vunpack.c.l.b16 %v1713
        %v1720 = vunpack.c.l.b16 %v1714
        %v1721 = vpack.c.b16 %v1720, %v1719
        %v1724 = vunpack.c.l.b16 %v1715
        %v1725 = vunpack.c.l.b16 %v1716
        %v1726 = vpack.c.b16 %v1725, %v1724
        %vm1727 = vcmask 130048
        %v1729 = vsel %vm1727, %v1721, 0
        %v1732 = vsel %vm1727, %v1726, 0
        %1734 = vmatprep.subr.bf16.mxu0 0
        %1735 = vmatpush1.bf16.xpose.msra.mxu0 0
        %1736 = vmatprep.subr.bf16.mxu0 0
        %1737 = vmatpush1.bf16.xpose.msra.mxu0 0
        %1738 = vmatprep.subr.bf16.mxu0 0
        %1739 = vmatpush1.bf16.xpose.msra.mxu0 0
        %1740 = vmatprep.subr.bf16.mxu0 0
        %1741 = vmatpush1.bf16.xpose.msra.mxu0 0
        %1742 = vmatprep.subr.bf16.mxu0 0
        %1743 = vmatpush1.bf16.xpose.msra.mxu0 0
        %1744 = vmatprep.subr.bf16.mxu0 0
        %1745 = vmatpush1.bf16.xpose.msra.mxu0 0
        %1746 = vmatprep.subr.bf16.mxu0 0
        %1747 = vmatpush1.bf16.xpose.msra.mxu0 0
        %1748 = vmatprep.subr.bf16.mxu0 0
        %1749 = vmatpush1.bf16.xpose.msra.mxu0 %v1732
        %1750 = vmatprep.subr.bf16.mxu0 0
        %1751 = vmatpush2.bf16.xpose.msra.mxu0 0
        %1752 = vmatprep.subr.bf16.mxu0 0
        %1753 = vmatpush2.bf16.xpose.msra.mxu0 0
        %1754 = vmatprep.subr.bf16.mxu0 0
        %1755 = vmatpush2.bf16.xpose.msra.mxu0 0
        %1756 = vmatprep.subr.bf16.mxu0 0
        %1757 = vmatpush2.bf16.xpose.msra.mxu0 0
        %1758 = vmatprep.subr.bf16.mxu0 0
        %1759 = vmatpush2.bf16.xpose.msra.mxu0 0
        %1760 = vmatprep.subr.bf16.mxu0 0
        %1761 = vmatpush2.bf16.xpose.msra.mxu0 0
        %1762 = vmatprep.subr.bf16.mxu0 0
        %1763 = vmatpush2.bf16.xpose.msra.mxu0 0
        %1764 = vmatprep.subr.bf16.mxu0 0
        %1765 = vmatpush2.bf16.xpose.msra.mxu0 0
        %1766 = vmatprep.mubr.bf16.mxu0 0
        %1767 = vmatmul.mubr.bf16.gmra.mxu0 %v1729
        %v1768 = vpop.f32.mrf.mxu0
        %v1769 = vadd.f32 0.0, %v1768
        %v1770 = vpop.f32.mrf.mxu0
        %v1771 = vpop.f32.mrf.mxu0
        %v1772 = vadd.f32 0.0, %v1771
        %v1773 = vpop.f32.mrf.mxu0
        %1774 = vdwg.mxu0
        %v1775 = vsel %vm1727, %v1769, -inf
        %1776 = vmax.xlane.f32.xlu0 %v1775
        %v1777 = vpop.xlane.xlu0 %1776
        %v1778 = vsel %vm1727, %v1772, -inf
        %1779 = vmax.xlane.f32.xlu0 %v1778
        %v1780 = vpop.xlane.xlu0 %1779
        %v1781 = vsub.f32 %v1769, %v1777
        %v1782 = vsub.f32 %v1772, %v1780
        %v1783 = vmul.f32 %v1781, 1.442695
        %v1784 = vpow.pop %v1783
        %v1785 = vmul.f32 %v1782, 1.442695
        %v1786 = vpow.pop %v1785
        %v1787 = vsel %vm1727, %v1784, 0.0
        %1788 = vadd.xlane.f32.xlu0 %v1787
        %v1789 = vpop.xlane.xlu0 %1788
        %v1790 = vsel %vm1727, %v1786, 0.0
        %1791 = vadd.xlane.f32.xlu0 %v1790
        %v1792 = vpop.xlane.xlu0 %1791
        %v1793 = vrcp.pop %v1789
        %v1794 = vrcp.pop %v1792
        %v1795 = vmul.f32 %v1784, %v1793
        %v1796 = vmul.f32 %v1786, %v1794
        %v1797 = vpack.c.bf16 %v1796, %v1795
        %v1798 = vld [vmem:[#allocation4] sm:$0xf]
        %v1799 = vld [vmem:[#allocation4 + $0x4] sm:$0xf]
        %v1802 = vunpack.c.l.b16 %v1798
        %v1803 = vunpack.c.l.b16 %v1799
        %v1804 = vpack.c.b16 %v1803, %v1802
        %v1807 = vsel %vm1727, %v1797, 0
        %1809 = vmatprep.subr.bf16.mxu0 0
        %1810 = vmatpush1.bf16.msra.mxu0 0
        %1811 = vmatprep.subr.bf16.mxu0 0
        %1812 = vmatpush1.bf16.msra.mxu0 0
        %1813 = vmatprep.subr.bf16.mxu0 0
        %1814 = vmatpush1.bf16.msra.mxu0 0
        %1815 = vmatprep.subr.bf16.mxu0 0
        %1816 = vmatpush1.bf16.msra.mxu0 0
        %1817 = vmatprep.subr.bf16.mxu0 0
        %1818 = vmatpush1.bf16.msra.mxu0 0
        %1819 = vmatprep.subr.bf16.mxu0 0
        %1820 = vmatpush1.bf16.msra.mxu0 0
        %1821 = vmatprep.subr.bf16.mxu0 0
        %1822 = vmatpush1.bf16.msra.mxu0 0
        %1823 = vmatprep.subr.bf16.mxu0 0
        %1824 = vmatpush1.bf16.msra.mxu0 %v1804
        %1825 = vmatprep.subr.bf16.mxu0 0
        %1826 = vmatpush2.bf16.msra.mxu0 0
        %1827 = vmatprep.subr.bf16.mxu0 0
        %1828 = vmatpush2.bf16.msra.mxu0 0
        %1829 = vmatprep.subr.bf16.mxu0 0
        %1830 = vmatpush2.bf16.msra.mxu0 0
        %1831 = vmatprep.subr.bf16.mxu0 0
        %1832 = vmatpush2.bf16.msra.mxu0 0
        %1833 = vmatprep.subr.bf16.mxu0 0
        %1834 = vmatpush2.bf16.msra.mxu0 0
        %1835 = vmatprep.subr.bf16.mxu0 0
        %1836 = vmatpush2.bf16.msra.mxu0 0
        %1837 = vmatprep.subr.bf16.mxu0 0
        %1838 = vmatpush2.bf16.msra.mxu0 0
        %1839 = vmatprep.subr.bf16.mxu0 0
        %1840 = vmatpush2.bf16.msra.mxu0 0
        %1841 = vmatprep.mubr.bf16.mxu0 0
        %1842 = vmatmul.mubr.bf16.gmra.mxu0 %v1807
        %v1843 = vpop.f32.mrf.mxu0
        %v1844 = vadd.f32 0.0, %v1843
        %v1845 = vpop.f32.mrf.mxu0
        %v1846 = vpop.f32.mrf.mxu0
        %v1847 = vadd.f32 0.0, %v1846
        %v1848 = vpop.f32.mrf.mxu0
        %1849 = vdwg.mxu0
        %v1850 = vpack.c.bf16 %v1847, %v1844
        %v1851 = vld [vmem:[%s9] sm:$0xf]
        %v1852 = vld [vmem:[%s9 + $0x4] sm:$0xf]
        %s1853 = sadd.s32 %s1709, 2
        %s1854 = smul.addr %s1853, 4
        %s1855 = scalar_lea.vmem [#allocation2], %s1854
        %v1856 = vld [vmem:[%s1855] sm:$0xf]
        %v1857 = vld [vmem:[%s1855 + $0x4] sm:$0xf]
        %s1858 = scalar_lea.vmem [#allocation3], 8
        %v1859 = vld [vmem:[%s1858] sm:$0xf]
        %v1860 = vld [vmem:[%s1858 + $0x4] sm:$0xf]
        %v1863 = vunpack.c.l.b16 %v1856
        %v1864 = vunpack.c.l.b16 %v1857
        %v1865 = vpack.c.b16 %v1864, %v1863
        %v1868 = vunpack.c.l.b16 %v1859
        %v1869 = vunpack.c.l.b16 %v1860
        %v1870 = vpack.c.b16 %v1869, %v1868
        %v1872 = vsel %vm1727, %v1865, 0
        %v1875 = vsel %vm1727, %v1870, 0
        %1877 = vmatprep.subr.bf16.mxu0 0
        %1878 = vmatpush1.bf16.xpose.msra.mxu0 0
        %1879 = vmatprep.subr.bf16.mxu0 0
        %1880 = vmatpush1.bf16.xpose.msra.mxu0 0
        %1881 = vmatprep.subr.bf16.mxu0 0
        %1882 = vmatpush1.bf16.xpose.msra.mxu0 0
        %1883 = vmatprep.subr.bf16.mxu0 0
        %1884 = vmatpush1.bf16.xpose.msra.mxu0 0
        %1885 = vmatprep.subr.bf16.mxu0 0
        %1886 = vmatpush1.bf16.xpose.msra.mxu0 0
        %1887 = vmatprep.subr.bf16.mxu0 0
        %1888 = vmatpush1.bf16.xpose.msra.mxu0 0
        %1889 = vmatprep.subr.bf16.mxu0 0
        %1890 = vmatpush1.bf16.xpose.msra.mxu0 0
        %1891 = vmatprep.subr.bf16.mxu0 0
        %1892 = vmatpush1.bf16.xpose.msra.mxu0 %v1875
        %1893 = vmatprep.subr.bf16.mxu0 0
        %1894 = vmatpush2.bf16.xpose.msra.mxu0 0
        %1895 = vmatprep.subr.bf16.mxu0 0
        %1896 = vmatpush2.bf16.xpose.msra.mxu0 0
        %1897 = vmatprep.subr.bf16.mxu0 0
        %1898 = vmatpush2.bf16.xpose.msra.mxu0 0
        %1899 = vmatprep.subr.bf16.mxu0 0
        %1900 = vmatpush2.bf16.xpose.msra.mxu0 0
        %1901 = vmatprep.subr.bf16.mxu0 0
        %1902 = vmatpush2.bf16.xpose.msra.mxu0 0
        %1903 = vmatprep.subr.bf16.mxu0 0
        %1904 = vmatpush2.bf16.xpose.msra.mxu0 0
        %1905 = vmatprep.subr.bf16.mxu0 0
        %1906 = vmatpush2.bf16.xpose.msra.mxu0 0
        %1907 = vmatprep.subr.bf16.mxu0 0
        %1908 = vmatpush2.bf16.xpose.msra.mxu0 0
        %1909 = vmatprep.mubr.bf16.mxu0 0
        %1910 = vmatmul.mubr.bf16.gmra.mxu0 %v1872
        %v1911 = vpop.f32.mrf.mxu0
        %v1912 = vadd.f32 0.0, %v1911
        %v1913 = vpop.f32.mrf.mxu0
        %v1914 = vpop.f32.mrf.mxu0
        %v1915 = vadd.f32 0.0, %v1914
        %v1916 = vpop.f32.mrf.mxu0
        %1917 = vdwg.mxu0
        %v1918 = vsel %vm1727, %v1912, -inf
        %1919 = vmax.xlane.f32.xlu0 %v1918
        %v1920 = vpop.xlane.xlu0 %1919
        %v1921 = vsel %vm1727, %v1915, -inf
        %1922 = vmax.xlane.f32.xlu0 %v1921
        %v1923 = vpop.xlane.xlu0 %1922
        %v1924 = vsub.f32 %v1912, %v1920
        %v1925 = vsub.f32 %v1915, %v1923
        %v1926 = vmul.f32 %v1924, 1.442695
        %v1927 = vpow.pop %v1926
        %v1928 = vmul.f32 %v1925, 1.442695
        %v1929 = vpow.pop %v1928
        %v1930 = vsel %vm1727, %v1927, 0.0
        %1931 = vadd.xlane.f32.xlu0 %v1930
        %v1932 = vpop.xlane.xlu0 %1931
        %v1933 = vsel %vm1727, %v1929, 0.0
        %1934 = vadd.xlane.f32.xlu0 %v1933
        %v1935 = vpop.xlane.xlu0 %1934
        %v1936 = vrcp.pop %v1932
        %v1937 = vrcp.pop %v1935
        %v1938 = vmul.f32 %v1927, %v1936
        %v1939 = vmul.f32 %v1929, %v1937
        %v1940 = vpack.c.bf16 %v1939, %v1938
        %s1941 = scalar_lea.vmem [#allocation4], 8
        %v1942 = vld [vmem:[%s1941] sm:$0xf]
        %v1943 = vld [vmem:[%s1941 + $0x4] sm:$0xf]
        %v1946 = vunpack.c.l.b16 %v1942
        %v1947 = vunpack.c.l.b16 %v1943
        %v1948 = vpack.c.b16 %v1947, %v1946
        %v1951 = vsel %vm1727, %v1940, 0
        %1953 = vmatprep.subr.bf16.mxu0 0
        %1954 = vmatpush1.bf16.msra.mxu0 0
        %1955 = vmatprep.subr.bf16.mxu0 0
        %1956 = vmatpush1.bf16.msra.mxu0 0
        %1957 = vmatprep.subr.bf16.mxu0 0
        %1958 = vmatpush1.bf16.msra.mxu0 0
        %1959 = vmatprep.subr.bf16.mxu0 0
        %1960 = vmatpush1.bf16.msra.mxu0 0
        %1961 = vmatprep.subr.bf16.mxu0 0
        %1962 = vmatpush1.bf16.msra.mxu0 0
        %1963 = vmatprep.subr.bf16.mxu0 0
        %1964 = vmatpush1.bf16.msra.mxu0 0
        %1965 = vmatprep.subr.bf16.mxu0 0
        %1966 = vmatpush1.bf16.msra.mxu0 0
        %1967 = vmatprep.subr.bf16.mxu0 0
        %1968 = vmatpush1.bf16.msra.mxu0 %v1948
        %1969 = vmatprep.subr.bf16.mxu0 0
        %1970 = vmatpush2.bf16.msra.mxu0 0
        %1971 = vmatprep.subr.bf16.mxu0 0
        %1972 = vmatpush2.bf16.msra.mxu0 0
        %1973 = vmatprep.subr.bf16.mxu0 0
        %1974 = vmatpush2.bf16.msra.mxu0 0
        %1975 = vmatprep.subr.bf16.mxu0 0
        %1976 = vmatpush2.bf16.msra.mxu0 0
        %1977 = vmatprep.subr.bf16.mxu0 0
        %1978 = vmatpush2.bf16.msra.mxu0 0
        %1979 = vmatprep.subr.bf16.mxu0 0
        %1980 = vmatpush2.bf16.msra.mxu0 0
        %1981 = vmatprep.subr.bf16.mxu0 0
        %1982 = vmatpush2.bf16.msra.mxu0 0
        %1983 = vmatprep.subr.bf16.mxu0 0
        %1984 = vmatpush2.bf16.msra.mxu0 0
        %1985 = vmatprep.mubr.bf16.mxu0 0
        %1986 = vmatmul.mubr.bf16.gmra.mxu0 %v1951
        %v1987 = vpop.f32.mrf.mxu0
        %v1988 = vadd.f32 0.0, %v1987
        %v1989 = vpop.f32.mrf.mxu0
        %v1990 = vpop.f32.mrf.mxu0
        %v1991 = vadd.f32 0.0, %v1990
        %v1992 = vpop.f32.mrf.mxu0
        %1993 = vdwg.mxu0
        %v1994 = vpack.c.bf16 %v1991, %v1988
        %s1995 = scalar_lea.vmem %s9, 8
        %v1996 = vld [vmem:[%s1995] sm:$0xf]
        %v1997 = vld [vmem:[%s1995 + $0x4] sm:$0xf]
        %v2000 = vunpack.c.l.b16 %v1996
        %v2001 = vunpack.c.l.b16 %v1997
        %v2002 = vpack.c.b16 %v2001, %v2000
        %v2005 = vsel %vm1727, %v1994, 0
        %2007 = vmatprep.subr.bf16.mxu0 0
        %2008 = vmatpush1.bf16.msra.mxu0 0
        %2009 = vmatprep.subr.bf16.mxu0 0
        %2010 = vmatpush1.bf16.msra.mxu0 0
        %2011 = vmatprep.subr.bf16.mxu0 0
        %2012 = vmatpush1.bf16.msra.mxu0 0
        %2013 = vmatprep.subr.bf16.mxu0 0
        %2014 = vmatpush1.bf16.msra.mxu0 0
        %2015 = vmatprep.subr.bf16.mxu0 0
        %2016 = vmatpush1.bf16.msra.mxu0 0
        %2017 = vmatprep.subr.bf16.mxu0 0
        %2018 = vmatpush1.bf16.msra.mxu0 0
        %2019 = vmatprep.subr.bf16.mxu0 0
        %2020 = vmatpush1.bf16.msra.mxu0 0
        %2021 = vmatprep.subr.bf16.mxu0 0
        %2022 = vmatpush1.bf16.msra.mxu0 %v2002
        %2023 = vmatprep.subr.bf16.mxu0 0
        %2024 = vmatpush2.bf16.msra.mxu0 0
        %2025 = vmatprep.subr.bf16.mxu0 0
        %2026 = vmatpush2.bf16.msra.mxu0 0
        %2027 = vmatprep.subr.bf16.mxu0 0
        %2028 = vmatpush2.bf16.msra.mxu0 0
        %2029 = vmatprep.subr.bf16.mxu0 0
        %2030 = vmatpush2.bf16.msra.mxu0 0
        %2031 = vmatprep.subr.bf16.mxu0 0
        %2032 = vmatpush2.bf16.msra.mxu0 0
        %2033 = vmatprep.subr.bf16.mxu0 0
        %2034 = vmatpush2.bf16.msra.mxu0 0
        %2035 = vmatprep.subr.bf16.mxu0 0
        %2036 = vmatpush2.bf16.msra.mxu0 0
        %2037 = vmatprep.subr.bf16.mxu0 0
        %2038 = vmatpush2.bf16.msra.mxu0 0
        %2039 = vmatprep.mubr.bf16.mxu0 0
        %2040 = vmatmul.mubr.bf16.gmra.mxu0 %v2005
        %v2041 = vpop.f32.mrf.mxu0
        %v2042 = vadd.f32 0.0, %v2041
        %v2043 = vpop.f32.mrf.mxu0
        %v2044 = vpop.f32.mrf.mxu0
        %v2045 = vadd.f32 0.0, %v2044
        %v2046 = vpop.f32.mrf.mxu0
        %2047 = vdwg.mxu0
        %v2050 = vunpack.c.l.b16 %v1851
        %v2051 = vunpack.c.l.b16 %v1852
        %v2052 = vpack.c.b16 %v2051, %v2050
        %v2055 = vsel %vm1727, %v1850, 0
        %2057 = vmatprep.subr.bf16.mxu0 0
        %2058 = vmatpush1.bf16.msra.mxu0 0
        %2059 = vmatprep.subr.bf16.mxu0 0
        %2060 = vmatpush1.bf16.msra.mxu0 0
        %2061 = vmatprep.subr.bf16.mxu0 0
        %2062 = vmatpush1.bf16.msra.mxu0 0
        %2063 = vmatprep.subr.bf16.mxu0 0
        %2064 = vmatpush1.bf16.msra.mxu0 0
        %2065 = vmatprep.subr.bf16.mxu0 0
        %2066 = vmatpush1.bf16.msra.mxu0 0
        %2067 = vmatprep.subr.bf16.mxu0 0
        %2068 = vmatpush1.bf16.msra.mxu0 0
        %2069 = vmatprep.subr.bf16.mxu0 0
        %2070 = vmatpush1.bf16.msra.mxu0 0
        %2071 = vmatprep.subr.bf16.mxu0 0
        %2072 = vmatpush1.bf16.msra.mxu0 %v2052
        %2073 = vmatprep.subr.bf16.mxu0 0
        %2074 = vmatpush2.bf16.msra.mxu0 0
        %2075 = vmatprep.subr.bf16.mxu0 0
        %2076 = vmatpush2.bf16.msra.mxu0 0
        %2077 = vmatprep.subr.bf16.mxu0 0
        %2078 = vmatpush2.bf16.msra.mxu0 0
        %2079 = vmatprep.subr.bf16.mxu0 0
        %2080 = vmatpush2.bf16.msra.mxu0 0
        %2081 = vmatprep.subr.bf16.mxu0 0
        %2082 = vmatpush2.bf16.msra.mxu0 0
        %2083 = vmatprep.subr.bf16.mxu0 0
        %2084 = vmatpush2.bf16.msra.mxu0 0
        %2085 = vmatprep.subr.bf16.mxu0 0
        %2086 = vmatpush2.bf16.msra.mxu0 0
        %2087 = vmatprep.subr.bf16.mxu0 0
        %2088 = vmatpush2.bf16.msra.mxu0 0
        %2089 = vmatprep.mubr.bf16.mxu0 0
        %2090 = vmatmul.mubr.bf16.gmra.mxu0 %v2055
        %v2091 = vpop.f32.mrf.mxu0
        %v2092 = vadd.f32 %v2042, %v2091
        %v2093 = vpop.f32.mrf.mxu0
        %v2094 = vpop.f32.mrf.mxu0
        %v2095 = vadd.f32 %v2045, %v2094
        %v2096 = vpop.f32.mrf.mxu0
        %2097 = vdwg.mxu0
        %s2098 = sadd.s32 %s1709, 4
        %s2099 = smul.addr %s2098, 4
        %s2100 = scalar_lea.vmem [#allocation2], %s2099
        %v2101 = vld [vmem:[%s2100] sm:$0xf]
        %v2102 = vld [vmem:[%s2100 + $0x4] sm:$0xf]
        %s2103 = scalar_lea.vmem [#allocation3], 16
        %v2104 = vld [vmem:[%s2103] sm:$0xf]
        %v2105 = vld [vmem:[%s2103 + $0x4] sm:$0xf]
        %v2108 = vunpack.c.l.b16 %v2101
        %v2109 = vunpack.c.l.b16 %v2102
        %v2110 = vpack.c.b16 %v2109, %v2108
        %v2113 = vunpack.c.l.b16 %v2104
        %v2114 = vunpack.c.l.b16 %v2105
        %v2115 = vpack.c.b16 %v2114, %v2113
        %v2117 = vsel %vm1727, %v2110, 0
        %v2120 = vsel %vm1727, %v2115, 0
        %2122 = vmatprep.subr.bf16.mxu0 0
        %2123 = vmatpush1.bf16.xpose.msra.mxu0 0
        %2124 = vmatprep.subr.bf16.mxu0 0
        %2125 = vmatpush1.bf16.xpose.msra.mxu0 0
        %2126 = vmatprep.subr.bf16.mxu0 0
        %2127 = vmatpush1.bf16.xpose.msra.mxu0 0
        %2128 = vmatprep.subr.bf16.mxu0 0
        %2129 = vmatpush1.bf16.xpose.msra.mxu0 0
        %2130 = vmatprep.subr.bf16.mxu0 0
        %2131 = vmatpush1.bf16.xpose.msra.mxu0 0
        %2132 = vmatprep.subr.bf16.mxu0 0
        %2133 = vmatpush1.bf16.xpose.msra.mxu0 0
        %2134 = vmatprep.subr.bf16.mxu0 0
        %2135 = vmatpush1.bf16.xpose.msra.mxu0 0
        %2136 = vmatprep.subr.bf16.mxu0 0
        %2137 = vmatpush1.bf16.xpose.msra.mxu0 %v2120
        %2138 = vmatprep.subr.bf16.mxu0 0
        %2139 = vmatpush2.bf16.xpose.msra.mxu0 0
        %2140 = vmatprep.subr.bf16.mxu0 0
        %2141 = vmatpush2.bf16.xpose.msra.mxu0 0
        %2142 = vmatprep.subr.bf16.mxu0 0
        %2143 = vmatpush2.bf16.xpose.msra.mxu0 0
        %2144 = vmatprep.subr.bf16.mxu0 0
        %2145 = vmatpush2.bf16.xpose.msra.mxu0 0
        %2146 = vmatprep.subr.bf16.mxu0 0
        %2147 = vmatpush2.bf16.xpose.msra.mxu0 0
        %2148 = vmatprep.subr.bf16.mxu0 0
        %2149 = vmatpush2.bf16.xpose.msra.mxu0 0
        %2150 = vmatprep.subr.bf16.mxu0 0
        %2151 = vmatpush2.bf16.xpose.msra.mxu0 0
        %2152 = vmatprep.subr.bf16.mxu0 0
        %2153 = vmatpush2.bf16.xpose.msra.mxu0 0
        %2154 = vmatprep.mubr.bf16.mxu0 0
        %2155 = vmatmul.mubr.bf16.gmra.mxu0 %v2117
        %v2156 = vpop.f32.mrf.mxu0
        %v2157 = vadd.f32 0.0, %v2156
        %v2158 = vpop.f32.mrf.mxu0
        %v2159 = vpop.f32.mrf.mxu0
        %v2160 = vadd.f32 0.0, %v2159
        %v2161 = vpop.f32.mrf.mxu0
        %2162 = vdwg.mxu0
        %v2163 = vsel %vm1727, %v2157, -inf
        %2164 = vmax.xlane.f32.xlu0 %v2163
        %v2165 = vpop.xlane.xlu0 %2164
        %v2166 = vsel %vm1727, %v2160, -inf
        %2167 = vmax.xlane.f32.xlu0 %v2166
        %v2168 = vpop.xlane.xlu0 %2167
        %v2169 = vsub.f32 %v2157, %v2165
        %v2170 = vsub.f32 %v2160, %v2168
        %v2171 = vmul.f32 %v2169, 1.442695
        %v2172 = vpow.pop %v2171
        %v2173 = vmul.f32 %v2170, 1.442695
        %v2174 = vpow.pop %v2173
        %v2175 = vsel %vm1727, %v2172, 0.0
        %2176 = vadd.xlane.f32.xlu0 %v2175
        %v2177 = vpop.xlane.xlu0 %2176
        %v2178 = vsel %vm1727, %v2174, 0.0
        %2179 = vadd.xlane.f32.xlu0 %v2178
        %v2180 = vpop.xlane.xlu0 %2179
        %v2181 = vrcp.pop %v2177
        %v2182 = vrcp.pop %v2180
        %v2183 = vmul.f32 %v2172, %v2181
        %v2184 = vmul.f32 %v2174, %v2182
        %v2185 = vpack.c.bf16 %v2184, %v2183
        %s2186 = scalar_lea.vmem [#allocation4], 16
        %v2187 = vld [vmem:[%s2186] sm:$0xf]
        %v2188 = vld [vmem:[%s2186 + $0x4] sm:$0xf]
        %v2191 = vunpack.c.l.b16 %v2187
        %v2192 = vunpack.c.l.b16 %v2188
        %v2193 = vpack.c.b16 %v2192, %v2191
        %v2196 = vsel %vm1727, %v2185, 0
        %2198 = vmatprep.subr.bf16.mxu0 0
        %2199 = vmatpush1.bf16.msra.mxu0 0
        %2200 = vmatprep.subr.bf16.mxu0 0
        %2201 = vmatpush1.bf16.msra.mxu0 0
        %2202 = vmatprep.subr.bf16.mxu0 0
        %2203 = vmatpush1.bf16.msra.mxu0 0
        %2204 = vmatprep.subr.bf16.mxu0 0
        %2205 = vmatpush1.bf16.msra.mxu0 0
        %2206 = vmatprep.subr.bf16.mxu0 0
        %2207 = vmatpush1.bf16.msra.mxu0 0
        %2208 = vmatprep.subr.bf16.mxu0 0
        %2209 = vmatpush1.bf16.msra.mxu0 0
        %2210 = vmatprep.subr.bf16.mxu0 0
        %2211 = vmatpush1.bf16.msra.mxu0 0
        %2212 = vmatprep.subr.bf16.mxu0 0
        %2213 = vmatpush1.bf16.msra.mxu0 %v2193
        %2214 = vmatprep.subr.bf16.mxu0 0
        %2215 = vmatpush2.bf16.msra.mxu0 0
        %2216 = vmatprep.subr.bf16.mxu0 0
        %2217 = vmatpush2.bf16.msra.mxu0 0
        %2218 = vmatprep.subr.bf16.mxu0 0
        %2219 = vmatpush2.bf16.msra.mxu0 0
        %2220 = vmatprep.subr.bf16.mxu0 0
        %2221 = vmatpush2.bf16.msra.mxu0 0
        %2222 = vmatprep.subr.bf16.mxu0 0
        %2223 = vmatpush2.bf16.msra.mxu0 0
        %2224 = vmatprep.subr.bf16.mxu0 0
        %2225 = vmatpush2.bf16.msra.mxu0 0
        %2226 = vmatprep.subr.bf16.mxu0 0
        %2227 = vmatpush2.bf16.msra.mxu0 0
        %2228 = vmatprep.subr.bf16.mxu0 0
        %2229 = vmatpush2.bf16.msra.mxu0 0
        %2230 = vmatprep.mubr.bf16.mxu0 0
        %2231 = vmatmul.mubr.bf16.gmra.mxu0 %v2196
        %v2232 = vpop.f32.mrf.mxu0
        %v2233 = vadd.f32 0.0, %v2232
        %v2234 = vpop.f32.mrf.mxu0
        %v2235 = vpop.f32.mrf.mxu0
        %v2236 = vadd.f32 0.0, %v2235
        %v2237 = vpop.f32.mrf.mxu0
        %2238 = vdwg.mxu0
        %v2239 = vpack.c.bf16 %v2236, %v2233
        %s2240 = scalar_lea.vmem %s9, 16
        %v2241 = vld [vmem:[%s2240] sm:$0xf]
        %v2242 = vld [vmem:[%s2240 + $0x4] sm:$0xf]
        %v2245 = vunpack.c.l.b16 %v2241
        %v2246 = vunpack.c.l.b16 %v2242
        %v2247 = vpack.c.b16 %v2246, %v2245
        %v2250 = vsel %vm1727, %v2239, 0
        %2252 = vmatprep.subr.bf16.mxu0 0
        %2253 = vmatpush1.bf16.msra.mxu0 0
        %2254 = vmatprep.subr.bf16.mxu0 0
        %2255 = vmatpush1.bf16.msra.mxu0 0
        %2256 = vmatprep.subr.bf16.mxu0 0
        %2257 = vmatpush1.bf16.msra.mxu0 0
        %2258 = vmatprep.subr.bf16.mxu0 0
        %2259 = vmatpush1.bf16.msra.mxu0 0
        %2260 = vmatprep.subr.bf16.mxu0 0
        %2261 = vmatpush1.bf16.msra.mxu0 0
        %2262 = vmatprep.subr.bf16.mxu0 0
        %2263 = vmatpush1.bf16.msra.mxu0 0
        %2264 = vmatprep.subr.bf16.mxu0 0
        %2265 = vmatpush1.bf16.msra.mxu0 0
        %2266 = vmatprep.subr.bf16.mxu0 0
        %2267 = vmatpush1.bf16.msra.mxu0 %v2247
        %2268 = vmatprep.subr.bf16.mxu0 0
        %2269 = vmatpush2.bf16.msra.mxu0 0
        %2270 = vmatprep.subr.bf16.mxu0 0
        %2271 = vmatpush2.bf16.msra.mxu0 0
        %2272 = vmatprep.subr.bf16.mxu0 0
        %2273 = vmatpush2.bf16.msra.mxu0 0
        %2274 = vmatprep.subr.bf16.mxu0 0
        %2275 = vmatpush2.bf16.msra.mxu0 0
        %2276 = vmatprep.subr.bf16.mxu0 0
        %2277 = vmatpush2.bf16.msra.mxu0 0
        %2278 = vmatprep.subr.bf16.mxu0 0
        %2279 = vmatpush2.bf16.msra.mxu0 0
        %2280 = vmatprep.subr.bf16.mxu0 0
        %2281 = vmatpush2.bf16.msra.mxu0 0
        %2282 = vmatprep.subr.bf16.mxu0 0
        %2283 = vmatpush2.bf16.msra.mxu0 0
        %2284 = vmatprep.mubr.bf16.mxu0 0
        %2285 = vmatmul.mubr.bf16.gmra.mxu0 %v2250
        %v2286 = vpop.f32.mrf.mxu0
        %v2287 = vadd.f32 0.0, %v2286
        %v2288 = vpop.f32.mrf.mxu0
        %v2289 = vpop.f32.mrf.mxu0
        %v2290 = vadd.f32 0.0, %v2289
        %v2291 = vpop.f32.mrf.mxu0
        %2292 = vdwg.mxu0
        %v2293 = vadd.f32 %v2092, %v2287
        %v2294 = vadd.f32 %v2095, %v2290
        %s2295 = sadd.s32 %s1709, 6
        %s2296 = smul.addr %s2295, 4
        %s2297 = scalar_lea.vmem [#allocation2], %s2296
        %v2298 = vld [vmem:[%s2297] sm:$0xf]
        %v2299 = vld [vmem:[%s2297 + $0x4] sm:$0xf]
        %s2300 = scalar_lea.vmem [#allocation3], 24
        %v2301 = vld [vmem:[%s2300] sm:$0xf]
        %v2302 = vld [vmem:[%s2300 + $0x4] sm:$0xf]
        %v2305 = vunpack.c.l.b16 %v2298
        %v2306 = vunpack.c.l.b16 %v2299
        %v2307 = vpack.c.b16 %v2306, %v2305
        %v2310 = vunpack.c.l.b16 %v2301
        %v2311 = vunpack.c.l.b16 %v2302
        %v2312 = vpack.c.b16 %v2311, %v2310
        %v2314 = vsel %vm1727, %v2307, 0
        %v2317 = vsel %vm1727, %v2312, 0
        %2319 = vmatprep.subr.bf16.mxu0 0
        %2320 = vmatpush1.bf16.xpose.msra.mxu0 0
        %2321 = vmatprep.subr.bf16.mxu0 0
        %2322 = vmatpush1.bf16.xpose.msra.mxu0 0
        %2323 = vmatprep.subr.bf16.mxu0 0
        %2324 = vmatpush1.bf16.xpose.msra.mxu0 0
        %2325 = vmatprep.subr.bf16.mxu0 0
        %2326 = vmatpush1.bf16.xpose.msra.mxu0 0
        %2327 = vmatprep.subr.bf16.mxu0 0
        %2328 = vmatpush1.bf16.xpose.msra.mxu0 0
        %2329 = vmatprep.subr.bf16.mxu0 0
        %2330 = vmatpush1.bf16.xpose.msra.mxu0 0
        %2331 = vmatprep.subr.bf16.mxu0 0
        %2332 = vmatpush1.bf16.xpose.msra.mxu0 0
        %2333 = vmatprep.subr.bf16.mxu0 0
        %2334 = vmatpush1.bf16.xpose.msra.mxu0 %v2317
        %2335 = vmatprep.subr.bf16.mxu0 0
        %2336 = vmatpush2.bf16.xpose.msra.mxu0 0
        %2337 = vmatprep.subr.bf16.mxu0 0
        %2338 = vmatpush2.bf16.xpose.msra.mxu0 0
        %2339 = vmatprep.subr.bf16.mxu0 0
        %2340 = vmatpush2.bf16.xpose.msra.mxu0 0
        %2341 = vmatprep.subr.bf16.mxu0 0
        %2342 = vmatpush2.bf16.xpose.msra.mxu0 0
        %2343 = vmatprep.subr.bf16.mxu0 0
        %2344 = vmatpush2.bf16.xpose.msra.mxu0 0
        %2345 = vmatprep.subr.bf16.mxu0 0
        %2346 = vmatpush2.bf16.xpose.msra.mxu0 0
        %2347 = vmatprep.subr.bf16.mxu0 0
        %2348 = vmatpush2.bf16.xpose.msra.mxu0 0
        %2349 = vmatprep.subr.bf16.mxu0 0
        %2350 = vmatpush2.bf16.xpose.msra.mxu0 0
        %2351 = vmatprep.mubr.bf16.mxu0 0
        %2352 = vmatmul.mubr.bf16.gmra.mxu0 %v2314
        %v2353 = vpop.f32.mrf.mxu0
        %v2354 = vadd.f32 0.0, %v2353
        %v2355 = vpop.f32.mrf.mxu0
        %v2356 = vpop.f32.mrf.mxu0
        %v2357 = vadd.f32 0.0, %v2356
        %v2358 = vpop.f32.mrf.mxu0
        %2359 = vdwg.mxu0
        %v2360 = vsel %vm1727, %v2354, -inf
        %2361 = vmax.xlane.f32.xlu0 %v2360
        %v2362 = vpop.xlane.xlu0 %2361
        %v2363 = vsel %vm1727, %v2357, -inf
        %2364 = vmax.xlane.f32.xlu0 %v2363
        %v2365 = vpop.xlane.xlu0 %2364
        %v2366 = vsub.f32 %v2354, %v2362
        %v2367 = vsub.f32 %v2357, %v2365
        %v2368 = vmul.f32 %v2366, 1.442695
        %v2369 = vpow.pop %v2368
        %v2370 = vmul.f32 %v2367, 1.442695
        %v2371 = vpow.pop %v2370
        %v2372 = vsel %vm1727, %v2369, 0.0
        %2373 = vadd.xlane.f32.xlu0 %v2372
        %v2374 = vpop.xlane.xlu0 %2373
        %v2375 = vsel %vm1727, %v2371, 0.0
        %2376 = vadd.xlane.f32.xlu0 %v2375
        %v2377 = vpop.xlane.xlu0 %2376
        %v2378 = vrcp.pop %v2374
        %v2379 = vrcp.pop %v2377
        %v2380 = vmul.f32 %v2369, %v2378
        %v2381 = vmul.f32 %v2371, %v2379
        %v2382 = vpack.c.bf16 %v2381, %v2380
        %s2383 = scalar_lea.vmem [#allocation4], 24
        %v2384 = vld [vmem:[%s2383] sm:$0xf]
        %v2385 = vld [vmem:[%s2383 + $0x4] sm:$0xf]
        %v2388 = vunpack.c.l.b16 %v2384
        %v2389 = vunpack.c.l.b16 %v2385
        %v2390 = vpack.c.b16 %v2389, %v2388
        %v2393 = vsel %vm1727, %v2382, 0
        %2395 = vmatprep.subr.bf16.mxu0 0
        %2396 = vmatpush1.bf16.msra.mxu0 0
        %2397 = vmatprep.subr.bf16.mxu0 0
        %2398 = vmatpush1.bf16.msra.mxu0 0
        %2399 = vmatprep.subr.bf16.mxu0 0
        %2400 = vmatpush1.bf16.msra.mxu0 0
        %2401 = vmatprep.subr.bf16.mxu0 0
        %2402 = vmatpush1.bf16.msra.mxu0 0
        %2403 = vmatprep.subr.bf16.mxu0 0
        %2404 = vmatpush1.bf16.msra.mxu0 0
        %2405 = vmatprep.subr.bf16.mxu0 0
        %2406 = vmatpush1.bf16.msra.mxu0 0
        %2407 = vmatprep.subr.bf16.mxu0 0
        %2408 = vmatpush1.bf16.msra.mxu0 0
        %2409 = vmatprep.subr.bf16.mxu0 0
        %2410 = vmatpush1.bf16.msra.mxu0 %v2390
        %2411 = vmatprep.subr.bf16.mxu0 0
        %2412 = vmatpush2.bf16.msra.mxu0 0
        %2413 = vmatprep.subr.bf16.mxu0 0
        %2414 = vmatpush2.bf16.msra.mxu0 0
        %2415 = vmatprep.subr.bf16.mxu0 0
        %2416 = vmatpush2.bf16.msra.mxu0 0
        %2417 = vmatprep.subr.bf16.mxu0 0
        %2418 = vmatpush2.bf16.msra.mxu0 0
        %2419 = vmatprep.subr.bf16.mxu0 0
        %2420 = vmatpush2.bf16.msra.mxu0 0
        %2421 = vmatprep.subr.bf16.mxu0 0
        %2422 = vmatpush2.bf16.msra.mxu0 0
        %2423 = vmatprep.subr.bf16.mxu0 0
        %2424 = vmatpush2.bf16.msra.mxu0 0
        %2425 = vmatprep.subr.bf16.mxu0 0
        %2426 = vmatpush2.bf16.msra.mxu0 0
        %2427 = vmatprep.mubr.bf16.mxu0 0
        %2428 = vmatmul.mubr.bf16.gmra.mxu0 %v2393
        %v2429 = vpop.f32.mrf.mxu0
        %v2430 = vadd.f32 0.0, %v2429
        %v2431 = vpop.f32.mrf.mxu0
        %v2432 = vpop.f32.mrf.mxu0
        %v2433 = vadd.f32 0.0, %v2432
        %v2434 = vpop.f32.mrf.mxu0
        %2435 = vdwg.mxu0
        %v2436 = vpack.c.bf16 %v2433, %v2430
        %s2437 = scalar_lea.vmem %s9, 24
        %v2438 = vld [vmem:[%s2437] sm:$0xf]
        %v2439 = vld [vmem:[%s2437 + $0x4] sm:$0xf]
        %v2442 = vunpack.c.l.b16 %v2438
        %v2443 = vunpack.c.l.b16 %v2439
        %v2444 = vpack.c.b16 %v2443, %v2442
        %v2447 = vsel %vm1727, %v2436, 0
        %2449 = vmatprep.subr.bf16.mxu0 0
        %2450 = vmatpush1.bf16.msra.mxu0 0
        %2451 = vmatprep.subr.bf16.mxu0 0
        %2452 = vmatpush1.bf16.msra.mxu0 0
        %2453 = vmatprep.subr.bf16.mxu0 0
        %2454 = vmatpush1.bf16.msra.mxu0 0
        %2455 = vmatprep.subr.bf16.mxu0 0
        %2456 = vmatpush1.bf16.msra.mxu0 0
        %2457 = vmatprep.subr.bf16.mxu0 0
        %2458 = vmatpush1.bf16.msra.mxu0 0
        %2459 = vmatprep.subr.bf16.mxu0 0
        %2460 = vmatpush1.bf16.msra.mxu0 0
        %2461 = vmatprep.subr.bf16.mxu0 0
        %2462 = vmatpush1.bf16.msra.mxu0 0
        %2463 = vmatprep.subr.bf16.mxu0 0
        %2464 = vmatpush1.bf16.msra.mxu0 %v2444
        %2465 = vmatprep.subr.bf16.mxu0 0
        %2466 = vmatpush2.bf16.msra.mxu0 0
        %2467 = vmatprep.subr.bf16.mxu0 0
        %2468 = vmatpush2.bf16.msra.mxu0 0
        %2469 = vmatprep.subr.bf16.mxu0 0
        %2470 = vmatpush2.bf16.msra.mxu0 0
        %2471 = vmatprep.subr.bf16.mxu0 0
        %2472 = vmatpush2.bf16.msra.mxu0 0
        %2473 = vmatprep.subr.bf16.mxu0 0
        %2474 = vmatpush2.bf16.msra.mxu0 0
        %2475 = vmatprep.subr.bf16.mxu0 0
        %2476 = vmatpush2.bf16.msra.mxu0 0
        %2477 = vmatprep.subr.bf16.mxu0 0
        %2478 = vmatpush2.bf16.msra.mxu0 0
        %2479 = vmatprep.subr.bf16.mxu0 0
        %2480 = vmatpush2.bf16.msra.mxu0 0
        %2481 = vmatprep.mubr.bf16.mxu0 0
        %2482 = vmatmul.mubr.bf16.gmra.mxu0 %v2447
        %v2483 = vpop.f32.mrf.mxu0
        %v2484 = vadd.f32 0.0, %v2483
        %v2485 = vpop.f32.mrf.mxu0
        %v2486 = vpop.f32.mrf.mxu0
        %v2487 = vadd.f32 0.0, %v2486
        %v2488 = vpop.f32.mrf.mxu0
        %2489 = vdwg.mxu0
        %v2490 = vadd.f32 %v2293, %v2484
        %v2491 = vadd.f32 %v2294, %v2487
        %s2492 = scalar_lea.vmem %s533, %s1708
        %v2493 = vld [vmem:[%s2492] sm:$0xff]
        %v2494 = vld [vmem:[%s2492 + $0x8] sm:$0xff]
        %v2495 = vadd.f32 %v2493, %v2490
        %v2496 = vadd.f32 %v2494, %v2491
        %v2497 = vld [vmem:[%s10] sm:$0x1]
        %v2498 = vld [vmem:[%s11] sm:$0x1]
        %vm2499 = vcmask 523264
        %v2500 = vsel %vm2499, %v2495, 0.0
        %2501 = vadd.xlane.f32.xlu0 %v2500
        %v2502 = vpop.xlane.xlu0 %2501
        %v2503 = vsel %vm2499, %v2496, 0.0
        %2504 = vadd.xlane.f32.xlu0 %v2503
        %v2505 = vpop.xlane.xlu0 %2504
        %v2506 = vrcp.pop 64.0
        %v2507 = vmul.f32 %v2502, %v2506
        %v2508 = vmul.f32 %v2505, %v2506
        %v2509 = vsub.f32 %v2495, %v2507
        %v2510 = vsub.f32 %v2496, %v2508
        %v2511 = vmul.f32 %v2509, %v2509
        %v2512 = vmul.f32 %v2510, %v2510
        %v2513 = vsel %vm2499, %v2511, 0.0
        %2514 = vadd.xlane.f32.xlu0 %v2513
        %v2515 = vpop.xlane.xlu0 %2514
        %v2516 = vsel %vm2499, %v2512, 0.0
        %2517 = vadd.xlane.f32.xlu0 %v2516
        %v2518 = vpop.xlane.xlu0 %2517
        %v2519 = vmul.f32 %v2515, %v2506
        %v2520 = vmul.f32 %v2518, %v2506
        %v2521 = vadd.f32 %v2519, 1e-05
        %v2522 = vadd.f32 %v2520, 1e-05
        %v2523 = vrsqrt.pop %v2521
        %v2524 = vrsqrt.pop %v2522
        %v2525 = vmul.f32 %v2509, %v2523
        %v2526 = vmul.f32 %v2510, %v2524
        %v2528 = vlaneseq
        %v2529 = vshrl.u32 %v2528, 7
        %v2530 = vsub.s32 0, %v2529
        %v2531 = vrot.slane %v2497, %v2530
        %v2533 = vmul.f32 %v2525, %v2531
        %v2534 = vmul.f32 %v2526, %v2531
        %v2536 = vlaneseq
        %v2537 = vshrl.u32 %v2536, 7
        %v2538 = vsub.s32 0, %v2537
        %v2539 = vrot.slane %v2498, %v2538
        %v2541 = vadd.f32 %v2533, %v2539
        %v2542 = vadd.f32 %v2534, %v2539
        %v2543 = vpack.c.bf16 %v2542, %v2541
        %v2544 = vld [vmem:[%s12] sm:$0xf]
        %v2545 = vld [vmem:[%s12 + $0x4] sm:$0xf]
        %v2546 = vld [vmem:[%s12 + $0x8] sm:$0xf]
        %v2547 = vld [vmem:[%s12 + $0xc] sm:$0xf]
        %v2548 = vld [vmem:[%s12 + $0x10] sm:$0xf]
        %v2549 = vld [vmem:[%s12 + $0x14] sm:$0xf]
        %v2550 = vld [vmem:[%s12 + $0x18] sm:$0xf]
        %v2551 = vld [vmem:[%s12 + $0x1c] sm:$0xf]
        %v2552 = vld [vmem:[%s13] sm:$0x1]
        %v2554 = vlaneseq
        %v2555 = vshrl.u32 %v2554, 7
        %v2556 = vsub.s32 0, %v2555
        %v2557 = vrot.slane %v2552, %v2556
        %v2567 = vunpack.c.l.b16 %v2544
        %v2568 = vunpack.c.l.b16 %v2545
        %v2569 = vunpack.c.l.b16 %v2546
        %v2570 = vunpack.c.l.b16 %v2547
        %v2571 = vunpack.c.l.b16 %v2548
        %v2572 = vunpack.c.l.b16 %v2549
        %v2573 = vunpack.c.l.b16 %v2550
        %v2574 = vunpack.c.l.b16 %v2551
        %v2575 = vpack.c.b16 %v2568, %v2567
        %v2576 = vpack.c.b16 %v2570, %v2569
        %v2577 = vpack.c.b16 %v2572, %v2571
        %v2578 = vpack.c.b16 %v2574, %v2573
        %v2584 = vsel %vm2499, %v2543, 0
        %2586 = vmatprep.subr.bf16.mxu0 0
        %2587 = vmatpush1.bf16.msra.mxu0 0
        %2588 = vmatprep.subr.bf16.mxu0 0
        %2589 = vmatpush1.bf16.msra.mxu0 0
        %2590 = vmatprep.subr.bf16.mxu0 0
        %2591 = vmatpush1.bf16.msra.mxu0 0
        %2592 = vmatprep.subr.bf16.mxu0 0
        %2593 = vmatpush1.bf16.msra.mxu0 0
        %2594 = vmatprep.subr.bf16.mxu0 0
        %2595 = vmatpush1.bf16.msra.mxu0 %v2578
        %2596 = vmatprep.subr.bf16.mxu0 0
        %2597 = vmatpush1.bf16.msra.mxu0 %v2577
        %2598 = vmatprep.subr.bf16.mxu0 0
        %2599 = vmatpush1.bf16.msra.mxu0 %v2576
        %2600 = vmatprep.subr.bf16.mxu0 0
        %2601 = vmatpush1.bf16.msra.mxu0 %v2575
        %2602 = vmatprep.subr.bf16.mxu0 0
        %2603 = vmatpush2.bf16.msra.mxu0 0
        %2604 = vmatprep.subr.bf16.mxu0 0
        %2605 = vmatpush2.bf16.msra.mxu0 0
        %2606 = vmatprep.subr.bf16.mxu0 0
        %2607 = vmatpush2.bf16.msra.mxu0 0
        %2608 = vmatprep.subr.bf16.mxu0 0
        %2609 = vmatpush2.bf16.msra.mxu0 0
        %2610 = vmatprep.subr.bf16.mxu0 0
        %2611 = vmatpush2.bf16.msra.mxu0 0
        %2612 = vmatprep.subr.bf16.mxu0 0
        %2613 = vmatpush2.bf16.msra.mxu0 0
        %2614 = vmatprep.subr.bf16.mxu0 0
        %2615 = vmatpush2.bf16.msra.mxu0 0
        %2616 = vmatprep.subr.bf16.mxu0 0
        %2617 = vmatpush2.bf16.msra.mxu0 0
        %2618 = vmatprep.mubr.bf16.mxu0 0
        %2619 = vmatmul.mubr.bf16.gmra.mxu0 %v2584
        %v2620 = vpop.f32.mrf.mxu0
        %v2621 = vadd.f32 %v2557, %v2620
        %v2622 = vpop.f32.mrf.mxu0
        %v2623 = vpop.f32.mrf.mxu0
        %v2624 = vadd.f32 %v2557, %v2623
        %v2625 = vpop.f32.mrf.mxu0
        %2626 = vdwg.mxu0
        %v2627 = vmul.f32 %v2621, 0.5
        %v2628 = vmul.f32 %v2624, 0.5
        %v2629 = vmul.f32 %v2621, 0.70710677
        %v2630 = vmul.f32 %v2624, 0.70710677
        %v2631 = verf.f32.pop %v2629
        %v2632 = verf.f32.pop %v2630
        %v2633 = vadd.f32 %v2631, 1.0
        %v2634 = vadd.f32 %v2632, 1.0
        %v2635 = vmul.f32 %v2627, %v2633
        %v2636 = vmul.f32 %v2628, %v2634
        %v2637 = vpack.c.bf16 %v2636, %v2635
        %v2638 = vld [vmem:[%s14] sm:$0xf]
        %v2639 = vld [vmem:[%s14 + $0x4] sm:$0xf]
        %v2640 = vld [vmem:[%s14 + $0x8] sm:$0xf]
        %v2641 = vld [vmem:[%s14 + $0xc] sm:$0xf]
        %v2642 = vld [vmem:[%s14 + $0x10] sm:$0xf]
        %v2643 = vld [vmem:[%s14 + $0x14] sm:$0xf]
        %v2644 = vld [vmem:[%s14 + $0x18] sm:$0xf]
        %v2645 = vld [vmem:[%s14 + $0x1c] sm:$0xf]
        %v2646 = vld [vmem:[%s15] sm:$0x1]
        %v2648 = vlaneseq
        %v2649 = vshrl.u32 %v2648, 7
        %v2650 = vsub.s32 0, %v2649
        %v2651 = vrot.slane %v2646, %v2650
        %v2661 = vunpack.c.l.b16 %v2638
        %v2662 = vunpack.c.l.b16 %v2639
        %v2663 = vunpack.c.l.b16 %v2640
        %v2664 = vunpack.c.l.b16 %v2641
        %v2665 = vunpack.c.l.b16 %v2642
        %v2666 = vunpack.c.l.b16 %v2643
        %v2667 = vunpack.c.l.b16 %v2644
        %v2668 = vunpack.c.l.b16 %v2645
        %v2669 = vpack.c.b16 %v2662, %v2661
        %v2670 = vpack.c.b16 %v2664, %v2663
        %v2671 = vpack.c.b16 %v2666, %v2665
        %v2672 = vpack.c.b16 %v2668, %v2667
        %v2678 = vsel %vm2499, %v2637, 0
        %2680 = vmatprep.subr.bf16.mxu0 0
        %2681 = vmatpush1.bf16.msra.mxu0 0
        %2682 = vmatprep.subr.bf16.mxu0 0
        %2683 = vmatpush1.bf16.msra.mxu0 0
        %2684 = vmatprep.subr.bf16.mxu0 0
        %2685 = vmatpush1.bf16.msra.mxu0 0
        %2686 = vmatprep.subr.bf16.mxu0 0
        %2687 = vmatpush1.bf16.msra.mxu0 0
        %2688 = vmatprep.subr.bf16.mxu0 0
        %2689 = vmatpush1.bf16.msra.mxu0 %v2672
        %2690 = vmatprep.subr.bf16.mxu0 0
        %2691 = vmatpush1.bf16.msra.mxu0 %v2671
        %2692 = vmatprep.subr.bf16.mxu0 0
        %2693 = vmatpush1.bf16.msra.mxu0 %v2670
        %2694 = vmatprep.subr.bf16.mxu0 0
        %2695 = vmatpush1.bf16.msra.mxu0 %v2669
        %2696 = vmatprep.subr.bf16.mxu0 0
        %2697 = vmatpush2.bf16.msra.mxu0 0
        %2698 = vmatprep.subr.bf16.mxu0 0
        %2699 = vmatpush2.bf16.msra.mxu0 0
        %2700 = vmatprep.subr.bf16.mxu0 0
        %2701 = vmatpush2.bf16.msra.mxu0 0
        %2702 = vmatprep.subr.bf16.mxu0 0
        %2703 = vmatpush2.bf16.msra.mxu0 0
        %2704 = vmatprep.subr.bf16.mxu0 0
        %2705 = vmatpush2.bf16.msra.mxu0 0
        %2706 = vmatprep.subr.bf16.mxu0 0
        %2707 = vmatpush2.bf16.msra.mxu0 0
        %2708 = vmatprep.subr.bf16.mxu0 0
        %2709 = vmatpush2.bf16.msra.mxu0 0
        %2710 = vmatprep.subr.bf16.mxu0 0
        %2711 = vmatpush2.bf16.msra.mxu0 0
        %2712 = vmatprep.mubr.bf16.mxu0 0
        %2713 = vmatmul.mubr.bf16.gmra.mxu0 %v2678
        %v2714 = vpop.f32.mrf.mxu0
        %v2715 = vadd.f32 %v2651, %v2714
        %v2716 = vpop.f32.mrf.mxu0
        %v2717 = vpop.f32.mrf.mxu0
        %v2718 = vadd.f32 %v2651, %v2717
        %v2719 = vpop.f32.mrf.mxu0
        %2720 = vdwg.mxu0
        %v2721 = vadd.f32 %v2495, %v2715
        %v2722 = vadd.f32 %v2496, %v2718
        %2723 = vst.msk [vmem:[%s528] sm:$0xff] %vm2499, %v2721
        %2724 = vst.msk [vmem:[%s528 + $0x8] sm:$0xff] %vm2499, %v2722
        %s2725 = sand.u32 %s393, 1
        %s2726 = scalar_lea.sflag [#allocation6], %s2725
        %s2727 = sand.u32 %s393, 1
        %s2728 = smul.addr %s2727, 16
        %s2729 = scalar_lea.vmem [#allocation5], %s2728
        // Predicated region
        $region89: #{tpu_custom_call.1} parent=83 // pred_check
          %p2730 = pneg %p403
        $region90: #{tpu_custom_call.1} parent=83 // pred_check_branch
          %2732 = sbr.rel (%p2730) target = $region92
        $region91: #{tpu_custom_call.1} parent=83 // pred_region
          %s2733 = smul.u32 2, %s35
          %s2735 = ssub.s32 256, 256
          %2736 = vsyncadd %s2726, %s2735
          %s2737 = smul.addr %s34, 2
          %s2738 = sadd.s32 %s2733, %s2737
          %s2739 = smul.addr %s2738, 128
          %s2740 = scalar_lea.hbm %s16, %s2739
          %s2741 = sshll.u32 %s2729, 4
          %s2742 = int_to_ptr.vmem [resolvable:$true] %s2741
          %2747 = dma.vmem_to_hbm [thread:$0]  %s2742, 256, %s2740, %s2726, 128, 128, 8
        $region92: #{tpu_custom_call.1} parent=83 // pred_fallthru
          _
      $region84: #{tpu_custom_call.1} parent=5 // pred_fallthru
        _
      %p2748 = scmp.le.s32.totalorder 2, %s25
      // Predicated region
      $region93: #{tpu_custom_call.1} parent=5 // pred_check
        %p2749 = pneg %p2748
      $region94: #{tpu_custom_call.1} parent=5 // pred_check_branch
        %2751 = sbr.rel (%p2749) target = $region96
      $region95: #{tpu_custom_call.1} parent=5 // pred_region
        %s2752 = ssub.s32 %s25, 2
        // Predicated region
        $region97: #{tpu_custom_call.1} parent=95 // pred_check
          %p2753 = pneg %p409
        $region98: #{tpu_custom_call.1} parent=95 // pred_check_branch
          %2755 = sbr.rel (%p2753) target = $region100
        $region99: #{tpu_custom_call.1} parent=95 // pred_region
          %s2756 = sand.u32 %s394, 1
          %s2757 = scalar_lea.sflag [#allocation6], %s2756
          %s2758 = sand.u32 %s394, 1
          %s2759 = smul.addr %s2758, 16
          %s2760 = scalar_lea.vmem [#allocation5], %s2759
          %2761 = dma.done %s2757, 256
        $region100: #{tpu_custom_call.1} parent=95 // pred_fallthru
          _
      $region96: #{tpu_custom_call.1} parent=5 // pred_fallthru
        _
    $region6: #{tpu_custom_call.1} parent=1 // loop_footer
      %s29 = sadd.s32 1, %s25
    $region7: #{tpu_custom_call.1} parent=1 // loop_footer_branch
      %24 = sbr.rel target = $region3
    $region8: #{tpu_custom_call.1} parent=1 // loop_exit
      _
    %2762 = vsyncpa [#allocation6], 1
    %s2763 = scalar_lea.sflag [#allocation6], 1
    %2764 = vsyncpa %s2763, 1

</llo_original>
